<compile_context>
chip_gen: v7x
topology: tpu7x:2x2x1
jax: 0.10.0
libtpu: 0.0.40
codegen_flags: <defaults>
</compile_context>

<pallas_src>
import math
import jax
import jax.numpy as jnp
from jax.experimental import pallas as pl
from jax.experimental.pallas import tpu as pltpu

B, S, H, V = 2, 16, 128, 100    # small synthetic shapes (original uses S=512, H=hidden_size)
C2 = 2 * S                      # conv1 expansion channels
N_LAYERS = 2
SEP_ID = 3
DTYPE = jnp.float32
MXU_DTYPE = jnp.bfloat16        # MXU operand dtype; accumulation stays f32


# ---------------- Fused forward kernel (one grid step per batch element) -----------
def fused_forward_kernel(x_ref, qmask_ref,
                         wk_ref, bk_ref, wv_ref, bv_ref, wq_ref, bq_ref,
                         w1_ref, b1_ref, w2_ref, b2_ref, g_ref, beta_ref,
                         wqa_ref, bqa_ref, wqc_ref, bqc_ref,
                         out_ref):
    f32 = jnp.float32
    x_bf = x_ref[0]                                    # (S, H) bf16 activation block
    m_row = qmask_ref[0]                               # (1, S) f32, 1.0 on question tokens

    # ---- AttentionLayer (qa_layer, need_query_emb=True) ---------------------------
    cnt = jnp.maximum(jnp.sum(m_row, axis=-1, keepdims=True), 1.0)            # (1, 1)
    # masked-mean question pooling as a (1,S)@(S,H) MXU matmul
    q_emb = jnp.dot(m_row.astype(MXU_DTYPE), x_bf,
                    preferred_element_type=f32) / cnt                          # (1, H) f32

    key = jnp.dot(x_bf, wk_ref[...], preferred_element_type=f32) + bk_ref[...]   # (S, H)
    val = jnp.dot(x_bf, wv_ref[...], preferred_element_type=f32) + bv_ref[...]   # (S, H)
    qry = jnp.dot(q_emb.astype(MXU_DTYPE), wq_ref[...],
                  preferred_element_type=f32) + bq_ref[...]                    # (1, H)

    # lane-major scores: contract over H without materializing key.T -> (1, S)
    scores = jax.lax.dot_general(
        qry.astype(MXU_DTYPE), key.astype(MXU_DTYPE),
        (((1,), (1,)), ((), ())), preferred_element_type=f32) * (1.0 / math.sqrt(H))
    scores = scores - jnp.max(scores, axis=-1, keepdims=True)
    p = jnp.exp(scores)                                                        # (1, S)
    p = p * pl.reciprocal(jnp.sum(p, axis=-1, keepdims=True), approx=True)
    w_col = jnp.transpose(p)                                                   # (S, 1)
    y = x_bf.astype(f32) + w_col * val            # query-conditioned gating + residual

    # conv padding masks: (1,H) multiplicative, built once before the layer loop
    lane = jax.lax.broadcasted_iota(jnp.int32, (1, H), 1)
    mask_m1 = (lane > 0).astype(f32)          # zero column h == 0   (left pad)
    mask_p1 = (lane < H - 1).astype(f32)      # zero column h == H-1 (right pad)

    # ---- QAConvSDSHead: 2 x [Conv1d(S,2S,k3,p1) -> ReLU -> Conv1d(2S,S,k1)
    #                          -> residual -> LayerNorm] ---------------------------
    for i in range(N_LAYERS):
        y_bf = y.astype(MXU_DTYPE)
        x_m1 = (pltpu.roll(y, shift=1, axis=1) * mask_m1).astype(MXU_DTYPE)     # x[:, h-1]
        x_p1 = (pltpu.roll(y, shift=H - 1, axis=1) * mask_p1).astype(MXU_DTYPE) # x[:, h+1]
        # Conv1d(k=3,p=1) as 3 accumulated matmuls (one per tap); no (3S,H) concat.
        h = (jnp.dot(w1_ref[3 * i + 0], x_m1, preferred_element_type=f32)
             + jnp.dot(w1_ref[3 * i + 1], y_bf, preferred_element_type=f32)
             + jnp.dot(w1_ref[3 * i + 2], x_p1, preferred_element_type=f32)
             + jnp.transpose(b1_ref[i]))                                        # (2S, H)
        h = jnp.maximum(h, 0.0)                                                 # ReLU
        o = jnp.dot(w2_ref[i], h.astype(MXU_DTYPE),
                    preferred_element_type=f32) + jnp.transpose(b2_ref[i])      # (S, H)
        r = y + o                                                               # residual
        mu = jnp.mean(r, axis=-1, keepdims=True)                                # LayerNorm over H
        var = jnp.mean(jnp.square(r - mu), axis=-1, keepdims=True)
        y = (r - mu) * jax.lax.rsqrt(var + 1e-5) * g_ref[i] + beta_ref[i]

    # ---- heads: qa_output Linear(H,2) + question_classifier Linear(H,1) ------------
    # H->2 on the MXU, lane-major (2,S) result; epilogue VALU/XLU work removed.
    logits_t = jax.lax.dot_general(
        wqa_ref[...], y.astype(MXU_DTYPE),
        (((1,), (1,)), ((), ())), preferred_element_type=f32) + bqa_ref[...]    # (2, S)

    ql = jax.lax.dot_general(
        q_emb.astype(MXU_DTYPE), wqc_ref[...],
        (((1,), (1,)), ((), ())), preferred_element_type=f32) + bqc_ref[...]    # (1, 1)
    ql = jax.nn.sigmoid(ql)                      # reference applies sigmoid in forward

    # single lane-dense output block: rows = [start, end, q_logit(broadcast)]
    out_ref[0] = jnp.concatenate([logits_t, jnp.broadcast_to(ql, (1, S))], axis=0)


# ---------------- BlockSpec helpers ---------------------------------------------------
def _batched_spec(shape):
    zeros = (0,) * len(shape)
    return pl.BlockSpec((1,) + shape, lambda b: (b,) + zeros)


def _const_spec(shape, single_buffer):
    zeros = (0,) * len(shape)
    if single_buffer:
        # constant index_map -> fetched once; single-buffer to halve weight VMEM
        return pl.BlockSpec(shape, lambda b: zeros, pipeline_mode=pl.Buffered(1))
    return pl.BlockSpec(shape, lambda b: zeros)


def _vmem_limit_bytes():
    # Per-generation VMEM budget: ~56 MiB on v7x (64 MiB physical), ~100 MiB on
    # v5e/v6e (128 MiB physical), leaving headroom for compiler-internal scratch.
    try:
        cap = int(pltpu.get_tpu_info().vmem_capacity_bytes)
    except Exception:
        cap = 64 << 20                            # assume tightest chip (v7x per-core)
    return int(min(cap - (8 << 20), 100 << 20))


# ---------------- pallas_call wrapper ---------------------------------------------------
def fused_forward(seq, qmask, p):
    def build_and_run(single_buffer_weights):
        cw = lambda shape: _const_spec(shape, single_buffer_weights)
        fn = pl.pallas_call(
            fused_forward_kernel,
            out_shape=jax.ShapeDtypeStruct((B, 3, S), DTYPE),
            grid_spec=pltpu.PrefetchScalarGridSpec(
                num_scalar_prefetch=0, grid=(B,),
                in_specs=[_batched_spec((S, H)), _batched_spec((1, S)),
                          cw((H, H)), cw((1, H)),
                          cw((H, H)), cw((1, H)),
                          cw((H, H)), cw((1, H)),
                          cw((N_LAYERS * 3, C2, S)), cw((N_LAYERS, 1, C2)),
                          cw((N_LAYERS, S, C2)), cw((N_LAYERS, 1, S)),
                          cw((N_LAYERS, 1, H)), cw((N_LAYERS, 1, H)),
                          cw((2, H)), cw((2, 1)),
                          cw((1, H)), cw((1, 1))],
                out_specs=_batched_spec((3, S))),
            compiler_params=pltpu.CompilerParams(
                dimension_semantics=("parallel",),
                vmem_limit_bytes=_vmem_limit_bytes()),
        )
        return fn(seq, qmask,
                  p["wk"], p["bk"], p["wv"], p["bv"], p["wq"], p["bq"],
                  p["w1"], p["b1"], p["w2"], p["b2"], p["gamma"], p["beta"],
                  p["wqa"], p["bqa"], p["wqc"], p["bqc"])

    try:
        out = build_and_run(True)
        jax.block_until_ready(out)
        return out
    except Exception:
        # TODO(synk): this jax/Mosaic build rejected pl.Buffered(1) single
        # buffering; falling back to default double-buffered constant specs.
        return build_and_run(False)


# ---------------- Full forward -----------------------------------------------------------
def model_forward(input_ids, params):
    # TODO(synk): the pretrained transformer backbone (AutoModel) cannot be
    # reproduced without its checkpoint; a deterministic embedding lookup
    # stands in for outputs[0] (sequence_output).  Shipped to the kernel as
    # bf16 to halve activation DMA (v5e HBM BW); f32 math happens in-kernel.
    seq = params["emb"][input_ids].astype(MXU_DTYPE)                  # (B, S, H) bf16

    # make_token_type_ids: 0 before the first [SEP], 1 from [SEP] onwards.
    sep_idx = jnp.argmax((input_ids == SEP_ID).astype(jnp.int32), axis=1)     # (B,)
    token_type_ids = (jnp.arange(S)[None, :] >= sep_idx[:, None]).astype(jnp.int32)
    qmask = (token_type_ids == 0).astype(DTYPE)[:, None, :]           # (B, 1, S), lane-dense

    out = fused_forward(seq, qmask, params)                           # (B, 3, S)
    start_logits = out[:, 0, :]                                       # (B, S)
    end_logits = out[:, 1, :]                                         # (B, S)
    q_logit = out[:, 2, 0:1]                                          # (B, 1), sigmoid'ed
    return start_logits, end_logits, q_logit


# ---------------- Deterministic parameter init ---------------------------------------------
def init_params(key):
    ks = jax.random.split(key, 12)

    def lin(k, fan_in, shape, dtype=DTYPE):
        return (jax.random.normal(k, shape, DTYPE) / math.sqrt(fan_in)).astype(dtype)

    def conv1_taps(k):
        # PyTorch Conv1d weight (out=2S, in=S, k=3) stored as 3 per-tap (2S, S)
        # matrices stacked on the leading axis: tap k multiplies x[:, h-1+k].
        w = jax.random.normal(k, (C2, S, 3), DTYPE) / math.sqrt(S * 3)
        return jnp.stack([w[..., 0], w[..., 1], w[..., 2]], axis=0).astype(MXU_DTYPE)

    params = {
        "emb": jax.random.normal(ks[0], (V, H), DTYPE) * 0.02,
        # attention layer (MXU weights in bf16, biases f32)
        "wk": lin(ks[1], H, (H, H), MXU_DTYPE), "bk": jnp.zeros((1, H), DTYPE),
        "wv": lin(ks[2], H, (H, H), MXU_DTYPE), "bv": jnp.zeros((1, H), DTYPE),
        "wq": lin(ks[3], H, (H, H), MXU_DTYPE), "bq": jnp.zeros((1, H), DTYPE),
        # heads (MXU path); layouts match nn.Linear.weight = (out, in)
        "wqa": lin(ks[4], H, (2, H), MXU_DTYPE), "bqa": jnp.zeros((2, 1), DTYPE),
        "wqc": lin(ks[5], H, (1, H), MXU_DTYPE), "bqc": jnp.zeros((1, 1), DTYPE),
        # SDS conv head, both layers stacked; conv1 per-tap, biases lane-dense
        "w1": jnp.concatenate([conv1_taps(ks[6]), conv1_taps(ks[7])], axis=0),  # (6, 2S, S) bf16
        "b1": jnp.zeros((N_LAYERS, 1, C2), DTYPE),
        "w2": jnp.stack([lin(ks[8], C2, (S, C2), MXU_DTYPE),
                         lin(ks[9], C2, (S, C2), MXU_DTYPE)]),                  # (2, S, 2S) bf16
        "b2": jnp.zeros((N_LAYERS, 1, S), DTYPE),
        "gamma": jnp.ones((N_LAYERS, 1, H), DTYPE),
        "beta": jnp.zeros((N_LAYERS, 1, H), DTYPE),
    }
    return params


if __name__ == "__main__":
    key = jax.random.PRNGKey(0)
    pkey, dkey = jax.random.split(key)
    params = init_params(pkey)

    input_ids = jax.random.randint(dkey, (B, S), 5, V)
    sep_pos = jnp.array([5, 9])                 # deterministic [SEP] placement per row
    input_ids = input_ids.at[jnp.arange(B), sep_pos].set(SEP_ID)

    start_logits, end_logits, q_logit = model_forward(input_ids, params)
    jax.block_until_ready((start_logits, end_logits, q_logit))

    assert start_logits.shape == (B, S) and end_logits.shape == (B, S)
    assert q_logit.shape == (B, 1)
    assert bool(jnp.all(jnp.isfinite(start_logits)))
    assert bool(jnp.all(jnp.isfinite(end_logits)))
    assert bool(jnp.all((q_logit >= 0) & (q_logit <= 1)))
    print("KERNEL_OK")
</pallas_src>

<mosaic_0001>
module attributes {stable_mosaic.version = 11 : i64} {
  func.func @fused_forward_kernel(%arg0: i32, %arg1: memref<1x16x128xbf16, #tpu.memory_space<vmem>>, %arg2: memref<1x1x16xf32, #tpu.memory_space<vmem>>, %arg3: memref<128x128xbf16, #tpu.memory_space<vmem>>, %arg4: memref<1x128xf32, #tpu.memory_space<vmem>>, %arg5: memref<128x128xbf16, #tpu.memory_space<vmem>>, %arg6: memref<1x128xf32, #tpu.memory_space<vmem>>, %arg7: memref<128x128xbf16, #tpu.memory_space<vmem>>, %arg8: memref<1x128xf32, #tpu.memory_space<vmem>>, %arg9: memref<6x32x16xbf16, #tpu.memory_space<vmem>>, %arg10: memref<2x1x32xf32, #tpu.memory_space<vmem>>, %arg11: memref<2x16x32xbf16, #tpu.memory_space<vmem>>, %arg12: memref<2x1x16xf32, #tpu.memory_space<vmem>>, %arg13: memref<2x1x128xf32, #tpu.memory_space<vmem>>, %arg14: memref<2x1x128xf32, #tpu.memory_space<vmem>>, %arg15: memref<2x128xbf16, #tpu.memory_space<vmem>>, %arg16: memref<2x1xf32, #tpu.memory_space<vmem>>, %arg17: memref<1x128xbf16, #tpu.memory_space<vmem>>, %arg18: memref<1x1xf32, #tpu.memory_space<vmem>>, %arg19: memref<1x3x16xf32, #tpu.memory_space<vmem>>) attributes {dimension_semantics = [#tpu.dimension_semantics<parallel>], iteration_bounds = array<i64: 2>, scalar_prefetch = 0 : i64, scratch_operands = 0 : i64, tpu.core_type = #tpu.core_type<tc>, window_params = [{transform_indices = @transform_0, window_bounds = array<i64: 1, 16, 128>}, {transform_indices = @transform_1, window_bounds = array<i64: 1, 1, 16>}, {pipeline_mode = #tpu.pipeline_mode<synchronous>, transform_indices = @transform_2, window_bounds = array<i64: 128, 128>}, {pipeline_mode = #tpu.pipeline_mode<synchronous>, transform_indices = @transform_3, window_bounds = array<i64: 1, 128>}, {pipeline_mode = #tpu.pipeline_mode<synchronous>, transform_indices = @transform_4, window_bounds = array<i64: 128, 128>}, {pipeline_mode = #tpu.pipeline_mode<synchronous>, transform_indices = @transform_5, window_bounds = array<i64: 1, 128>}, {pipeline_mode = #tpu.pipeline_mode<synchronous>, transform_indices = @transform_6, window_bounds = array<i64: 128, 128>}, {pipeline_mode = #tpu.pipeline_mode<synchronous>, transform_indices = @transform_7, window_bounds = array<i64: 1, 128>}, {pipeline_mode = #tpu.pipeline_mode<synchronous>, transform_indices = @transform_8, window_bounds = array<i64: 6, 32, 16>}, {pipeline_mode = #tpu.pipeline_mode<synchronous>, transform_indices = @transform_9, window_bounds = array<i64: 2, 1, 32>}, {pipeline_mode = #tpu.pipeline_mode<synchronous>, transform_indices = @transform_10, window_bounds = array<i64: 2, 16, 32>}, {pipeline_mode = #tpu.pipeline_mode<synchronous>, transform_indices = @transform_11, window_bounds = array<i64: 2, 1, 16>}, {pipeline_mode = #tpu.pipeline_mode<synchronous>, transform_indices = @transform_12, window_bounds = array<i64: 2, 1, 128>}, {pipeline_mode = #tpu.pipeline_mode<synchronous>, transform_indices = @transform_13, window_bounds = array<i64: 2, 1, 128>}, {pipeline_mode = #tpu.pipeline_mode<synchronous>, transform_indices = @transform_14, window_bounds = array<i64: 2, 128>}, {pipeline_mode = #tpu.pipeline_mode<synchronous>, transform_indices = @transform_15, window_bounds = array<i64: 2, 1>}, {pipeline_mode = #tpu.pipeline_mode<synchronous>, transform_indices = @transform_16, window_bounds = array<i64: 1, 128>}, {pipeline_mode = #tpu.pipeline_mode<synchronous>, transform_indices = @transform_17, window_bounds = array<i64: 1, 1>}, {transform_indices = @transform_18, window_bounds = array<i64: 1, 3, 16>}]} {
    %c0 = arith.constant 0 : index
    %c0_0 = arith.constant 0 : index
    %c0_1 = arith.constant 0 : index
    %0 = vector.load %arg1[%c0, %c0_0, %c0_1] : memref<1x16x128xbf16, #tpu.memory_space<vmem>>, vector<1x16x128xbf16>
    %1 = vector.shape_cast %0 : vector<1x16x128xbf16> to vector<16x128xbf16>
    %c0_2 = arith.constant 0 : index
    %c0_3 = arith.constant 0 : index
    %c0_4 = arith.constant 0 : index
    %2 = vector.load %arg2[%c0_2, %c0_3, %c0_4] : memref<1x1x16xf32, #tpu.memory_space<vmem>>, vector<1x1x16xf32>
    %3 = vector.shape_cast %2 : vector<1x1x16xf32> to vector<1x16xf32>
    %cst = arith.constant dense<0.000000e+00> : vector<1xf32>
    %4 = vector.multi_reduction <add>, %3, %cst [1] : vector<1x16xf32> to vector<1xf32>
    %5 = vector.shape_cast %4 : vector<1xf32> to vector<1x1xf32>
    %cst_5 = arith.constant 1.000000e+00 : f32
    %6 = vector.broadcast %cst_5 : f32 to vector<1x1xf32>
    %7 = arith.maximumf %5, %6 : vector<1x1xf32>
    %8 = arith.truncf %3 : vector<1x16xf32> to vector<1x16xbf16>
    %cst_6 = arith.constant dense<0.000000e+00> : vector<1x128xf32>
    %9 = tpu.matmul %8, %1, %cst_6 {dimension_numbers = #tpu.dot_dimension_numbers<[1], [0], [0], [1], [0, 0, 1, 1], [], []>} : vector<1x16xbf16>, vector<16x128xbf16>, vector<1x128xf32> -> vector<1x128xf32>
    %10 = vector.broadcast %7 : vector<1x1xf32> to vector<1x128xf32>
    %11 = arith.divf %9, %10 : vector<1x128xf32>
    %c0_7 = arith.constant 0 : index
    %c0_8 = arith.constant 0 : index
    %12 = vector.load %arg3[%c0_7, %c0_8] : memref<128x128xbf16, #tpu.memory_space<vmem>>, vector<128x128xbf16>
    %cst_9 = arith.constant dense<0.000000e+00> : vector<16x128xf32>
    %13 = tpu.matmul %1, %12, %cst_9 {dimension_numbers = #tpu.dot_dimension_numbers<[1], [0], [0], [1], [0, 0, 1, 1], [], []>} : vector<16x128xbf16>, vector<128x128xbf16>, vector<16x128xf32> -> vector<16x128xf32>
    %c0_10 = arith.constant 0 : index
    %c0_11 = arith.constant 0 : index
    %14 = vector.load %arg4[%c0_10, %c0_11] : memref<1x128xf32, #tpu.memory_space<vmem>>, vector<1x128xf32>
    %15 = vector.broadcast %14 : vector<1x128xf32> to vector<16x128xf32>
    %16 = arith.addf %13, %15 : vector<16x128xf32>
    %c0_12 = arith.constant 0 : index
    %c0_13 = arith.constant 0 : index
    %17 = vector.load %arg5[%c0_12, %c0_13] : memref<128x128xbf16, #tpu.memory_space<vmem>>, vector<128x128xbf16>
    %cst_14 = arith.constant dense<0.000000e+00> : vector<16x128xf32>
    %18 = tpu.matmul %1, %17, %cst_14 {dimension_numbers = #tpu.dot_dimension_numbers<[1], [0], [0], [1], [0, 0, 1, 1], [], []>} : vector<16x128xbf16>, vector<128x128xbf16>, vector<16x128xf32> -> vector<16x128xf32>
    %c0_15 = arith.constant 0 : index
    %c0_16 = arith.constant 0 : index
    %19 = vector.load %arg6[%c0_15, %c0_16] : memref<1x128xf32, #tpu.memory_space<vmem>>, vector<1x128xf32>
    %20 = vector.broadcast %19 : vector<1x128xf32> to vector<16x128xf32>
    %21 = arith.addf %18, %20 : vector<16x128xf32>
    %22 = arith.truncf %11 : vector<1x128xf32> to vector<1x128xbf16>
    %c0_17 = arith.constant 0 : index
    %c0_18 = arith.constant 0 : index
    %23 = vector.load %arg7[%c0_17, %c0_18] : memref<128x128xbf16, #tpu.memory_space<vmem>>, vector<128x128xbf16>
    %cst_19 = arith.constant dense<0.000000e+00> : vector<1x128xf32>
    %24 = tpu.matmul %22, %23, %cst_19 {dimension_numbers = #tpu.dot_dimension_numbers<[1], [0], [0], [1], [0, 0, 1, 1], [], []>} : vector<1x128xbf16>, vector<128x128xbf16>, vector<1x128xf32> -> vector<1x128xf32>
    %c0_20 = arith.constant 0 : index
    %c0_21 = arith.constant 0 : index
    %25 = vector.load %arg8[%c0_20, %c0_21] : memref<1x128xf32, #tpu.memory_space<vmem>>, vector<1x128xf32>
    %26 = arith.addf %24, %25 : vector<1x128xf32>
    %27 = arith.truncf %26 : vector<1x128xf32> to vector<1x128xbf16>
    %28 = arith.truncf %16 : vector<16x128xf32> to vector<16x128xbf16>
    %cst_22 = arith.constant dense<0.000000e+00> : vector<1x16xf32>
    %29 = tpu.matmul %27, %28, %cst_22 {dimension_numbers = #tpu.dot_dimension_numbers<[1], [1], [0], [0], [0, 0, 1, 0], [], []>} : vector<1x128xbf16>, vector<16x128xbf16>, vector<1x16xf32> -> vector<1x16xf32>
    %cst_23 = arith.constant 0.0883883461 : f32
    %30 = vector.broadcast %cst_23 : f32 to vector<1x16xf32>
    %31 = arith.mulf %29, %30 : vector<1x16xf32>
    %cst_24 = arith.constant dense<0xFF800000> : vector<1xf32>
    %32 = vector.multi_reduction <maximumf>, %31, %cst_24 [1] : vector<1x16xf32> to vector<1xf32>
    %33 = vector.shape_cast %32 : vector<1xf32> to vector<1x1xf32>
    %34 = vector.broadcast %33 : vector<1x1xf32> to vector<1x16xf32>
    %35 = arith.subf %31, %34 : vector<1x16xf32>
    %36 = math.exp %35 : vector<1x16xf32>
    %cst_25 = arith.constant dense<0.000000e+00> : vector<1xf32>
    %37 = vector.multi_reduction <add>, %36, %cst_25 [1] : vector<1x16xf32> to vector<1xf32>
    %38 = vector.shape_cast %37 : vector<1xf32> to vector<1x1xf32>
    %39 = tpu.reciprocal %38 {approx = true} : vector<1x1xf32> -> vector<1x1xf32>
    %40 = vector.broadcast %39 : vector<1x1xf32> to vector<1x16xf32>
    %41 = arith.mulf %36, %40 : vector<1x16xf32>
    %42 = tpu.transpose %41, [1, 0] : vector<1x16xf32> -> vector<16x1xf32>
    %43 = arith.extf %1 : vector<16x128xbf16> to vector<16x128xf32>
    %44 = vector.broadcast %42 : vector<16x1xf32> to vector<16x128xf32>
    %45 = arith.mulf %44, %21 : vector<16x128xf32>
    %46 = arith.addf %43, %45 : vector<16x128xf32>
    %47 = tpu.iota {dimensions = array<i32: 1>} : vector<1x128xi32>
    %c0_i32 = arith.constant 0 : i32
    %48 = vector.broadcast %c0_i32 : i32 to vector<1x128xi32>
    %49 = arith.cmpi sgt, %47, %48 : vector<1x128xi32>
    %50 = arith.extui %49 : vector<1x128xi1> to vector<1x128xi32>
    %51 = arith.sitofp %50 : vector<1x128xi32> to vector<1x128xf32>
    %c127_i32 = arith.constant 127 : i32
    %52 = vector.broadcast %c127_i32 : i32 to vector<1x128xi32>
    %53 = arith.cmpi slt, %47, %52 : vector<1x128xi32>
    %54 = arith.extui %53 : vector<1x128xi1> to vector<1x128xi32>
    %55 = arith.sitofp %54 : vector<1x128xi32> to vector<1x128xf32>
    %56 = arith.truncf %46 : vector<16x128xf32> to vector<16x128xbf16>
    %c1_i32 = arith.constant 1 : i32
    %57 = tpu.dynamic_rotate %46 by %c1_i32 dim 1 : vector<16x128xf32>, i32 -> vector<16x128xf32>
    %58 = vector.broadcast %51 : vector<1x128xf32> to vector<16x128xf32>
    %59 = arith.mulf %57, %58 : vector<16x128xf32>
    %60 = arith.truncf %59 : vector<16x128xf32> to vector<16x128xbf16>
    %c127_i32_26 = arith.constant 127 : i32
    %61 = tpu.dynamic_rotate %46 by %c127_i32_26 dim 1 : vector<16x128xf32>, i32 -> vector<16x128xf32>
    %62 = vector.broadcast %55 : vector<1x128xf32> to vector<16x128xf32>
    %63 = arith.mulf %61, %62 : vector<16x128xf32>
    %64 = arith.truncf %63 : vector<16x128xf32> to vector<16x128xbf16>
    %c0_27 = arith.constant 0 : index
    %c0_28 = arith.constant 0 : index
    %c0_29 = arith.constant 0 : index
    %65 = vector.load %arg9[%c0_27, %c0_28, %c0_29] : memref<6x32x16xbf16, #tpu.memory_space<vmem>>, vector<1x32x16xbf16>
    %66 = vector.shape_cast %65 : vector<1x32x16xbf16> to vector<32x16xbf16>
    %cst_30 = arith.constant dense<0.000000e+00> : vector<32x128xf32>
    %67 = tpu.matmul %66, %60, %cst_30 {dimension_numbers = #tpu.dot_dimension_numbers<[1], [0], [0], [1], [0, 0, 1, 1], [], []>} : vector<32x16xbf16>, vector<16x128xbf16>, vector<32x128xf32> -> vector<32x128xf32>
    %c1 = arith.constant 1 : index
    %c0_31 = arith.constant 0 : index
    %c0_32 = arith.constant 0 : index
    %68 = vector.load %arg9[%c1, %c0_31, %c0_32] : memref<6x32x16xbf16, #tpu.memory_space<vmem>>, vector<1x32x16xbf16>
    %69 = vector.shape_cast %68 : vector<1x32x16xbf16> to vector<32x16xbf16>
    %cst_33 = arith.constant dense<0.000000e+00> : vector<32x128xf32>
    %70 = tpu.matmul %69, %56, %cst_33 {dimension_numbers = #tpu.dot_dimension_numbers<[1], [0], [0], [1], [0, 0, 1, 1], [], []>} : vector<32x16xbf16>, vector<16x128xbf16>, vector<32x128xf32> -> vector<32x128xf32>
    %71 = arith.addf %67, %70 : vector<32x128xf32>
    %c2 = arith.constant 2 : index
    %c0_34 = arith.constant 0 : index
    %c0_35 = arith.constant 0 : index
    %72 = vector.load %arg9[%c2, %c0_34, %c0_35] : memref<6x32x16xbf16, #tpu.memory_space<vmem>>, vector<1x32x16xbf16>
    %73 = vector.shape_cast %72 : vector<1x32x16xbf16> to vector<32x16xbf16>
    %cst_36 = arith.constant dense<0.000000e+00> : vector<32x128xf32>
    %74 = tpu.matmul %73, %64, %cst_36 {dimension_numbers = #tpu.dot_dimension_numbers<[1], [0], [0], [1], [0, 0, 1, 1], [], []>} : vector<32x16xbf16>, vector<16x128xbf16>, vector<32x128xf32> -> vector<32x128xf32>
    %75 = arith.addf %71, %74 : vector<32x128xf32>
    %c0_37 = arith.constant 0 : index
    %c0_38 = arith.constant 0 : index
    %c0_39 = arith.constant 0 : index
    %76 = vector.load %arg10[%c0_37, %c0_38, %c0_39] : memref<2x1x32xf32, #tpu.memory_space<vmem>>, vector<1x1x32xf32>
    %77 = vector.shape_cast %76 : vector<1x1x32xf32> to vector<1x32xf32>
    %78 = tpu.transpose %77, [1, 0] : vector<1x32xf32> -> vector<32x1xf32>
    %79 = vector.broadcast %78 : vector<32x1xf32> to vector<32x128xf32>
    %80 = arith.addf %75, %79 : vector<32x128xf32>
    %cst_40 = arith.constant 0.000000e+00 : f32
    %81 = vector.broadcast %cst_40 : f32 to vector<32x128xf32>
    %82 = arith.maximumf %80, %81 : vector<32x128xf32>
    %c0_41 = arith.constant 0 : index
    %c0_42 = arith.constant 0 : index
    %c0_43 = arith.constant 0 : index
    %83 = vector.load %arg11[%c0_41, %c0_42, %c0_43] : memref<2x16x32xbf16, #tpu.memory_space<vmem>>, vector<1x16x32xbf16>
    %84 = vector.shape_cast %83 : vector<1x16x32xbf16> to vector<16x32xbf16>
    %85 = arith.truncf %82 : vector<32x128xf32> to vector<32x128xbf16>
    %cst_44 = arith.constant dense<0.000000e+00> : vector<16x128xf32>
    %86 = tpu.matmul %84, %85, %cst_44 {dimension_numbers = #tpu.dot_dimension_numbers<[1], [0], [0], [1], [0, 0, 1, 1], [], []>} : vector<16x32xbf16>, vector<32x128xbf16>, vector<16x128xf32> -> vector<16x128xf32>
    %c0_45 = arith.constant 0 : index
    %c0_46 = arith.constant 0 : index
    %c0_47 = arith.constant 0 : index
    %87 = vector.load %arg12[%c0_45, %c0_46, %c0_47] : memref<2x1x16xf32, #tpu.memory_space<vmem>>, vector<1x1x16xf32>
    %88 = vector.shape_cast %87 : vector<1x1x16xf32> to vector<1x16xf32>
    %89 = tpu.transpose %88, [1, 0] : vector<1x16xf32> -> vector<16x1xf32>
    %90 = vector.broadcast %89 : vector<16x1xf32> to vector<16x128xf32>
    %91 = arith.addf %86, %90 : vector<16x128xf32>
    %92 = arith.addf %46, %91 : vector<16x128xf32>
    %cst_48 = arith.constant dense<0.000000e+00> : vector<16xf32>
    %93 = vector.multi_reduction <add>, %92, %cst_48 [1] : vector<16x128xf32> to vector<16xf32>
    %94 = vector.shape_cast %93 : vector<16xf32> to vector<16x1xf32>
    %cst_49 = arith.constant 1.280000e+02 : f32
    %95 = vector.broadcast %cst_49 : f32 to vector<16x1xf32>
    %96 = arith.divf %94, %95 : vector<16x1xf32>
    %97 = vector.broadcast %96 : vector<16x1xf32> to vector<16x128xf32>
    %98 = arith.subf %92, %97 : vector<16x128xf32>
    %99 = arith.mulf %98, %98 : vector<16x128xf32>
    %cst_50 = arith.constant dense<0.000000e+00> : vector<16xf32>
    %100 = vector.multi_reduction <add>, %99, %cst_50 [1] : vector<16x128xf32> to vector<16xf32>
    %101 = vector.shape_cast %100 : vector<16xf32> to vector<16x1xf32>
    %cst_51 = arith.constant 1.280000e+02 : f32
    %102 = vector.broadcast %cst_51 : f32 to vector<16x1xf32>
    %103 = arith.divf %101, %102 : vector<16x1xf32>
    %104 = vector.broadcast %96 : vector<16x1xf32> to vector<16x128xf32>
    %105 = arith.subf %92, %104 : vector<16x128xf32>
    %cst_52 = arith.constant 9.99999974E-6 : f32
    %106 = vector.broadcast %cst_52 : f32 to vector<16x1xf32>
    %107 = arith.addf %103, %106 : vector<16x1xf32>
    %108 = math.rsqrt %107 : vector<16x1xf32>
    %109 = vector.broadcast %108 : vector<16x1xf32> to vector<16x128xf32>
    %110 = arith.mulf %105, %109 : vector<16x128xf32>
    %c0_53 = arith.constant 0 : index
    %c0_54 = arith.constant 0 : index
    %c0_55 = arith.constant 0 : index
    %111 = vector.load %arg13[%c0_53, %c0_54, %c0_55] : memref<2x1x128xf32, #tpu.memory_space<vmem>>, vector<1x1x128xf32>
    %112 = vector.shape_cast %111 : vector<1x1x128xf32> to vector<1x128xf32>
    %113 = vector.broadcast %112 : vector<1x128xf32> to vector<16x128xf32>
    %114 = arith.mulf %110, %113 : vector<16x128xf32>
    %c0_56 = arith.constant 0 : index
    %c0_57 = arith.constant 0 : index
    %c0_58 = arith.constant 0 : index
    %115 = vector.load %arg14[%c0_56, %c0_57, %c0_58] : memref<2x1x128xf32, #tpu.memory_space<vmem>>, vector<1x1x128xf32>
    %116 = vector.shape_cast %115 : vector<1x1x128xf32> to vector<1x128xf32>
    %117 = vector.broadcast %116 : vector<1x128xf32> to vector<16x128xf32>
    %118 = arith.addf %114, %117 : vector<16x128xf32>
    %119 = arith.truncf %118 : vector<16x128xf32> to vector<16x128xbf16>
    %c1_i32_59 = arith.constant 1 : i32
    %120 = tpu.dynamic_rotate %118 by %c1_i32_59 dim 1 : vector<16x128xf32>, i32 -> vector<16x128xf32>
    %121 = vector.broadcast %51 : vector<1x128xf32> to vector<16x128xf32>
    %122 = arith.mulf %120, %121 : vector<16x128xf32>
    %123 = arith.truncf %122 : vector<16x128xf32> to vector<16x128xbf16>
    %c127_i32_60 = arith.constant 127 : i32
    %124 = tpu.dynamic_rotate %118 by %c127_i32_60 dim 1 : vector<16x128xf32>, i32 -> vector<16x128xf32>
    %125 = vector.broadcast %55 : vector<1x128xf32> to vector<16x128xf32>
    %126 = arith.mulf %124, %125 : vector<16x128xf32>
    %127 = arith.truncf %126 : vector<16x128xf32> to vector<16x128xbf16>
    %c3 = arith.constant 3 : index
    %c0_61 = arith.constant 0 : index
    %c0_62 = arith.constant 0 : index
    %128 = vector.load %arg9[%c3, %c0_61, %c0_62] : memref<6x32x16xbf16, #tpu.memory_space<vmem>>, vector<1x32x16xbf16>
    %129 = vector.shape_cast %128 : vector<1x32x16xbf16> to vector<32x16xbf16>
    %cst_63 = arith.constant dense<0.000000e+00> : vector<32x128xf32>
    %130 = tpu.matmul %129, %123, %cst_63 {dimension_numbers = #tpu.dot_dimension_numbers<[1], [0], [0], [1], [0, 0, 1, 1], [], []>} : vector<32x16xbf16>, vector<16x128xbf16>, vector<32x128xf32> -> vector<32x128xf32>
    %c4 = arith.constant 4 : index
    %c0_64 = arith.constant 0 : index
    %c0_65 = arith.constant 0 : index
    %131 = vector.load %arg9[%c4, %c0_64, %c0_65] : memref<6x32x16xbf16, #tpu.memory_space<vmem>>, vector<1x32x16xbf16>
    %132 = vector.shape_cast %131 : vector<1x32x16xbf16> to vector<32x16xbf16>
    %cst_66 = arith.constant dense<0.000000e+00> : vector<32x128xf32>
    %133 = tpu.matmul %132, %119, %cst_66 {dimension_numbers = #tpu.dot_dimension_numbers<[1], [0], [0], [1], [0, 0, 1, 1], [], []>} : vector<32x16xbf16>, vector<16x128xbf16>, vector<32x128xf32> -> vector<32x128xf32>
    %134 = arith.addf %130, %133 : vector<32x128xf32>
    %c5 = arith.constant 5 : index
    %c0_67 = arith.constant 0 : index
    %c0_68 = arith.constant 0 : index
    %135 = vector.load %arg9[%c5, %c0_67, %c0_68] : memref<6x32x16xbf16, #tpu.memory_space<vmem>>, vector<1x32x16xbf16>
    %136 = vector.shape_cast %135 : vector<1x32x16xbf16> to vector<32x16xbf16>
    %cst_69 = arith.constant dense<0.000000e+00> : vector<32x128xf32>
    %137 = tpu.matmul %136, %127, %cst_69 {dimension_numbers = #tpu.dot_dimension_numbers<[1], [0], [0], [1], [0, 0, 1, 1], [], []>} : vector<32x16xbf16>, vector<16x128xbf16>, vector<32x128xf32> -> vector<32x128xf32>
    %138 = arith.addf %134, %137 : vector<32x128xf32>
    %c1_70 = arith.constant 1 : index
    %c0_71 = arith.constant 0 : index
    %c0_72 = arith.constant 0 : index
    %139 = vector.load %arg10[%c1_70, %c0_71, %c0_72] : memref<2x1x32xf32, #tpu.memory_space<vmem>>, vector<1x1x32xf32>
    %140 = vector.shape_cast %139 : vector<1x1x32xf32> to vector<1x32xf32>
    %141 = tpu.transpose %140, [1, 0] : vector<1x32xf32> -> vector<32x1xf32>
    %142 = vector.broadcast %141 : vector<32x1xf32> to vector<32x128xf32>
    %143 = arith.addf %138, %142 : vector<32x128xf32>
    %cst_73 = arith.constant 0.000000e+00 : f32
    %144 = vector.broadcast %cst_73 : f32 to vector<32x128xf32>
    %145 = arith.maximumf %143, %144 : vector<32x128xf32>
    %c1_74 = arith.constant 1 : index
    %c0_75 = arith.constant 0 : index
    %c0_76 = arith.constant 0 : index
    %146 = vector.load %arg11[%c1_74, %c0_75, %c0_76] : memref<2x16x32xbf16, #tpu.memory_space<vmem>>, vector<1x16x32xbf16>
    %147 = vector.shape_cast %146 : vector<1x16x32xbf16> to vector<16x32xbf16>
    %148 = arith.truncf %145 : vector<32x128xf32> to vector<32x128xbf16>
    %cst_77 = arith.constant dense<0.000000e+00> : vector<16x128xf32>
    %149 = tpu.matmul %147, %148, %cst_77 {dimension_numbers = #tpu.dot_dimension_numbers<[1], [0], [0], [1], [0, 0, 1, 1], [], []>} : vector<16x32xbf16>, vector<32x128xbf16>, vector<16x128xf32> -> vector<16x128xf32>
    %c1_78 = arith.constant 1 : index
    %c0_79 = arith.constant 0 : index
    %c0_80 = arith.constant 0 : index
    %150 = vector.load %arg12[%c1_78, %c0_79, %c0_80] : memref<2x1x16xf32, #tpu.memory_space<vmem>>, vector<1x1x16xf32>
    %151 = vector.shape_cast %150 : vector<1x1x16xf32> to vector<1x16xf32>
    %152 = tpu.transpose %151, [1, 0] : vector<1x16xf32> -> vector<16x1xf32>
    %153 = vector.broadcast %152 : vector<16x1xf32> to vector<16x128xf32>
    %154 = arith.addf %149, %153 : vector<16x128xf32>
    %155 = arith.addf %118, %154 : vector<16x128xf32>
    %cst_81 = arith.constant dense<0.000000e+00> : vector<16xf32>
    %156 = vector.multi_reduction <add>, %155, %cst_81 [1] : vector<16x128xf32> to vector<16xf32>
    %157 = vector.shape_cast %156 : vector<16xf32> to vector<16x1xf32>
    %cst_82 = arith.constant 1.280000e+02 : f32
    %158 = vector.broadcast %cst_82 : f32 to vector<16x1xf32>
    %159 = arith.divf %157, %158 : vector<16x1xf32>
    %160 = vector.broadcast %159 : vector<16x1xf32> to vector<16x128xf32>
    %161 = arith.subf %155, %160 : vector<16x128xf32>
    %162 = arith.mulf %161, %161 : vector<16x128xf32>
    %cst_83 = arith.constant dense<0.000000e+00> : vector<16xf32>
    %163 = vector.multi_reduction <add>, %162, %cst_83 [1] : vector<16x128xf32> to vector<16xf32>
    %164 = vector.shape_cast %163 : vector<16xf32> to vector<16x1xf32>
    %cst_84 = arith.constant 1.280000e+02 : f32
    %165 = vector.broadcast %cst_84 : f32 to vector<16x1xf32>
    %166 = arith.divf %164, %165 : vector<16x1xf32>
    %167 = vector.broadcast %159 : vector<16x1xf32> to vector<16x128xf32>
    %168 = arith.subf %155, %167 : vector<16x128xf32>
    %cst_85 = arith.constant 9.99999974E-6 : f32
    %169 = vector.broadcast %cst_85 : f32 to vector<16x1xf32>
    %170 = arith.addf %166, %169 : vector<16x1xf32>
    %171 = math.rsqrt %170 : vector<16x1xf32>
    %172 = vector.broadcast %171 : vector<16x1xf32> to vector<16x128xf32>
    %173 = arith.mulf %168, %172 : vector<16x128xf32>
    %c1_86 = arith.constant 1 : index
    %c0_87 = arith.constant 0 : index
    %c0_88 = arith.constant 0 : index
    %174 = vector.load %arg13[%c1_86, %c0_87, %c0_88] : memref<2x1x128xf32, #tpu.memory_space<vmem>>, vector<1x1x128xf32>
    %175 = vector.shape_cast %174 : vector<1x1x128xf32> to vector<1x128xf32>
    %176 = vector.broadcast %175 : vector<1x128xf32> to vector<16x128xf32>
    %177 = arith.mulf %173, %176 : vector<16x128xf32>
    %c1_89 = arith.constant 1 : index
    %c0_90 = arith.constant 0 : index
    %c0_91 = arith.constant 0 : index
    %178 = vector.load %arg14[%c1_89, %c0_90, %c0_91] : memref<2x1x128xf32, #tpu.memory_space<vmem>>, vector<1x1x128xf32>
    %179 = vector.shape_cast %178 : vector<1x1x128xf32> to vector<1x128xf32>
    %180 = vector.broadcast %179 : vector<1x128xf32> to vector<16x128xf32>
    %181 = arith.addf %177, %180 : vector<16x128xf32>
    %c0_92 = arith.constant 0 : index
    %c0_93 = arith.constant 0 : index
    %182 = vector.load %arg15[%c0_92, %c0_93] : memref<2x128xbf16, #tpu.memory_space<vmem>>, vector<2x128xbf16>
    %183 = arith.truncf %181 : vector<16x128xf32> to vector<16x128xbf16>
    %cst_94 = arith.constant dense<0.000000e+00> : vector<2x16xf32>
    %184 = tpu.matmul %182, %183, %cst_94 {dimension_numbers = #tpu.dot_dimension_numbers<[1], [1], [0], [0], [0, 0, 1, 0], [], []>} : vector<2x128xbf16>, vector<16x128xbf16>, vector<2x16xf32> -> vector<2x16xf32>
    %c0_95 = arith.constant 0 : index
    %c0_96 = arith.constant 0 : index
    %185 = vector.load %arg16[%c0_95, %c0_96] : memref<2x1xf32, #tpu.memory_space<vmem>>, vector<2x1xf32>
    %186 = vector.broadcast %185 : vector<2x1xf32> to vector<2x16xf32>
    %187 = arith.addf %184, %186 : vector<2x16xf32>
    %188 = arith.truncf %11 : vector<1x128xf32> to vector<1x128xbf16>
    %c0_97 = arith.constant 0 : index
    %c0_98 = arith.constant 0 : index
    %189 = vector.load %arg17[%c0_97, %c0_98] : memref<1x128xbf16, #tpu.memory_space<vmem>>, vector<1x128xbf16>
    %190 = arith.extf %188 : vector<1x128xbf16> to vector<1x128xf32>
    %191 = arith.extf %189 : vector<1x128xbf16> to vector<1x128xf32>
    %cst_99 = arith.constant dense<0.000000e+00> : vector<1xf32>
    %192 = arith.mulf %190, %191 : vector<1x128xf32>
    %193 = vector.multi_reduction <add>, %192, %cst_99 [1] : vector<1x128xf32> to vector<1xf32>
    %194 = vector.shape_cast %193 : vector<1xf32> to vector<1x1xf32>
    %c0_100 = arith.constant 0 : index
    %c0_101 = arith.constant 0 : index
    %195 = vector.load %arg18[%c0_100, %c0_101] : memref<1x1xf32, #tpu.memory_space<vmem>>, vector<1x1xf32>
    %196 = arith.addf %194, %195 : vector<1x1xf32>
    %197 = arith.negf %196 : vector<1x1xf32>
    %198 = math.exp %197 : vector<1x1xf32>
    %cst_102 = arith.constant 1.000000e+00 : f32
    %199 = vector.broadcast %cst_102 : f32 to vector<1x1xf32>
    %200 = arith.addf %199, %198 : vector<1x1xf32>
    %201 = arith.divf %199, %200 : vector<1x1xf32>
    %202 = vector.shape_cast %201 : vector<1x1xf32> to vector<1x1xf32>
    %203 = vector.broadcast %202 : vector<1x1xf32> to vector<1x16xf32>
    %204 = tpu.concatenate %187, %203 in 0 : vector<2x16xf32>, vector<1x16xf32> -> vector<3x16xf32>
    %c0_103 = arith.constant 0 : index
    %c0_104 = arith.constant 0 : index
    %c0_105 = arith.constant 0 : index
    %205 = vector.load %arg19[%c0_103, %c0_104, %c0_105] : memref<1x3x16xf32, #tpu.memory_space<vmem>>, vector<1x3x16xf32>
    %206 = vector.shape_cast %205 : vector<1x3x16xf32> to vector<3x16xf32>
    %207 = vector.shape_cast %204 : vector<3x16xf32> to vector<1x3x16xf32>
    tpu.vector_store %arg19[%c0_103, %c0_104, %c0_105], %207 {strides = array<i32>} : memref<1x3x16xf32, #tpu.memory_space<vmem>>, vector<1x3x16xf32>,
    return
  }
  func.func @transform_0(%arg0: i32) -> (i32, i32, i32) {
    %c0_i32 = arith.constant 0 : i32
    %c0_i32_0 = arith.constant 0 : i32
    %c0_i32_1 = arith.constant 0 : i32
    return %arg0, %c0_i32, %c0_i32_0 : i32, i32, i32
  }
  func.func @transform_1(%arg0: i32) -> (i32, i32, i32) {
    %c0_i32 = arith.constant 0 : i32
    %c0_i32_0 = arith.constant 0 : i32
    %c0_i32_1 = arith.constant 0 : i32
    return %arg0, %c0_i32, %c0_i32_0 : i32, i32, i32
  }
  func.func @transform_2(%arg0: i32) -> (i32, i32) {
    %c0_i32 = arith.constant 0 : i32
    %c0_i32_0 = arith.constant 0 : i32
    %c0_i32_1 = arith.constant 0 : i32
    return %c0_i32, %c0_i32_0 : i32, i32
  }
  func.func @transform_3(%arg0: i32) -> (i32, i32) {
    %c0_i32 = arith.constant 0 : i32
    %c0_i32_0 = arith.constant 0 : i32
    %c0_i32_1 = arith.constant 0 : i32
    return %c0_i32, %c0_i32_0 : i32, i32
  }
  func.func @transform_4(%arg0: i32) -> (i32, i32) {
    %c0_i32 = arith.constant 0 : i32
    %c0_i32_0 = arith.constant 0 : i32
    %c0_i32_1 = arith.constant 0 : i32
    return %c0_i32, %c0_i32_0 : i32, i32
  }
  func.func @transform_5(%arg0: i32) -> (i32, i32) {
    %c0_i32 = arith.constant 0 : i32
    %c0_i32_0 = arith.constant 0 : i32
    %c0_i32_1 = arith.constant 0 : i32
    return %c0_i32, %c0_i32_0 : i32, i32
  }
  func.func @transform_6(%arg0: i32) -> (i32, i32) {
    %c0_i32 = arith.constant 0 : i32
    %c0_i32_0 = arith.constant 0 : i32
    %c0_i32_1 = arith.constant 0 : i32
    return %c0_i32, %c0_i32_0 : i32, i32
  }
  func.func @transform_7(%arg0: i32) -> (i32, i32) {
    %c0_i32 = arith.constant 0 : i32
    %c0_i32_0 = arith.constant 0 : i32
    %c0_i32_1 = arith.constant 0 : i32
    return %c0_i32, %c0_i32_0 : i32, i32
  }
  func.func @transform_8(%arg0: i32) -> (i32, i32, i32) {
    %c0_i32 = arith.constant 0 : i32
    %c0_i32_0 = arith.constant 0 : i32
    %c0_i32_1 = arith.constant 0 : i32
    %c0_i32_2 = arith.constant 0 : i32
    return %c0_i32, %c0_i32_0, %c0_i32_1 : i32, i32, i32
  }
  func.func @transform_9(%arg0: i32) -> (i32, i32, i32) {
    %c0_i32 = arith.constant 0 : i32
    %c0_i32_0 = arith.constant 0 : i32
    %c0_i32_1 = arith.constant 0 : i32
    %c0_i32_2 = arith.constant 0 : i32
    return %c0_i32, %c0_i32_0, %c0_i32_1 : i32, i32, i32
  }
  func.func @transform_10(%arg0: i32) -> (i32, i32, i32) {
    %c0_i32 = arith.constant 0 : i32
    %c0_i32_0 = arith.constant 0 : i32
    %c0_i32_1 = arith.constant 0 : i32
    %c0_i32_2 = arith.constant 0 : i32
    return %c0_i32, %c0_i32_0, %c0_i32_1 : i32, i32, i32
  }
  func.func @transform_11(%arg0: i32) -> (i32, i32, i32) {
    %c0_i32 = arith.constant 0 : i32
    %c0_i32_0 = arith.constant 0 : i32
    %c0_i32_1 = arith.constant 0 : i32
    %c0_i32_2 = arith.constant 0 : i32
    return %c0_i32, %c0_i32_0, %c0_i32_1 : i32, i32, i32
  }
  func.func @transform_12(%arg0: i32) -> (i32, i32, i32) {
    %c0_i32 = arith.constant 0 : i32
    %c0_i32_0 = arith.constant 0 : i32
    %c0_i32_1 = arith.constant 0 : i32
    %c0_i32_2 = arith.constant 0 : i32
    return %c0_i32, %c0_i32_0, %c0_i32_1 : i32, i32, i32
  }
  func.func @transform_13(%arg0: i32) -> (i32, i32, i32) {
    %c0_i32 = arith.constant 0 : i32
    %c0_i32_0 = arith.constant 0 : i32
    %c0_i32_1 = arith.constant 0 : i32
    %c0_i32_2 = arith.constant 0 : i32
    return %c0_i32, %c0_i32_0, %c0_i32_1 : i32, i32, i32
  }
  func.func @transform_14(%arg0: i32) -> (i32, i32) {
    %c0_i32 = arith.constant 0 : i32
    %c0_i32_0 = arith.constant 0 : i32
    %c0_i32_1 = arith.constant 0 : i32
    return %c0_i32, %c0_i32_0 : i32, i32
  }
  func.func @transform_15(%arg0: i32) -> (i32, i32) {
    %c0_i32 = arith.constant 0 : i32
    %c0_i32_0 = arith.constant 0 : i32
    %c0_i32_1 = arith.constant 0 : i32
    return %c0_i32, %c0_i32_0 : i32, i32
  }
  func.func @transform_16(%arg0: i32) -> (i32, i32) {
    %c0_i32 = arith.constant 0 : i32
    %c0_i32_0 = arith.constant 0 : i32
    %c0_i32_1 = arith.constant 0 : i32
    return %c0_i32, %c0_i32_0 : i32, i32
  }
  func.func @transform_17(%arg0: i32) -> (i32, i32) {
    %c0_i32 = arith.constant 0 : i32
    %c0_i32_0 = arith.constant 0 : i32
    %c0_i32_1 = arith.constant 0 : i32
    return %c0_i32, %c0_i32_0 : i32, i32
  }
  func.func @transform_18(%arg0: i32) -> (i32, i32, i32) {
    %c0_i32 = arith.constant 0 : i32
    %c0_i32_0 = arith.constant 0 : i32
    %c0_i32_1 = arith.constant 0 : i32
    return %arg0, %c0_i32, %c0_i32_0 : i32, i32, i32
  }
}

module attributes {stable_mosaic.version = 11 : i64} {
  func.func @fused_forward_kernel(%arg0: i32, %arg1: memref<1x16x128xbf16, #tpu.memory_space<vmem>>, %arg2: memref<1x1x16xf32, #tpu.memory_space<vmem>>, %arg3: memref<128x128xbf16, #tpu.memory_space<vmem>>, %arg4: memref<1x128xf32, #tpu.memory_space<vmem>>, %arg5: memref<128x128xbf16, #tpu.memory_space<vmem>>, %arg6: memref<1x128xf32, #tpu.memory_space<vmem>>, %arg7: memref<128x128xbf16, #tpu.memory_space<vmem>>, %arg8: memref<1x128xf32, #tpu.memory_space<vmem>>, %arg9: memref<6x32x16xbf16, #tpu.memory_space<vmem>>, %arg10: memref<2x1x32xf32, #tpu.memory_space<vmem>>, %arg11: memref<2x16x32xbf16, #tpu.memory_space<vmem>>, %arg12: memref<2x1x16xf32, #tpu.memory_space<vmem>>, %arg13: memref<2x1x128xf32, #tpu.memory_space<vmem>>, %arg14: memref<2x1x128xf32, #tpu.memory_space<vmem>>, %arg15: memref<2x128xbf16, #tpu.memory_space<vmem>>, %arg16: memref<2x1xf32, #tpu.memory_space<vmem>>, %arg17: memref<1x128xbf16, #tpu.memory_space<vmem>>, %arg18: memref<1x1xf32, #tpu.memory_space<vmem>>, %arg19: memref<1x3x16xf32, #tpu.memory_space<vmem>>) attributes {dimension_semantics = [#tpu.dimension_semantics<parallel>], iteration_bounds = array<i64: 2>, scalar_prefetch = 0 : i64, scratch_operands = 0 : i64, tpu.core_type = #tpu.core_type<tc>, window_params = [{transform_indices = @transform_0, window_bounds = array<i64: 1, 16, 128>}, {transform_indices = @transform_1, window_bounds = array<i64: 1, 1, 16>}, {pipeline_mode = #tpu.pipeline_mode<synchronous>, transform_indices = @transform_2, window_bounds = array<i64: 128, 128>}, {pipeline_mode = #tpu.pipeline_mode<synchronous>, transform_indices = @transform_3, window_bounds = array<i64: 1, 128>}, {pipeline_mode = #tpu.pipeline_mode<synchronous>, transform_indices = @transform_4, window_bounds = array<i64: 128, 128>}, {pipeline_mode = #tpu.pipeline_mode<synchronous>, transform_indices = @transform_5, window_bounds = array<i64: 1, 128>}, {pipeline_mode = #tpu.pipeline_mode<synchronous>, transform_indices = @transform_6, window_bounds = array<i64: 128, 128>}, {pipeline_mode = #tpu.pipeline_mode<synchronous>, transform_indices = @transform_7, window_bounds = array<i64: 1, 128>}, {pipeline_mode = #tpu.pipeline_mode<synchronous>, transform_indices = @transform_8, window_bounds = array<i64: 6, 32, 16>}, {pipeline_mode = #tpu.pipeline_mode<synchronous>, transform_indices = @transform_9, window_bounds = array<i64: 2, 1, 32>}, {pipeline_mode = #tpu.pipeline_mode<synchronous>, transform_indices = @transform_10, window_bounds = array<i64: 2, 16, 32>}, {pipeline_mode = #tpu.pipeline_mode<synchronous>, transform_indices = @transform_11, window_bounds = array<i64: 2, 1, 16>}, {pipeline_mode = #tpu.pipeline_mode<synchronous>, transform_indices = @transform_12, window_bounds = array<i64: 2, 1, 128>}, {pipeline_mode = #tpu.pipeline_mode<synchronous>, transform_indices = @transform_13, window_bounds = array<i64: 2, 1, 128>}, {pipeline_mode = #tpu.pipeline_mode<synchronous>, transform_indices = @transform_14, window_bounds = array<i64: 2, 128>}, {pipeline_mode = #tpu.pipeline_mode<synchronous>, transform_indices = @transform_15, window_bounds = array<i64: 2, 1>}, {pipeline_mode = #tpu.pipeline_mode<synchronous>, transform_indices = @transform_16, window_bounds = array<i64: 1, 128>}, {pipeline_mode = #tpu.pipeline_mode<synchronous>, transform_indices = @transform_17, window_bounds = array<i64: 1, 1>}, {transform_indices = @transform_18, window_bounds = array<i64: 1, 3, 16>}]} {
    %c0 = arith.constant 0 : index
    %c0_0 = arith.constant 0 : index
    %c0_1 = arith.constant 0 : index
    %0 = vector.load %arg1[%c0, %c0_0, %c0_1] : memref<1x16x128xbf16, #tpu.memory_space<vmem>>, vector<1x16x128xbf16>
    %1 = vector.shape_cast %0 : vector<1x16x128xbf16> to vector<16x128xbf16>
    %c0_2 = arith.constant 0 : index
    %c0_3 = arith.constant 0 : index
    %c0_4 = arith.constant 0 : index
    %2 = vector.load %arg2[%c0_2, %c0_3, %c0_4] : memref<1x1x16xf32, #tpu.memory_space<vmem>>, vector<1x1x16xf32>
    %3 = vector.shape_cast %2 : vector<1x1x16xf32> to vector<1x16xf32>
    %cst = arith.constant dense<0.000000e+00> : vector<1xf32>
    %4 = vector.multi_reduction <add>, %3, %cst [1] : vector<1x16xf32> to vector<1xf32>
    %5 = vector.shape_cast %4 : vector<1xf32> to vector<1x1xf32>
    %cst_5 = arith.constant 1.000000e+00 : f32
    %6 = vector.broadcast %cst_5 : f32 to vector<1x1xf32>
    %7 = arith.maximumf %5, %6 : vector<1x1xf32>
    %8 = arith.truncf %3 : vector<1x16xf32> to vector<1x16xbf16>
    %cst_6 = arith.constant dense<0.000000e+00> : vector<1x128xf32>
    %9 = tpu.matmul %8, %1, %cst_6 {dimension_numbers = #tpu.dot_dimension_numbers<[1], [0], [0], [1], [0, 0, 1, 1], [], []>} : vector<1x16xbf16>, vector<16x128xbf16>, vector<1x128xf32> -> vector<1x128xf32>
    %10 = vector.broadcast %7 : vector<1x1xf32> to vector<1x128xf32>
    %11 = arith.divf %9, %10 : vector<1x128xf32>
    %c0_7 = arith.constant 0 : index
    %c0_8 = arith.constant 0 : index
    %12 = vector.load %arg3[%c0_7, %c0_8] : memref<128x128xbf16, #tpu.memory_space<vmem>>, vector<128x128xbf16>
    %cst_9 = arith.constant dense<0.000000e+00> : vector<16x128xf32>
    %13 = tpu.matmul %1, %12, %cst_9 {dimension_numbers = #tpu.dot_dimension_numbers<[1], [0], [0], [1], [0, 0, 1, 1], [], []>} : vector<16x128xbf16>, vector<128x128xbf16>, vector<16x128xf32> -> vector<16x128xf32>
    %c0_10 = arith.constant 0 : index
    %c0_11 = arith.constant 0 : index
    %14 = vector.load %arg4[%c0_10, %c0_11] : memref<1x128xf32, #tpu.memory_space<vmem>>, vector<1x128xf32>
    %15 = vector.broadcast %14 : vector<1x128xf32> to vector<16x128xf32>
    %16 = arith.addf %13, %15 : vector<16x128xf32>
    %c0_12 = arith.constant 0 : index
    %c0_13 = arith.constant 0 : index
    %17 = vector.load %arg5[%c0_12, %c0_13] : memref<128x128xbf16, #tpu.memory_space<vmem>>, vector<128x128xbf16>
    %cst_14 = arith.constant dense<0.000000e+00> : vector<16x128xf32>
    %18 = tpu.matmul %1, %17, %cst_14 {dimension_numbers = #tpu.dot_dimension_numbers<[1], [0], [0], [1], [0, 0, 1, 1], [], []>} : vector<16x128xbf16>, vector<128x128xbf16>, vector<16x128xf32> -> vector<16x128xf32>
    %c0_15 = arith.constant 0 : index
    %c0_16 = arith.constant 0 : index
    %19 = vector.load %arg6[%c0_15, %c0_16] : memref<1x128xf32, #tpu.memory_space<vmem>>, vector<1x128xf32>
    %20 = vector.broadcast %19 : vector<1x128xf32> to vector<16x128xf32>
    %21 = arith.addf %18, %20 : vector<16x128xf32>
    %22 = arith.truncf %11 : vector<1x128xf32> to vector<1x128xbf16>
    %c0_17 = arith.constant 0 : index
    %c0_18 = arith.constant 0 : index
    %23 = vector.load %arg7[%c0_17, %c0_18] : memref<128x128xbf16, #tpu.memory_space<vmem>>, vector<128x128xbf16>
    %cst_19 = arith.constant dense<0.000000e+00> : vector<1x128xf32>
    %24 = tpu.matmul %22, %23, %cst_19 {dimension_numbers = #tpu.dot_dimension_numbers<[1], [0], [0], [1], [0, 0, 1, 1], [], []>} : vector<1x128xbf16>, vector<128x128xbf16>, vector<1x128xf32> -> vector<1x128xf32>
    %c0_20 = arith.constant 0 : index
    %c0_21 = arith.constant 0 : index
    %25 = vector.load %arg8[%c0_20, %c0_21] : memref<1x128xf32, #tpu.memory_space<vmem>>, vector<1x128xf32>
    %26 = arith.addf %24, %25 : vector<1x128xf32>
    %27 = arith.truncf %26 : vector<1x128xf32> to vector<1x128xbf16>
    %28 = arith.truncf %16 : vector<16x128xf32> to vector<16x128xbf16>
    %cst_22 = arith.constant dense<0.000000e+00> : vector<1x16xf32>
    %29 = tpu.matmul %27, %28, %cst_22 {dimension_numbers = #tpu.dot_dimension_numbers<[1], [1], [0], [0], [0, 0, 1, 0], [], []>} : vector<1x128xbf16>, vector<16x128xbf16>, vector<1x16xf32> -> vector<1x16xf32>
    %cst_23 = arith.constant 0.0883883461 : f32
    %30 = vector.broadcast %cst_23 : f32 to vector<1x16xf32>
    %31 = arith.mulf %29, %30 : vector<1x16xf32>
    %cst_24 = arith.constant dense<0xFF800000> : vector<1xf32>
    %32 = vector.multi_reduction <maximumf>, %31, %cst_24 [1] : vector<1x16xf32> to vector<1xf32>
    %33 = vector.shape_cast %32 : vector<1xf32> to vector<1x1xf32>
    %34 = vector.broadcast %33 : vector<1x1xf32> to vector<1x16xf32>
    %35 = arith.subf %31, %34 : vector<1x16xf32>
    %36 = math.exp %35 : vector<1x16xf32>
    %cst_25 = arith.constant dense<0.000000e+00> : vector<1xf32>
    %37 = vector.multi_reduction <add>, %36, %cst_25 [1] : vector<1x16xf32> to vector<1xf32>
    %38 = vector.shape_cast %37 : vector<1xf32> to vector<1x1xf32>
    %39 = tpu.reciprocal %38 {approx = true} : vector<1x1xf32> -> vector<1x1xf32>
    %40 = vector.broadcast %39 : vector<1x1xf32> to vector<1x16xf32>
    %41 = arith.mulf %36, %40 : vector<1x16xf32>
    %42 = tpu.transpose %41, [1, 0] : vector<1x16xf32> -> vector<16x1xf32>
    %43 = arith.extf %1 : vector<16x128xbf16> to vector<16x128xf32>
    %44 = vector.broadcast %42 : vector<16x1xf32> to vector<16x128xf32>
    %45 = arith.mulf %44, %21 : vector<16x128xf32>
    %46 = arith.addf %43, %45 : vector<16x128xf32>
    %47 = tpu.iota {dimensions = array<i32: 1>} : vector<1x128xi32>
    %c0_i32 = arith.constant 0 : i32
    %48 = vector.broadcast %c0_i32 : i32 to vector<1x128xi32>
    %49 = arith.cmpi sgt, %47, %48 : vector<1x128xi32>
    %50 = arith.extui %49 : vector<1x128xi1> to vector<1x128xi32>
    %51 = arith.sitofp %50 : vector<1x128xi32> to vector<1x128xf32>
    %c127_i32 = arith.constant 127 : i32
    %52 = vector.broadcast %c127_i32 : i32 to vector<1x128xi32>
    %53 = arith.cmpi slt, %47, %52 : vector<1x128xi32>
    %54 = arith.extui %53 : vector<1x128xi1> to vector<1x128xi32>
    %55 = arith.sitofp %54 : vector<1x128xi32> to vector<1x128xf32>
    %56 = arith.truncf %46 : vector<16x128xf32> to vector<16x128xbf16>
    %c1_i32 = arith.constant 1 : i32
    %57 = tpu.dynamic_rotate %46 by %c1_i32 dim 1 : vector<16x128xf32>, i32 -> vector<16x128xf32>
    %58 = vector.broadcast %51 : vector<1x128xf32> to vector<16x128xf32>
    %59 = arith.mulf %57, %58 : vector<16x128xf32>
    %60 = arith.truncf %59 : vector<16x128xf32> to vector<16x128xbf16>
    %c127_i32_26 = arith.constant 127 : i32
    %61 = tpu.dynamic_rotate %46 by %c127_i32_26 dim 1 : vector<16x128xf32>, i32 -> vector<16x128xf32>
    %62 = vector.broadcast %55 : vector<1x128xf32> to vector<16x128xf32>
    %63 = arith.mulf %61, %62 : vector<16x128xf32>
    %64 = arith.truncf %63 : vector<16x128xf32> to vector<16x128xbf16>
    %c0_27 = arith.constant 0 : index
    %c0_28 = arith.constant 0 : index
    %c0_29 = arith.constant 0 : index
    %65 = vector.load %arg9[%c0_27, %c0_28, %c0_29] : memref<6x32x16xbf16, #tpu.memory_space<vmem>>, vector<1x32x16xbf16>
    %66 = vector.shape_cast %65 : vector<1x32x16xbf16> to vector<32x16xbf16>
    %cst_30 = arith.constant dense<0.000000e+00> : vector<32x128xf32>
    %67 = tpu.matmul %66, %60, %cst_30 {dimension_numbers = #tpu.dot_dimension_numbers<[1], [0], [0], [1], [0, 0, 1, 1], [], []>} : vector<32x16xbf16>, vector<16x128xbf16>, vector<32x128xf32> -> vector<32x128xf32>
    %c1 = arith.constant 1 : index
    %c0_31 = arith.constant 0 : index
    %c0_32 = arith.constant 0 : index
    %68 = vector.load %arg9[%c1, %c0_31, %c0_32] : memref<6x32x16xbf16, #tpu.memory_space<vmem>>, vector<1x32x16xbf16>
    %69 = vector.shape_cast %68 : vector<1x32x16xbf16> to vector<32x16xbf16>
    %cst_33 = arith.constant dense<0.000000e+00> : vector<32x128xf32>
    %70 = tpu.matmul %69, %56, %cst_33 {dimension_numbers = #tpu.dot_dimension_numbers<[1], [0], [0], [1], [0, 0, 1, 1], [], []>} : vector<32x16xbf16>, vector<16x128xbf16>, vector<32x128xf32> -> vector<32x128xf32>
    %71 = arith.addf %67, %70 : vector<32x128xf32>
    %c2 = arith.constant 2 : index
    %c0_34 = arith.constant 0 : index
    %c0_35 = arith.constant 0 : index
    %72 = vector.load %arg9[%c2, %c0_34, %c0_35] : memref<6x32x16xbf16, #tpu.memory_space<vmem>>, vector<1x32x16xbf16>
    %73 = vector.shape_cast %72 : vector<1x32x16xbf16> to vector<32x16xbf16>
    %cst_36 = arith.constant dense<0.000000e+00> : vector<32x128xf32>
    %74 = tpu.matmul %73, %64, %cst_36 {dimension_numbers = #tpu.dot_dimension_numbers<[1], [0], [0], [1], [0, 0, 1, 1], [], []>} : vector<32x16xbf16>, vector<16x128xbf16>, vector<32x128xf32> -> vector<32x128xf32>
    %75 = arith.addf %71, %74 : vector<32x128xf32>
    %c0_37 = arith.constant 0 : index
    %c0_38 = arith.constant 0 : index
    %c0_39 = arith.constant 0 : index
    %76 = vector.load %arg10[%c0_37, %c0_38, %c0_39] : memref<2x1x32xf32, #tpu.memory_space<vmem>>, vector<1x1x32xf32>
    %77 = vector.shape_cast %76 : vector<1x1x32xf32> to vector<1x32xf32>
    %78 = tpu.transpose %77, [1, 0] : vector<1x32xf32> -> vector<32x1xf32>
    %79 = vector.broadcast %78 : vector<32x1xf32> to vector<32x128xf32>
    %80 = arith.addf %75, %79 : vector<32x128xf32>
    %cst_40 = arith.constant 0.000000e+00 : f32
    %81 = vector.broadcast %cst_40 : f32 to vector<32x128xf32>
    %82 = arith.maximumf %80, %81 : vector<32x128xf32>
    %c0_41 = arith.constant 0 : index
    %c0_42 = arith.constant 0 : index
    %c0_43 = arith.constant 0 : index
    %83 = vector.load %arg11[%c0_41, %c0_42, %c0_43] : memref<2x16x32xbf16, #tpu.memory_space<vmem>>, vector<1x16x32xbf16>
    %84 = vector.shape_cast %83 : vector<1x16x32xbf16> to vector<16x32xbf16>
    %85 = arith.truncf %82 : vector<32x128xf32> to vector<32x128xbf16>
    %cst_44 = arith.constant dense<0.000000e+00> : vector<16x128xf32>
    %86 = tpu.matmul %84, %85, %cst_44 {dimension_numbers = #tpu.dot_dimension_numbers<[1], [0], [0], [1], [0, 0, 1, 1], [], []>} : vector<16x32xbf16>, vector<32x128xbf16>, vector<16x128xf32> -> vector<16x128xf32>
    %c0_45 = arith.constant 0 : index
    %c0_46 = arith.constant 0 : index
    %c0_47 = arith.constant 0 : index
    %87 = vector.load %arg12[%c0_45, %c0_46, %c0_47] : memref<2x1x16xf32, #tpu.memory_space<vmem>>, vector<1x1x16xf32>
    %88 = vector.shape_cast %87 : vector<1x1x16xf32> to vector<1x16xf32>
    %89 = tpu.transpose %88, [1, 0] : vector<1x16xf32> -> vector<16x1xf32>
    %90 = vector.broadcast %89 : vector<16x1xf32> to vector<16x128xf32>
    %91 = arith.addf %86, %90 : vector<16x128xf32>
    %92 = arith.addf %46, %91 : vector<16x128xf32>
    %cst_48 = arith.constant dense<0.000000e+00> : vector<16xf32>
    %93 = vector.multi_reduction <add>, %92, %cst_48 [1] : vector<16x128xf32> to vector<16xf32>
    %94 = vector.shape_cast %93 : vector<16xf32> to vector<16x1xf32>
    %cst_49 = arith.constant 1.280000e+02 : f32
    %95 = vector.broadcast %cst_49 : f32 to vector<16x1xf32>
    %96 = arith.divf %94, %95 : vector<16x1xf32>
    %97 = vector.broadcast %96 : vector<16x1xf32> to vector<16x128xf32>
    %98 = arith.subf %92, %97 : vector<16x128xf32>
    %99 = arith.mulf %98, %98 : vector<16x128xf32>
    %cst_50 = arith.constant dense<0.000000e+00> : vector<16xf32>
    %100 = vector.multi_reduction <add>, %99, %cst_50 [1] : vector<16x128xf32> to vector<16xf32>
    %101 = vector.shape_cast %100 : vector<16xf32> to vector<16x1xf32>
    %cst_51 = arith.constant 1.280000e+02 : f32
    %102 = vector.broadcast %cst_51 : f32 to vector<16x1xf32>
    %103 = arith.divf %101, %102 : vector<16x1xf32>
    %104 = vector.broadcast %96 : vector<16x1xf32> to vector<16x128xf32>
    %105 = arith.subf %92, %104 : vector<16x128xf32>
    %cst_52 = arith.constant 9.99999974E-6 : f32
    %106 = vector.broadcast %cst_52 : f32 to vector<16x1xf32>
    %107 = arith.addf %103, %106 : vector<16x1xf32>
    %108 = math.rsqrt %107 : vector<16x1xf32>
    %109 = vector.broadcast %108 : vector<16x1xf32> to vector<16x128xf32>
    %110 = arith.mulf %105, %109 : vector<16x128xf32>
    %c0_53 = arith.constant 0 : index
    %c0_54 = arith.constant 0 : index
    %c0_55 = arith.constant 0 : index
    %111 = vector.load %arg13[%c0_53, %c0_54, %c0_55] : memref<2x1x128xf32, #tpu.memory_space<vmem>>, vector<1x1x128xf32>
    %112 = vector.shape_cast %111 : vector<1x1x128xf32> to vector<1x128xf32>
    %113 = vector.broadcast %112 : vector<1x128xf32> to vector<16x128xf32>
    %114 = arith.mulf %110, %113 : vector<16x128xf32>
    %c0_56 = arith.constant 0 : index
    %c0_57 = arith.constant 0 : index
    %c0_58 = arith.constant 0 : index
    %115 = vector.load %arg14[%c0_56, %c0_57, %c0_58] : memref<2x1x128xf32, #tpu.memory_space<vmem>>, vector<1x1x128xf32>
    %116 = vector.shape_cast %115 : vector<1x1x128xf32> to vector<1x128xf32>
    %117 = vector.broadcast %116 : vector<1x128xf32> to vector<16x128xf32>
    %118 = arith.addf %114, %117 : vector<16x128xf32>
    %119 = arith.truncf %118 : vector<16x128xf32> to vector<16x128xbf16>
    %c1_i32_59 = arith.constant 1 : i32
    %120 = tpu.dynamic_rotate %118 by %c1_i32_59 dim 1 : vector<16x128xf32>, i32 -> vector<16x128xf32>
    %121 = vector.broadcast %51 : vector<1x128xf32> to vector<16x128xf32>
    %122 = arith.mulf %120, %121 : vector<16x128xf32>
    %123 = arith.truncf %122 : vector<16x128xf32> to vector<16x128xbf16>
    %c127_i32_60 = arith.constant 127 : i32
    %124 = tpu.dynamic_rotate %118 by %c127_i32_60 dim 1 : vector<16x128xf32>, i32 -> vector<16x128xf32>
    %125 = vector.broadcast %55 : vector<1x128xf32> to vector<16x128xf32>
    %126 = arith.mulf %124, %125 : vector<16x128xf32>
    %127 = arith.truncf %126 : vector<16x128xf32> to vector<16x128xbf16>
    %c3 = arith.constant 3 : index
    %c0_61 = arith.constant 0 : index
    %c0_62 = arith.constant 0 : index
    %128 = vector.load %arg9[%c3, %c0_61, %c0_62] : memref<6x32x16xbf16, #tpu.memory_space<vmem>>, vector<1x32x16xbf16>
    %129 = vector.shape_cast %128 : vector<1x32x16xbf16> to vector<32x16xbf16>
    %cst_63 = arith.constant dense<0.000000e+00> : vector<32x128xf32>
    %130 = tpu.matmul %129, %123, %cst_63 {dimension_numbers = #tpu.dot_dimension_numbers<[1], [0], [0], [1], [0, 0, 1, 1], [], []>} : vector<32x16xbf16>, vector<16x128xbf16>, vector<32x128xf32> -> vector<32x128xf32>
    %c4 = arith.constant 4 : index
    %c0_64 = arith.constant 0 : index
    %c0_65 = arith.constant 0 : index
    %131 = vector.load %arg9[%c4, %c0_64, %c0_65] : memref<6x32x16xbf16, #tpu.memory_space<vmem>>, vector<1x32x16xbf16>
    %132 = vector.shape_cast %131 : vector<1x32x16xbf16> to vector<32x16xbf16>
    %cst_66 = arith.constant dense<0.000000e+00> : vector<32x128xf32>
    %133 = tpu.matmul %132, %119, %cst_66 {dimension_numbers = #tpu.dot_dimension_numbers<[1], [0], [0], [1], [0, 0, 1, 1], [], []>} : vector<32x16xbf16>, vector<16x128xbf16>, vector<32x128xf32> -> vector<32x128xf32>
    %134 = arith.addf %130, %133 : vector<32x128xf32>
    %c5 = arith.constant 5 : index
    %c0_67 = arith.constant 0 : index
    %c0_68 = arith.constant 0 : index
    %135 = vector.load %arg9[%c5, %c0_67, %c0_68] : memref<6x32x16xbf16, #tpu.memory_space<vmem>>, vector<1x32x16xbf16>
    %136 = vector.shape_cast %135 : vector<1x32x16xbf16> to vector<32x16xbf16>
    %cst_69 = arith.constant dense<0.000000e+00> : vector<32x128xf32>
    %137 = tpu.matmul %136, %127, %cst_69 {dimension_numbers = #tpu.dot_dimension_numbers<[1], [0], [0], [1], [0, 0, 1, 1], [], []>} : vector<32x16xbf16>, vector<16x128xbf16>, vector<32x128xf32> -> vector<32x128xf32>
    %138 = arith.addf %134, %137 : vector<32x128xf32>
    %c1_70 = arith.constant 1 : index
    %c0_71 = arith.constant 0 : index
    %c0_72 = arith.constant 0 : index
    %139 = vector.load %arg10[%c1_70, %c0_71, %c0_72] : memref<2x1x32xf32, #tpu.memory_space<vmem>>, vector<1x1x32xf32>
    %140 = vector.shape_cast %139 : vector<1x1x32xf32> to vector<1x32xf32>
    %141 = tpu.transpose %140, [1, 0] : vector<1x32xf32> -> vector<32x1xf32>
    %142 = vector.broadcast %141 : vector<32x1xf32> to vector<32x128xf32>
    %143 = arith.addf %138, %142 : vector<32x128xf32>
    %cst_73 = arith.constant 0.000000e+00 : f32
    %144 = vector.broadcast %cst_73 : f32 to vector<32x128xf32>
    %145 = arith.maximumf %143, %144 : vector<32x128xf32>
    %c1_74 = arith.constant 1 : index
    %c0_75 = arith.constant 0 : index
    %c0_76 = arith.constant 0 : index
    %146 = vector.load %arg11[%c1_74, %c0_75, %c0_76] : memref<2x16x32xbf16, #tpu.memory_space<vmem>>, vector<1x16x32xbf16>
    %147 = vector.shape_cast %146 : vector<1x16x32xbf16> to vector<16x32xbf16>
    %148 = arith.truncf %145 : vector<32x128xf32> to vector<32x128xbf16>
    %cst_77 = arith.constant dense<0.000000e+00> : vector<16x128xf32>
    %149 = tpu.matmul %147, %148, %cst_77 {dimension_numbers = #tpu.dot_dimension_numbers<[1], [0], [0], [1], [0, 0, 1, 1], [], []>} : vector<16x32xbf16>, vector<32x128xbf16>, vector<16x128xf32> -> vector<16x128xf32>
    %c1_78 = arith.constant 1 : index
    %c0_79 = arith.constant 0 : index
    %c0_80 = arith.constant 0 : index
    %150 = vector.load %arg12[%c1_78, %c0_79, %c0_80] : memref<2x1x16xf32, #tpu.memory_space<vmem>>, vector<1x1x16xf32>
    %151 = vector.shape_cast %150 : vector<1x1x16xf32> to vector<1x16xf32>
    %152 = tpu.transpose %151, [1, 0] : vector<1x16xf32> -> vector<16x1xf32>
    %153 = vector.broadcast %152 : vector<16x1xf32> to vector<16x128xf32>
    %154 = arith.addf %149, %153 : vector<16x128xf32>
    %155 = arith.addf %118, %154 : vector<16x128xf32>
    %cst_81 = arith.constant dense<0.000000e+00> : vector<16xf32>
    %156 = vector.multi_reduction <add>, %155, %cst_81 [1] : vector<16x128xf32> to vector<16xf32>
    %157 = vector.shape_cast %156 : vector<16xf32> to vector<16x1xf32>
    %cst_82 = arith.constant 1.280000e+02 : f32
    %158 = vector.broadcast %cst_82 : f32 to vector<16x1xf32>
    %159 = arith.divf %157, %158 : vector<16x1xf32>
    %160 = vector.broadcast %159 : vector<16x1xf32> to vector<16x128xf32>
    %161 = arith.subf %155, %160 : vector<16x128xf32>
    %162 = arith.mulf %161, %161 : vector<16x128xf32>
    %cst_83 = arith.constant dense<0.000000e+00> : vector<16xf32>
    %163 = vector.multi_reduction <add>, %162, %cst_83 [1] : vector<16x128xf32> to vector<16xf32>
    %164 = vector.shape_cast %163 : vector<16xf32> to vector<16x1xf32>
    %cst_84 = arith.constant 1.280000e+02 : f32
    %165 = vector.broadcast %cst_84 : f32 to vector<16x1xf32>
    %166 = arith.divf %164, %165 : vector<16x1xf32>
    %167 = vector.broadcast %159 : vector<16x1xf32> to vector<16x128xf32>
    %168 = arith.subf %155, %167 : vector<16x128xf32>
    %cst_85 = arith.constant 9.99999974E-6 : f32
    %169 = vector.broadcast %cst_85 : f32 to vector<16x1xf32>
    %170 = arith.addf %166, %169 : vector<16x1xf32>
    %171 = math.rsqrt %170 : vector<16x1xf32>
    %172 = vector.broadcast %171 : vector<16x1xf32> to vector<16x128xf32>
    %173 = arith.mulf %168, %172 : vector<16x128xf32>
    %c1_86 = arith.constant 1 : index
    %c0_87 = arith.constant 0 : index
    %c0_88 = arith.constant 0 : index
    %174 = vector.load %arg13[%c1_86, %c0_87, %c0_88] : memref<2x1x128xf32, #tpu.memory_space<vmem>>, vector<1x1x128xf32>
    %175 = vector.shape_cast %174 : vector<1x1x128xf32> to vector<1x128xf32>
    %176 = vector.broadcast %175 : vector<1x128xf32> to vector<16x128xf32>
    %177 = arith.mulf %173, %176 : vector<16x128xf32>
    %c1_89 = arith.constant 1 : index
    %c0_90 = arith.constant 0 : index
    %c0_91 = arith.constant 0 : index
    %178 = vector.load %arg14[%c1_89, %c0_90, %c0_91] : memref<2x1x128xf32, #tpu.memory_space<vmem>>, vector<1x1x128xf32>
    %179 = vector.shape_cast %178 : vector<1x1x128xf32> to vector<1x128xf32>
    %180 = vector.broadcast %179 : vector<1x128xf32> to vector<16x128xf32>
    %181 = arith.addf %177, %180 : vector<16x128xf32>
    %c0_92 = arith.constant 0 : index
    %c0_93 = arith.constant 0 : index
    %182 = vector.load %arg15[%c0_92, %c0_93] : memref<2x128xbf16, #tpu.memory_space<vmem>>, vector<2x128xbf16>
    %183 = arith.truncf %181 : vector<16x128xf32> to vector<16x128xbf16>
    %cst_94 = arith.constant dense<0.000000e+00> : vector<2x16xf32>
    %184 = tpu.matmul %182, %183, %cst_94 {dimension_numbers = #tpu.dot_dimension_numbers<[1], [1], [0], [0], [0, 0, 1, 0], [], []>} : vector<2x128xbf16>, vector<16x128xbf16>, vector<2x16xf32> -> vector<2x16xf32>
    %c0_95 = arith.constant 0 : index
    %c0_96 = arith.constant 0 : index
    %185 = vector.load %arg16[%c0_95, %c0_96] : memref<2x1xf32, #tpu.memory_space<vmem>>, vector<2x1xf32>
    %186 = vector.broadcast %185 : vector<2x1xf32> to vector<2x16xf32>
    %187 = arith.addf %184, %186 : vector<2x16xf32>
    %188 = arith.truncf %11 : vector<1x128xf32> to vector<1x128xbf16>
    %c0_97 = arith.constant 0 : index
    %c0_98 = arith.constant 0 : index
    %189 = vector.load %arg17[%c0_97, %c0_98] : memref<1x128xbf16, #tpu.memory_space<vmem>>, vector<1x128xbf16>
    %190 = arith.extf %188 : vector<1x128xbf16> to vector<1x128xf32>
    %191 = arith.extf %189 : vector<1x128xbf16> to vector<1x128xf32>
    %cst_99 = arith.constant dense<0.000000e+00> : vector<1xf32>
    %192 = arith.mulf %190, %191 : vector<1x128xf32>
    %193 = vector.multi_reduction <add>, %192, %cst_99 [1] : vector<1x128xf32> to vector<1xf32>
    %194 = vector.shape_cast %193 : vector<1xf32> to vector<1x1xf32>
    %c0_100 = arith.constant 0 : index
    %c0_101 = arith.constant 0 : index
    %195 = vector.load %arg18[%c0_100, %c0_101] : memref<1x1xf32, #tpu.memory_space<vmem>>, vector<1x1xf32>
    %196 = arith.addf %194, %195 : vector<1x1xf32>
    %197 = arith.negf %196 : vector<1x1xf32>
    %198 = math.exp %197 : vector<1x1xf32>
    %cst_102 = arith.constant 1.000000e+00 : f32
    %199 = vector.broadcast %cst_102 : f32 to vector<1x1xf32>
    %200 = arith.addf %199, %198 : vector<1x1xf32>
    %201 = arith.divf %199, %200 : vector<1x1xf32>
    %202 = vector.shape_cast %201 : vector<1x1xf32> to vector<1x1xf32>
    %203 = vector.broadcast %202 : vector<1x1xf32> to vector<1x16xf32>
    %204 = tpu.concatenate %187, %203 in 0 : vector<2x16xf32>, vector<1x16xf32> -> vector<3x16xf32>
    %c0_103 = arith.constant 0 : index
    %c0_104 = arith.constant 0 : index
    %c0_105 = arith.constant 0 : index
    %205 = vector.load %arg19[%c0_103, %c0_104, %c0_105] : memref<1x3x16xf32, #tpu.memory_space<vmem>>, vector<1x3x16xf32>
    %206 = vector.shape_cast %205 : vector<1x3x16xf32> to vector<3x16xf32>
    %207 = vector.shape_cast %204 : vector<3x16xf32> to vector<1x3x16xf32>
    tpu.vector_store %arg19[%c0_103, %c0_104, %c0_105], %207 {strides = array<i32>} : memref<1x3x16xf32, #tpu.memory_space<vmem>>, vector<1x3x16xf32>,
    return
  }
  func.func @transform_0(%arg0: i32) -> (i32, i32, i32) {
    %c0_i32 = arith.constant 0 : i32
    %c0_i32_0 = arith.constant 0 : i32
    %c0_i32_1 = arith.constant 0 : i32
    return %arg0, %c0_i32, %c0_i32_0 : i32, i32, i32
  }
  func.func @transform_1(%arg0: i32) -> (i32, i32, i32) {
    %c0_i32 = arith.constant 0 : i32
    %c0_i32_0 = arith.constant 0 : i32
    %c0_i32_1 = arith.constant 0 : i32
    return %arg0, %c0_i32, %c0_i32_0 : i32, i32, i32
  }
  func.func @transform_2(%arg0: i32) -> (i32, i32) {
    %c0_i32 = arith.constant 0 : i32
    %c0_i32_0 = arith.constant 0 : i32
    %c0_i32_1 = arith.constant 0 : i32
    return %c0_i32, %c0_i32_0 : i32, i32
  }
  func.func @transform_3(%arg0: i32) -> (i32, i32) {
    %c0_i32 = arith.constant 0 : i32
    %c0_i32_0 = arith.constant 0 : i32
    %c0_i32_1 = arith.constant 0 : i32
    return %c0_i32, %c0_i32_0 : i32, i32
  }
  func.func @transform_4(%arg0: i32) -> (i32, i32) {
    %c0_i32 = arith.constant 0 : i32
    %c0_i32_0 = arith.constant 0 : i32
    %c0_i32_1 = arith.constant 0 : i32
    return %c0_i32, %c0_i32_0 : i32, i32
  }
  func.func @transform_5(%arg0: i32) -> (i32, i32) {
    %c0_i32 = arith.constant 0 : i32
    %c0_i32_0 = arith.constant 0 : i32
    %c0_i32_1 = arith.constant 0 : i32
    return %c0_i32, %c0_i32_0 : i32, i32
  }
  func.func @transform_6(%arg0: i32) -> (i32, i32) {
    %c0_i32 = arith.constant 0 : i32
    %c0_i32_0 = arith.constant 0 : i32
    %c0_i32_1 = arith.constant 0 : i32
    return %c0_i32, %c0_i32_0 : i32, i32
  }
  func.func @transform_7(%arg0: i32) -> (i32, i32) {
    %c0_i32 = arith.constant 0 : i32
    %c0_i32_0 = arith.constant 0 : i32
    %c0_i32_1 = arith.constant 0 : i32
    return %c0_i32, %c0_i32_0 : i32, i32
  }
  func.func @transform_8(%arg0: i32) -> (i32, i32, i32) {
    %c0_i32 = arith.constant 0 : i32
    %c0_i32_0 = arith.constant 0 : i32
    %c0_i32_1 = arith.constant 0 : i32
    %c0_i32_2 = arith.constant 0 : i32
    return %c0_i32, %c0_i32_0, %c0_i32_1 : i32, i32, i32
  }
  func.func @transform_9(%arg0: i32) -> (i32, i32, i32) {
    %c0_i32 = arith.constant 0 : i32
    %c0_i32_0 = arith.constant 0 : i32
    %c0_i32_1 = arith.constant 0 : i32
    %c0_i32_2 = arith.constant 0 : i32
    return %c0_i32, %c0_i32_0, %c0_i32_1 : i32, i32, i32
  }
  func.func @transform_10(%arg0: i32) -> (i32, i32, i32) {
    %c0_i32 = arith.constant 0 : i32
    %c0_i32_0 = arith.constant 0 : i32
    %c0_i32_1 = arith.constant 0 : i32
    %c0_i32_2 = arith.constant 0 : i32
    return %c0_i32, %c0_i32_0, %c0_i32_1 : i32, i32, i32
  }
  func.func @transform_11(%arg0: i32) -> (i32, i32, i32) {
    %c0_i32 = arith.constant 0 : i32
    %c0_i32_0 = arith.constant 0 : i32
    %c0_i32_1 = arith.constant 0 : i32
    %c0_i32_2 = arith.constant 0 : i32
    return %c0_i32, %c0_i32_0, %c0_i32_1 : i32, i32, i32
  }
  func.func @transform_12(%arg0: i32) -> (i32, i32, i32) {
    %c0_i32 = arith.constant 0 : i32
    %c0_i32_0 = arith.constant 0 : i32
    %c0_i32_1 = arith.constant 0 : i32
    %c0_i32_2 = arith.constant 0 : i32
    return %c0_i32, %c0_i32_0, %c0_i32_1 : i32, i32, i32
  }
  func.func @transform_13(%arg0: i32) -> (i32, i32, i32) {
    %c0_i32 = arith.constant 0 : i32
    %c0_i32_0 = arith.constant 0 : i32
    %c0_i32_1 = arith.constant 0 : i32
    %c0_i32_2 = arith.constant 0 : i32
    return %c0_i32, %c0_i32_0, %c0_i32_1 : i32, i32, i32
  }
  func.func @transform_14(%arg0: i32) -> (i32, i32) {
    %c0_i32 = arith.constant 0 : i32
    %c0_i32_0 = arith.constant 0 : i32
    %c0_i32_1 = arith.constant 0 : i32
    return %c0_i32, %c0_i32_0 : i32, i32
  }
  func.func @transform_15(%arg0: i32) -> (i32, i32) {
    %c0_i32 = arith.constant 0 : i32
    %c0_i32_0 = arith.constant 0 : i32
    %c0_i32_1 = arith.constant 0 : i32
    return %c0_i32, %c0_i32_0 : i32, i32
  }
  func.func @transform_16(%arg0: i32) -> (i32, i32) {
    %c0_i32 = arith.constant 0 : i32
    %c0_i32_0 = arith.constant 0 : i32
    %c0_i32_1 = arith.constant 0 : i32
    return %c0_i32, %c0_i32_0 : i32, i32
  }
  func.func @transform_17(%arg0: i32) -> (i32, i32) {
    %c0_i32 = arith.constant 0 : i32
    %c0_i32_0 = arith.constant 0 : i32
    %c0_i32_1 = arith.constant 0 : i32
    return %c0_i32, %c0_i32_0 : i32, i32
  }
  func.func @transform_18(%arg0: i32) -> (i32, i32, i32) {
    %c0_i32 = arith.constant 0 : i32
    %c0_i32_0 = arith.constant 0 : i32
    %c0_i32_1 = arith.constant 0 : i32
    return %arg0, %c0_i32, %c0_i32_0 : i32, i32, i32
  }
}

</mosaic_0001>

<llo_original>
// kernel: tpu_custom_call.1
$region0: #{tpu_custom_call.1}
  #allocation0 [shape = 'u32[]', space=smem, size = 0x4, offset = 0x4, fixed_abs, tag = 'smem constant byte address 0x4 - core index']
  #allocation1 [shape = 'u32[144,128]{1,0:T(1,128)}', space=vmem, size = 0x12000, scoped, tag = 'internal scratch']
  #allocation2 [shape = 'f32[1,1]{1,0:T(1,128)S(1)}', space=vmem, size = 0x200, scoped, tag = 'scoped memory for tpu_custom_call.1']
  %s0 = inlined_call_operand.vmem [shape: bf16[2,16,128], index: 0, kind: input, shape index: {}]
  %s1 = inlined_call_operand.vmem [shape: f32[2,1,16], index: 1, kind: input, shape index: {}]
  %s2 = inlined_call_operand.vmem [shape: bf16[128,128], index: 2, kind: input, shape index: {}]
  %s3 = inlined_call_operand.hbm [shape: f32[1,128], index: 3, kind: input, shape index: {}]
  %s4 = inlined_call_operand.vmem [shape: bf16[128,128], index: 4, kind: input, shape index: {}]
  %s5 = inlined_call_operand.hbm [shape: f32[1,128], index: 5, kind: input, shape index: {}]
  %s6 = inlined_call_operand.hbm [shape: bf16[128,128], index: 6, kind: input, shape index: {}]
  %s7 = inlined_call_operand.vmem [shape: f32[1,128], index: 7, kind: input, shape index: {}]
  %s8 = inlined_call_operand.vmem [shape: bf16[6,32,16], index: 8, kind: input, shape index: {}]
  %s9 = inlined_call_operand.vmem [shape: f32[2,1,32], index: 9, kind: input, shape index: {}]
  %s10 = inlined_call_operand.vmem [shape: bf16[2,16,32], index: 10, kind: input, shape index: {}]
  %s11 = inlined_call_operand.vmem [shape: f32[2,1,16], index: 11, kind: input, shape index: {}]
  %s12 = inlined_call_operand.vmem [shape: f32[2,1,128], index: 12, kind: input, shape index: {}]
  %s13 = inlined_call_operand.vmem [shape: f32[2,1,128], index: 13, kind: input, shape index: {}]
  %s14 = inlined_call_operand.vmem [shape: bf16[2,128], index: 14, kind: input, shape index: {}]
  %s15 = inlined_call_operand.vmem [shape: f32[2,1], index: 15, kind: input, shape index: {}]
  %s16 = inlined_call_operand.vmem [shape: bf16[1,128], index: 16, kind: input, shape index: {}]
  %s17 = inlined_call_operand.<no memory space> [shape: f32[1,1], index: 17, kind: input, shape index: {}]
  %s18 = inlined_call_operand.vmem [shape: f32[2,3,16], index: 18, kind: output, shape index: {}]
  %s19 = sld [smem:[#allocation0]]
  $region117: #{tpu_custom_call.1} parent=0
    _
  %s21 = ssub.s32 1, %s19
  %s22 = scalar_select 0, %s21, %s19
  %v23 = vstv %s17
  %24 = vst [vmem:[#allocation2] sm:$0x1] %v23
  $region1: #{tpu_custom_call.1} parent=0
    #allocation3 [shape = 'u8[512]{0}', space=vmem, size = 0x400, scoped, tag = 'input window, operand 3, single buffered']
    #allocation4 [shape = 's32[2]{0}', space=sflag, size = 0x8, scoped, tag = 'scoped memory for tpu_custom_call.1']
    #allocation5 [shape = 'u8[512]{0}', space=vmem, size = 0x400, scoped, tag = 'input window, operand 5, single buffered']
    #allocation6 [shape = 's32[1]{0}', space=sflag, size = 0x4, scoped, tag = 'scoped memory for tpu_custom_call.1']
    #allocation7 [shape = 'u8[32768]{0}', space=vmem, size = 0x8000, scoped, tag = 'input window, operand 6, single buffered']
    %25 = vsyncpa [#allocation4], 0
    %26 = vsyncpa [#allocation6], 0
    loop: start=0, step=1, limit=4
    $region2: #{tpu_custom_call.1} parent=1 // loop_pre_header
      _
    $region3: #{tpu_custom_call.1} parent=1 // loop_header
      %s28 = sphi 0, %s32
      %p29 = scmp.ge.s32.totalorder %s28, 4
      %s38 = sphi 0, %s40
      %s41 = sphi 0, %s38
      %s42 = sphi 0, %s41
      %s58 = sphi 0, %s42
      %s64 = sphi 0, %s66
      %s67 = sphi 0, %s64
      %s68 = sphi 0, %s67
      %s84 = sphi 0, %s68
      %s88 = sphi 0, %s88
      %s90 = sphi 0, %s88
      %s91 = sphi 0, %s90
      %s105 = sphi 0, %s91
      %s109 = sphi 0, %s109
      %s111 = sphi 0, %s109
      %s112 = sphi 0, %s111
      %s126 = sphi 0, %s112
      %s130 = sphi 0, %s130
      %s132 = sphi 0, %s130
      %s133 = sphi 0, %s132
      %s147 = sphi 0, %s133
      %s151 = sphi 0, %s151
      %s153 = sphi 0, %s151
      %s154 = sphi 0, %s153
      %s168 = sphi 0, %s154
      %s172 = sphi 0, %s172
      %s174 = sphi 0, %s172
      %s175 = sphi 0, %s174
      %s189 = sphi 0, %s175
      %s193 = sphi 0, %s193
      %s195 = sphi 0, %s193
      %s196 = sphi 0, %s195
      %s210 = sphi 0, %s196
      %s214 = sphi 0, %s214
      %s216 = sphi 0, %s214
      %s217 = sphi 0, %s216
      %s231 = sphi 0, %s217
      %s235 = sphi 0, %s235
      %s237 = sphi 0, %s235
      %s238 = sphi 0, %s237
      %s252 = sphi 0, %s238
      %s256 = sphi 0, %s256
      %s258 = sphi 0, %s256
      %s259 = sphi 0, %s258
      %s273 = sphi 0, %s259
      %s277 = sphi 0, %s277
      %s279 = sphi 0, %s277
      %s280 = sphi 0, %s279
      %s294 = sphi 0, %s280
      %s298 = sphi 0, %s298
      %s300 = sphi 0, %s298
      %s301 = sphi 0, %s300
      %s315 = sphi 0, %s301
      %s319 = sphi 0, %s319
      %s321 = sphi 0, %s319
      %s322 = sphi 0, %s321
      %s336 = sphi 0, %s322
      %s340 = sphi 0, %s340
      %s342 = sphi 0, %s340
      %s343 = sphi 0, %s342
      %s357 = sphi 0, %s343
      %s361 = sphi 0, %s361
      %s363 = sphi 0, %s361
      %s364 = sphi 0, %s363
      %s378 = sphi 0, %s364
      %s382 = sphi 0, %s382
      %s384 = sphi 0, %s382
      %s385 = sphi 0, %s384
      %s399 = sphi 0, %s385
      %s403 = sphi 0, %s403
      %s405 = sphi 0, %s403
      %s406 = sphi 0, %s405
      %s420 = sphi 0, %s406
      %s426 = sphi 0, %s428
      %s429 = sphi 0, %s426
      %s430 = sphi 0, %s429
      %s446 = sphi 0, %s430
    $region4: #{tpu_custom_call.1} parent=1 // loop_header_branch
      %31 = sbr.rel (%p29) target = $region8
    $region5: #{tpu_custom_call.1} parent=1 // loop_body
      %s33 = ssub.s32 %s28, 1
      %s34 = ssub.s32 %s28, 2
      %s35 = sadd.s32 %s28, 1
      %s36 = ssub.s32 %s28, %s35
      %p37 = scmp.eq.s32.totalorder %s36, 0
      %s39 = sadd.s32 %s38, 1
      %s40 = scalar_select %p37, %s38, %s39
      %p43 = pneg %p37
      %p44 = scmp.eq.s32.totalorder %s28, 1
      %p45 = por %p43, %p44
      %p46 = scmp.ne.s32.totalorder %s38, %s41
      %p47 = scmp.eq.s32.totalorder %s28, 0
      %p48 = por %p46, %p47
      %p49 = scmp.ne.s32.totalorder %s38, %s41
      %p50 = scmp.eq.s32.totalorder %s33, 1
      %p51 = por %p49, %p50
      %p52 = scmp.ne.s32.totalorder %s41, %s42
      %p53 = scmp.eq.s32.totalorder %s33, 0
      %p54 = por %p52, %p53
      %p55 = scmp.ne.s32.totalorder %s41, %s42
      %p56 = scmp.eq.s32.totalorder %s34, 1
      %p57 = por %p55, %p56
      %p59 = scmp.ne.s32.totalorder %s42, %s58
      %p60 = scmp.eq.s32.totalorder %s34, 0
      %p61 = por %p59, %p60
      %s62 = ssub.s32 %s28, %s35
      %p63 = scmp.eq.s32.totalorder %s62, 0
      %s65 = sadd.s32 %s64, 1
      %s66 = scalar_select %p63, %s64, %s65
      %p69 = pneg %p63
      %p70 = scmp.eq.s32.totalorder %s28, 1
      %p71 = por %p69, %p70
      %p72 = scmp.ne.s32.totalorder %s64, %s67
      %p73 = scmp.eq.s32.totalorder %s28, 0
      %p74 = por %p72, %p73
      %p75 = scmp.ne.s32.totalorder %s64, %s67
      %p76 = scmp.eq.s32.totalorder %s33, 1
      %p77 = por %p75, %p76
      %p78 = scmp.ne.s32.totalorder %s67, %s68
      %p79 = scmp.eq.s32.totalorder %s33, 0
      %p80 = por %p78, %p79
      %p81 = scmp.ne.s32.totalorder %s67, %s68
      %p82 = scmp.eq.s32.totalorder %s34, 1
      %p83 = por %p81, %p82
      %p85 = scmp.ne.s32.totalorder %s68, %s84
      %p86 = scmp.eq.s32.totalorder %s34, 0
      %p87 = por %p85, %p86
      %s89 = sadd.s32 %s88, 1
      %p92 = scmp.eq.s32.totalorder %s28, 1
      %p93 = scmp.ne.s32.totalorder %s88, %s90
      %p94 = scmp.eq.s32.totalorder %s28, 0
      %p95 = por %p93, %p94
      %p96 = scmp.ne.s32.totalorder %s88, %s90
      %p97 = scmp.eq.s32.totalorder %s33, 1
      %p98 = por %p96, %p97
      %p99 = scmp.ne.s32.totalorder %s90, %s91
      %p100 = scmp.eq.s32.totalorder %s33, 0
      %p101 = por %p99, %p100
      %p102 = scmp.ne.s32.totalorder %s90, %s91
      %p103 = scmp.eq.s32.totalorder %s34, 1
      %p104 = por %p102, %p103
      %p106 = scmp.ne.s32.totalorder %s91, %s105
      %p107 = scmp.eq.s32.totalorder %s34, 0
      %p108 = por %p106, %p107
      %s110 = sadd.s32 %s109, 1
      %p113 = scmp.eq.s32.totalorder %s28, 1
      %p114 = scmp.ne.s32.totalorder %s109, %s111
      %p115 = scmp.eq.s32.totalorder %s28, 0
      %p116 = por %p114, %p115
      %p117 = scmp.ne.s32.totalorder %s109, %s111
      %p118 = scmp.eq.s32.totalorder %s33, 1
      %p119 = por %p117, %p118
      %p120 = scmp.ne.s32.totalorder %s111, %s112
      %p121 = scmp.eq.s32.totalorder %s33, 0
      %p122 = por %p120, %p121
      %p123 = scmp.ne.s32.totalorder %s111, %s112
      %p124 = scmp.eq.s32.totalorder %s34, 1
      %p125 = por %p123, %p124
      %p127 = scmp.ne.s32.totalorder %s112, %s126
      %p128 = scmp.eq.s32.totalorder %s34, 0
      %p129 = por %p127, %p128
      %s131 = sadd.s32 %s130, 1
      %p134 = scmp.eq.s32.totalorder %s28, 1
      %p135 = scmp.ne.s32.totalorder %s130, %s132
      %p136 = scmp.eq.s32.totalorder %s28, 0
      %p137 = por %p135, %p136
      %p138 = scmp.ne.s32.totalorder %s130, %s132
      %p139 = scmp.eq.s32.totalorder %s33, 1
      %p140 = por %p138, %p139
      %p141 = scmp.ne.s32.totalorder %s132, %s133
      %p142 = scmp.eq.s32.totalorder %s33, 0
      %p143 = por %p141, %p142
      %p144 = scmp.ne.s32.totalorder %s132, %s133
      %p145 = scmp.eq.s32.totalorder %s34, 1
      %p146 = por %p144, %p145
      %p148 = scmp.ne.s32.totalorder %s133, %s147
      %p149 = scmp.eq.s32.totalorder %s34, 0
      %p150 = por %p148, %p149
      %s152 = sadd.s32 %s151, 1
      %p155 = scmp.eq.s32.totalorder %s28, 1
      %p156 = scmp.ne.s32.totalorder %s151, %s153
      %p157 = scmp.eq.s32.totalorder %s28, 0
      %p158 = por %p156, %p157
      %p159 = scmp.ne.s32.totalorder %s151, %s153
      %p160 = scmp.eq.s32.totalorder %s33, 1
      %p161 = por %p159, %p160
      %p162 = scmp.ne.s32.totalorder %s153, %s154
      %p163 = scmp.eq.s32.totalorder %s33, 0
      %p164 = por %p162, %p163
      %p165 = scmp.ne.s32.totalorder %s153, %s154
      %p166 = scmp.eq.s32.totalorder %s34, 1
      %p167 = por %p165, %p166
      %p169 = scmp.ne.s32.totalorder %s154, %s168
      %p170 = scmp.eq.s32.totalorder %s34, 0
      %p171 = por %p169, %p170
      %s173 = sadd.s32 %s172, 1
      %p176 = scmp.eq.s32.totalorder %s28, 1
      %p177 = scmp.ne.s32.totalorder %s172, %s174
      %p178 = scmp.eq.s32.totalorder %s28, 0
      %p179 = por %p177, %p178
      %p180 = scmp.ne.s32.totalorder %s172, %s174
      %p181 = scmp.eq.s32.totalorder %s33, 1
      %p182 = por %p180, %p181
      %p183 = scmp.ne.s32.totalorder %s174, %s175
      %p184 = scmp.eq.s32.totalorder %s33, 0
      %p185 = por %p183, %p184
      %p186 = scmp.ne.s32.totalorder %s174, %s175
      %p187 = scmp.eq.s32.totalorder %s34, 1
      %p188 = por %p186, %p187
      %p190 = scmp.ne.s32.totalorder %s175, %s189
      %p191 = scmp.eq.s32.totalorder %s34, 0
      %p192 = por %p190, %p191
      %s194 = sadd.s32 %s193, 1
      %p197 = scmp.eq.s32.totalorder %s28, 1
      %p198 = scmp.ne.s32.totalorder %s193, %s195
      %p199 = scmp.eq.s32.totalorder %s28, 0
      %p200 = por %p198, %p199
      %p201 = scmp.ne.s32.totalorder %s193, %s195
      %p202 = scmp.eq.s32.totalorder %s33, 1
      %p203 = por %p201, %p202
      %p204 = scmp.ne.s32.totalorder %s195, %s196
      %p205 = scmp.eq.s32.totalorder %s33, 0
      %p206 = por %p204, %p205
      %p207 = scmp.ne.s32.totalorder %s195, %s196
      %p208 = scmp.eq.s32.totalorder %s34, 1
      %p209 = por %p207, %p208
      %p211 = scmp.ne.s32.totalorder %s196, %s210
      %p212 = scmp.eq.s32.totalorder %s34, 0
      %p213 = por %p211, %p212
      %s215 = sadd.s32 %s214, 1
      %p218 = scmp.eq.s32.totalorder %s28, 1
      %p219 = scmp.ne.s32.totalorder %s214, %s216
      %p220 = scmp.eq.s32.totalorder %s28, 0
      %p221 = por %p219, %p220
      %p222 = scmp.ne.s32.totalorder %s214, %s216
      %p223 = scmp.eq.s32.totalorder %s33, 1
      %p224 = por %p222, %p223
      %p225 = scmp.ne.s32.totalorder %s216, %s217
      %p226 = scmp.eq.s32.totalorder %s33, 0
      %p227 = por %p225, %p226
      %p228 = scmp.ne.s32.totalorder %s216, %s217
      %p229 = scmp.eq.s32.totalorder %s34, 1
      %p230 = por %p228, %p229
      %p232 = scmp.ne.s32.totalorder %s217, %s231
      %p233 = scmp.eq.s32.totalorder %s34, 0
      %p234 = por %p232, %p233
      %s236 = sadd.s32 %s235, 1
      %p239 = scmp.eq.s32.totalorder %s28, 1
      %p240 = scmp.ne.s32.totalorder %s235, %s237
      %p241 = scmp.eq.s32.totalorder %s28, 0
      %p242 = por %p240, %p241
      %p243 = scmp.ne.s32.totalorder %s235, %s237
      %p244 = scmp.eq.s32.totalorder %s33, 1
      %p245 = por %p243, %p244
      %p246 = scmp.ne.s32.totalorder %s237, %s238
      %p247 = scmp.eq.s32.totalorder %s33, 0
      %p248 = por %p246, %p247
      %p249 = scmp.ne.s32.totalorder %s237, %s238
      %p250 = scmp.eq.s32.totalorder %s34, 1
      %p251 = por %p249, %p250
      %p253 = scmp.ne.s32.totalorder %s238, %s252
      %p254 = scmp.eq.s32.totalorder %s34, 0
      %p255 = por %p253, %p254
      %s257 = sadd.s32 %s256, 1
      %p260 = scmp.eq.s32.totalorder %s28, 1
      %p261 = scmp.ne.s32.totalorder %s256, %s258
      %p262 = scmp.eq.s32.totalorder %s28, 0
      %p263 = por %p261, %p262
      %p264 = scmp.ne.s32.totalorder %s256, %s258
      %p265 = scmp.eq.s32.totalorder %s33, 1
      %p266 = por %p264, %p265
      %p267 = scmp.ne.s32.totalorder %s258, %s259
      %p268 = scmp.eq.s32.totalorder %s33, 0
      %p269 = por %p267, %p268
      %p270 = scmp.ne.s32.totalorder %s258, %s259
      %p271 = scmp.eq.s32.totalorder %s34, 1
      %p272 = por %p270, %p271
      %p274 = scmp.ne.s32.totalorder %s259, %s273
      %p275 = scmp.eq.s32.totalorder %s34, 0
      %p276 = por %p274, %p275
      %s278 = sadd.s32 %s277, 1
      %p281 = scmp.eq.s32.totalorder %s28, 1
      %p282 = scmp.ne.s32.totalorder %s277, %s279
      %p283 = scmp.eq.s32.totalorder %s28, 0
      %p284 = por %p282, %p283
      %p285 = scmp.ne.s32.totalorder %s277, %s279
      %p286 = scmp.eq.s32.totalorder %s33, 1
      %p287 = por %p285, %p286
      %p288 = scmp.ne.s32.totalorder %s279, %s280
      %p289 = scmp.eq.s32.totalorder %s33, 0
      %p290 = por %p288, %p289
      %p291 = scmp.ne.s32.totalorder %s279, %s280
      %p292 = scmp.eq.s32.totalorder %s34, 1
      %p293 = por %p291, %p292
      %p295 = scmp.ne.s32.totalorder %s280, %s294
      %p296 = scmp.eq.s32.totalorder %s34, 0
      %p297 = por %p295, %p296
      %s299 = sadd.s32 %s298, 1
      %p302 = scmp.eq.s32.totalorder %s28, 1
      %p303 = scmp.ne.s32.totalorder %s298, %s300
      %p304 = scmp.eq.s32.totalorder %s28, 0
      %p305 = por %p303, %p304
      %p306 = scmp.ne.s32.totalorder %s298, %s300
      %p307 = scmp.eq.s32.totalorder %s33, 1
      %p308 = por %p306, %p307
      %p309 = scmp.ne.s32.totalorder %s300, %s301
      %p310 = scmp.eq.s32.totalorder %s33, 0
      %p311 = por %p309, %p310
      %p312 = scmp.ne.s32.totalorder %s300, %s301
      %p313 = scmp.eq.s32.totalorder %s34, 1
      %p314 = por %p312, %p313
      %p316 = scmp.ne.s32.totalorder %s301, %s315
      %p317 = scmp.eq.s32.totalorder %s34, 0
      %p318 = por %p316, %p317
      %s320 = sadd.s32 %s319, 1
      %p323 = scmp.eq.s32.totalorder %s28, 1
      %p324 = scmp.ne.s32.totalorder %s319, %s321
      %p325 = scmp.eq.s32.totalorder %s28, 0
      %p326 = por %p324, %p325
      %p327 = scmp.ne.s32.totalorder %s319, %s321
      %p328 = scmp.eq.s32.totalorder %s33, 1
      %p329 = por %p327, %p328
      %p330 = scmp.ne.s32.totalorder %s321, %s322
      %p331 = scmp.eq.s32.totalorder %s33, 0
      %p332 = por %p330, %p331
      %p333 = scmp.ne.s32.totalorder %s321, %s322
      %p334 = scmp.eq.s32.totalorder %s34, 1
      %p335 = por %p333, %p334
      %p337 = scmp.ne.s32.totalorder %s322, %s336
      %p338 = scmp.eq.s32.totalorder %s34, 0
      %p339 = por %p337, %p338
      %s341 = sadd.s32 %s340, 1
      %p344 = scmp.eq.s32.totalorder %s28, 1
      %p345 = scmp.ne.s32.totalorder %s340, %s342
      %p346 = scmp.eq.s32.totalorder %s28, 0
      %p347 = por %p345, %p346
      %p348 = scmp.ne.s32.totalorder %s340, %s342
      %p349 = scmp.eq.s32.totalorder %s33, 1
      %p350 = por %p348, %p349
      %p351 = scmp.ne.s32.totalorder %s342, %s343
      %p352 = scmp.eq.s32.totalorder %s33, 0
      %p353 = por %p351, %p352
      %p354 = scmp.ne.s32.totalorder %s342, %s343
      %p355 = scmp.eq.s32.totalorder %s34, 1
      %p356 = por %p354, %p355
      %p358 = scmp.ne.s32.totalorder %s343, %s357
      %p359 = scmp.eq.s32.totalorder %s34, 0
      %p360 = por %p358, %p359
      %s362 = sadd.s32 %s361, 1
      %p365 = scmp.eq.s32.totalorder %s28, 1
      %p366 = scmp.ne.s32.totalorder %s361, %s363
      %p367 = scmp.eq.s32.totalorder %s28, 0
      %p368 = por %p366, %p367
      %p369 = scmp.ne.s32.totalorder %s361, %s363
      %p370 = scmp.eq.s32.totalorder %s33, 1
      %p371 = por %p369, %p370
      %p372 = scmp.ne.s32.totalorder %s363, %s364
      %p373 = scmp.eq.s32.totalorder %s33, 0
      %p374 = por %p372, %p373
      %p375 = scmp.ne.s32.totalorder %s363, %s364
      %p376 = scmp.eq.s32.totalorder %s34, 1
      %p377 = por %p375, %p376
      %p379 = scmp.ne.s32.totalorder %s364, %s378
      %p380 = scmp.eq.s32.totalorder %s34, 0
      %p381 = por %p379, %p380
      %s383 = sadd.s32 %s382, 1
      %p386 = scmp.eq.s32.totalorder %s28, 1
      %p387 = scmp.ne.s32.totalorder %s382, %s384
      %p388 = scmp.eq.s32.totalorder %s28, 0
      %p389 = por %p387, %p388
      %p390 = scmp.ne.s32.totalorder %s382, %s384
      %p391 = scmp.eq.s32.totalorder %s33, 1
      %p392 = por %p390, %p391
      %p393 = scmp.ne.s32.totalorder %s384, %s385
      %p394 = scmp.eq.s32.totalorder %s33, 0
      %p395 = por %p393, %p394
      %p396 = scmp.ne.s32.totalorder %s384, %s385
      %p397 = scmp.eq.s32.totalorder %s34, 1
      %p398 = por %p396, %p397
      %p400 = scmp.ne.s32.totalorder %s385, %s399
      %p401 = scmp.eq.s32.totalorder %s34, 0
      %p402 = por %p400, %p401
      %s404 = sadd.s32 %s403, 1
      %p407 = scmp.eq.s32.totalorder %s28, 1
      %p408 = scmp.ne.s32.totalorder %s403, %s405
      %p409 = scmp.eq.s32.totalorder %s28, 0
      %p410 = por %p408, %p409
      %p411 = scmp.ne.s32.totalorder %s403, %s405
      %p412 = scmp.eq.s32.totalorder %s33, 1
      %p413 = por %p411, %p412
      %p414 = scmp.ne.s32.totalorder %s405, %s406
      %p415 = scmp.eq.s32.totalorder %s33, 0
      %p416 = por %p414, %p415
      %p417 = scmp.ne.s32.totalorder %s405, %s406
      %p418 = scmp.eq.s32.totalorder %s34, 1
      %p419 = por %p417, %p418
      %p421 = scmp.ne.s32.totalorder %s406, %s420
      %p422 = scmp.eq.s32.totalorder %s34, 0
      %p423 = por %p421, %p422
      %s424 = ssub.s32 %s28, %s35
      %p425 = scmp.eq.s32.totalorder %s424, 0
      %s427 = sadd.s32 %s426, 1
      %s428 = scalar_select %p425, %s426, %s427
      %p431 = pneg %p425
      %p432 = scmp.eq.s32.totalorder %s28, 1
      %p433 = por %p431, %p432
      %p434 = scmp.ne.s32.totalorder %s426, %s429
      %p435 = scmp.eq.s32.totalorder %s28, 0
      %p436 = por %p434, %p435
      %p437 = scmp.ne.s32.totalorder %s426, %s429
      %p438 = scmp.eq.s32.totalorder %s33, 1
      %p439 = por %p437, %p438
      %p440 = scmp.ne.s32.totalorder %s429, %s430
      %p441 = scmp.eq.s32.totalorder %s33, 0
      %p442 = por %p440, %p441
      %p443 = scmp.ne.s32.totalorder %s429, %s430
      %p444 = scmp.eq.s32.totalorder %s34, 1
      %p445 = por %p443, %p444
      %p447 = scmp.ne.s32.totalorder %s430, %s446
      %p448 = scmp.eq.s32.totalorder %s34, 0
      %p449 = por %p447, %p448
      %p450 = scmp.le.s32.totalorder 1, %s28
      %p451 = scmp.lt.s32.totalorder %s28, 3
      %p452 = pnand %p450, %p451
      %p453 = pneg %p452
      // Predicated region
      $region9: #{tpu_custom_call.1} parent=5 // pred_check
        _
      $region10: #{tpu_custom_call.1} parent=5 // pred_check_branch
        %455 = sbr.rel (%p452) target = $region12
      $region11: #{tpu_custom_call.1} parent=5 // pred_region
        %s456 = ssub.s32 %s28, 1
        // Predicated region
        $region13: #{tpu_custom_call.1} parent=11 // pred_check
          %p457 = pneg %p101
        $region14: #{tpu_custom_call.1} parent=11 // pred_check_branch
          %459 = sbr.rel (%p457) target = $region16
        $region15: #{tpu_custom_call.1} parent=11 // pred_region
          _
        $region16: #{tpu_custom_call.1} parent=11 // pred_fallthru
          _
        // Predicated region
        $region17: #{tpu_custom_call.1} parent=11 // pred_check
          %p460 = pneg %p122
        $region18: #{tpu_custom_call.1} parent=11 // pred_check_branch
          %462 = sbr.rel (%p460) target = $region20
        $region19: #{tpu_custom_call.1} parent=11 // pred_region
          %s464 = ssub.s32 16, 16
          %465 = vsyncadd [#allocation4], %s464
          %s467 = sshll.u32 [#allocation3], 4
          %s468 = int_to_ptr.vmem [resolvable:$true] %s467
          %470 = dma.hbm_to_vmem [thread:$0]  %s3, 16, %s468, [#allocation4]
        $region20: #{tpu_custom_call.1} parent=11 // pred_fallthru
          _
        // Predicated region
        $region21: #{tpu_custom_call.1} parent=11 // pred_check
          %p471 = pneg %p143
        $region22: #{tpu_custom_call.1} parent=11 // pred_check_branch
          %473 = sbr.rel (%p471) target = $region24
        $region23: #{tpu_custom_call.1} parent=11 // pred_region
          _
        $region24: #{tpu_custom_call.1} parent=11 // pred_fallthru
          _
        // Predicated region
        $region25: #{tpu_custom_call.1} parent=11 // pred_check
          %p474 = pneg %p164
        $region26: #{tpu_custom_call.1} parent=11 // pred_check_branch
          %476 = sbr.rel (%p474) target = $region28
        $region27: #{tpu_custom_call.1} parent=11 // pred_region
          %s478 = ssub.s32 16, 16
          %479 = vsyncadd [#allocation6], %s478
          %s481 = sshll.u32 [#allocation5], 4
          %s482 = int_to_ptr.vmem [resolvable:$true] %s481
          %484 = dma.hbm_to_vmem [thread:$0]  %s5, 16, %s482, [#allocation6]
        $region28: #{tpu_custom_call.1} parent=11 // pred_fallthru
          _
        // Predicated region
        $region29: #{tpu_custom_call.1} parent=11 // pred_check
          %p485 = pneg %p185
        $region30: #{tpu_custom_call.1} parent=11 // pred_check_branch
          %487 = sbr.rel (%p485) target = $region32
        $region31: #{tpu_custom_call.1} parent=11 // pred_region
          %s489 = ssub.s32 1024, 1024
          %490 = vsyncadd [#allocation6], %s489
          %s491 = sshll.u32 [#allocation7], 4
          %s492 = int_to_ptr.vmem [resolvable:$true] %s491
          %497 = dma.hbm_to_vmem [thread:$0]  %s6, 1024, %s492, [#allocation6], 64, 64, 4
        $region32: #{tpu_custom_call.1} parent=11 // pred_fallthru
          _
        // Predicated region
        $region33: #{tpu_custom_call.1} parent=11 // pred_check
          %p498 = pneg %p206
        $region34: #{tpu_custom_call.1} parent=11 // pred_check_branch
          %500 = sbr.rel (%p498) target = $region36
        $region35: #{tpu_custom_call.1} parent=11 // pred_region
          _
        $region36: #{tpu_custom_call.1} parent=11 // pred_fallthru
          _
        // Predicated region
        $region37: #{tpu_custom_call.1} parent=11 // pred_check
          %p501 = pneg %p227
        $region38: #{tpu_custom_call.1} parent=11 // pred_check_branch
          %503 = sbr.rel (%p501) target = $region40
        $region39: #{tpu_custom_call.1} parent=11 // pred_region
          _
        $region40: #{tpu_custom_call.1} parent=11 // pred_fallthru
          _
        // Predicated region
        $region41: #{tpu_custom_call.1} parent=11 // pred_check
          %p504 = pneg %p248
        $region42: #{tpu_custom_call.1} parent=11 // pred_check_branch
          %506 = sbr.rel (%p504) target = $region44
        $region43: #{tpu_custom_call.1} parent=11 // pred_region
          _
        $region44: #{tpu_custom_call.1} parent=11 // pred_fallthru
          _
        // Predicated region
        $region45: #{tpu_custom_call.1} parent=11 // pred_check
          %p507 = pneg %p269
        $region46: #{tpu_custom_call.1} parent=11 // pred_check_branch
          %509 = sbr.rel (%p507) target = $region48
        $region47: #{tpu_custom_call.1} parent=11 // pred_region
          _
        $region48: #{tpu_custom_call.1} parent=11 // pred_fallthru
          _
        // Predicated region
        $region49: #{tpu_custom_call.1} parent=11 // pred_check
          %p510 = pneg %p290
        $region50: #{tpu_custom_call.1} parent=11 // pred_check_branch
          %512 = sbr.rel (%p510) target = $region52
        $region51: #{tpu_custom_call.1} parent=11 // pred_region
          _
        $region52: #{tpu_custom_call.1} parent=11 // pred_fallthru
          _
        // Predicated region
        $region53: #{tpu_custom_call.1} parent=11 // pred_check
          %p513 = pneg %p311
        $region54: #{tpu_custom_call.1} parent=11 // pred_check_branch
          %515 = sbr.rel (%p513) target = $region56
        $region55: #{tpu_custom_call.1} parent=11 // pred_region
          _
        $region56: #{tpu_custom_call.1} parent=11 // pred_fallthru
          _
        // Predicated region
        $region57: #{tpu_custom_call.1} parent=11 // pred_check
          %p516 = pneg %p332
        $region58: #{tpu_custom_call.1} parent=11 // pred_check_branch
          %518 = sbr.rel (%p516) target = $region60
        $region59: #{tpu_custom_call.1} parent=11 // pred_region
          _
        $region60: #{tpu_custom_call.1} parent=11 // pred_fallthru
          _
        // Predicated region
        $region61: #{tpu_custom_call.1} parent=11 // pred_check
          %p519 = pneg %p353
        $region62: #{tpu_custom_call.1} parent=11 // pred_check_branch
          %521 = sbr.rel (%p519) target = $region64
        $region63: #{tpu_custom_call.1} parent=11 // pred_region
          _
        $region64: #{tpu_custom_call.1} parent=11 // pred_fallthru
          _
        // Predicated region
        $region65: #{tpu_custom_call.1} parent=11 // pred_check
          %p522 = pneg %p374
        $region66: #{tpu_custom_call.1} parent=11 // pred_check_branch
          %524 = sbr.rel (%p522) target = $region68
        $region67: #{tpu_custom_call.1} parent=11 // pred_region
          _
        $region68: #{tpu_custom_call.1} parent=11 // pred_fallthru
          _
        // Predicated region
        $region69: #{tpu_custom_call.1} parent=11 // pred_check
          %p525 = pneg %p395
        $region70: #{tpu_custom_call.1} parent=11 // pred_check_branch
          %527 = sbr.rel (%p525) target = $region72
        $region71: #{tpu_custom_call.1} parent=11 // pred_region
          _
        $region72: #{tpu_custom_call.1} parent=11 // pred_fallthru
          _
        // Predicated region
        $region73: #{tpu_custom_call.1} parent=11 // pred_check
          %p528 = pneg %p416
        $region74: #{tpu_custom_call.1} parent=11 // pred_check_branch
          %530 = sbr.rel (%p528) target = $region76
        $region75: #{tpu_custom_call.1} parent=11 // pred_region
          _
        $region76: #{tpu_custom_call.1} parent=11 // pred_fallthru
          _
      $region12: #{tpu_custom_call.1} parent=5 // pred_fallthru
        _
      %p531 = scmp.lt.s32.totalorder %s28, 2
      // Predicated region
      $region77: #{tpu_custom_call.1} parent=5 // pred_check
        %p532 = pneg %p531
      $region78: #{tpu_custom_call.1} parent=5 // pred_check_branch
        %534 = sbr.rel (%p532) target = $region80
      $region79: #{tpu_custom_call.1} parent=5 // pred_region
        // Predicated region
        $region81: #{tpu_custom_call.1} parent=79 // pred_check
          %p535 = pneg %p48
        $region82: #{tpu_custom_call.1} parent=79 // pred_check_branch
          %537 = sbr.rel (%p535) target = $region84
        $region83: #{tpu_custom_call.1} parent=79 // pred_region
          %p538 = scmp.lt.s32.totalorder %s28, 1
          %s539 = scalar_select %p538, %s28, 1
          %s540 = smul.addr %s539, 2
          %s541 = smul.addr %s540, 4
          %s542 = scalar_lea.vmem %s0, %s541
        $region84: #{tpu_custom_call.1} parent=79 // pred_fallthru
          _
        // Predicated region
        $region85: #{tpu_custom_call.1} parent=79 // pred_check
          %p543 = pneg %p74
        $region86: #{tpu_custom_call.1} parent=79 // pred_check_branch
          %545 = sbr.rel (%p543) target = $region88
        $region87: #{tpu_custom_call.1} parent=79 // pred_region
          %p546 = scmp.lt.s32.totalorder %s28, 1
          %s547 = scalar_select %p546, %s28, 1
          %s548 = scalar_lea.vmem %s1, %s547
        $region88: #{tpu_custom_call.1} parent=79 // pred_fallthru
          _
      $region80: #{tpu_custom_call.1} parent=5 // pred_fallthru
        _
      %p549 = scmp.le.s32.totalorder 1, %s28
      %p550 = scmp.lt.s32.totalorder %s28, 3
      %p551 = pnand %p549, %p550
      %p552 = pneg %p551
      // Predicated region
      $region89: #{tpu_custom_call.1} parent=5 // pred_check
        _
      $region90: #{tpu_custom_call.1} parent=5 // pred_check_branch
        %554 = sbr.rel (%p551) target = $region92
      $region91: #{tpu_custom_call.1} parent=5 // pred_region
        %s555 = ssub.s32 %s28, 1
        // Predicated region
        $region93: #{tpu_custom_call.1} parent=91 // pred_check
          %p556 = pneg %p122
        $region94: #{tpu_custom_call.1} parent=91 // pred_check_branch
          %558 = sbr.rel (%p556) target = $region96
        $region95: #{tpu_custom_call.1} parent=91 // pred_region
          %559 = dma.done [#allocation4], 16
        $region96: #{tpu_custom_call.1} parent=91 // pred_fallthru
          _
        // Predicated region
        $region97: #{tpu_custom_call.1} parent=91 // pred_check
          %p560 = pneg %p164
        $region98: #{tpu_custom_call.1} parent=91 // pred_check_branch
          %562 = sbr.rel (%p560) target = $region100
        $region99: #{tpu_custom_call.1} parent=91 // pred_region
          %563 = dma.done [#allocation6], 16
        $region100: #{tpu_custom_call.1} parent=91 // pred_fallthru
          _
        // Predicated region
        $region101: #{tpu_custom_call.1} parent=91 // pred_check
          %p564 = pneg %p185
        $region102: #{tpu_custom_call.1} parent=91 // pred_check_branch
          %566 = sbr.rel (%p564) target = $region104
        $region103: #{tpu_custom_call.1} parent=91 // pred_region
          %567 = dma.done [#allocation6], 1024
        $region104: #{tpu_custom_call.1} parent=91 // pred_fallthru
          _
        %p568 = scmp.lt.s32.totalorder %s33, 1
        %s569 = scalar_select %p568, %s33, 1
        %s570 = smul.addr %s569, 2
        %s571 = smul.addr %s570, 4
        %s572 = scalar_lea.vmem %s0, %s571
        %p573 = pneg %p54
        %p574 = pneg %p51
        %p575 = scmp.lt.s32.totalorder %s33, 1
        %s576 = scalar_select %p575, %s33, 1
        %s577 = scalar_lea.vmem %s1, %s576
        %p578 = pneg %p80
        %p579 = pneg %p77
        %p580 = pneg %p101
        %p581 = pneg %p98
        %p582 = pneg %p122
        %p583 = pneg %p119
        %p584 = pneg %p143
        %p585 = pneg %p140
        %p586 = pneg %p164
        %p587 = pneg %p161
        %p588 = pneg %p185
        %p589 = pneg %p182
        %p590 = pneg %p206
        %p591 = pneg %p203
        %p592 = pneg %p227
        %p593 = pneg %p224
        %p594 = pneg %p248
        %p595 = pneg %p245
        %p596 = pneg %p269
        %p597 = pneg %p266
        %p598 = pneg %p290
        %p599 = pneg %p287
        %p600 = pneg %p311
        %p601 = pneg %p308
        %p602 = pneg %p332
        %p603 = pneg %p329
        %p604 = pneg %p353
        %p605 = pneg %p350
        %p606 = pneg %p374
        %p607 = pneg %p371
        %p608 = pneg %p395
        %p609 = pneg %p392
        %p610 = pneg %p416
        %p611 = pneg %p413
        %p612 = pneg %p442
        %p613 = pneg %p439
        %p614 = scmp.lt.s32.totalorder %s33, 1
        %s615 = scalar_select %p614, %s33, 1
        %s616 = smul.addr %s615, 4
        %s617 = scalar_lea.vmem %s18, %s616
        %p618 = scmp.lt.s32.totalorder %s33, 1
        %s619 = scalar_select %p618, %s33, 1
        %s620 = smul.addr %s619, 2
        %s621 = smul.addr %s620, 4
        %s622 = scalar_lea.vmem %s0, %s621
        %p623 = scmp.lt.s32.totalorder %s33, 1
        %s624 = scalar_select %p623, %s33, 1
        %s625 = scalar_lea.vmem %s1, %s624
        %p626 = scmp.lt.s32.totalorder %s33, 1
        %s627 = scalar_select %p626, %s33, 1
        %s628 = smul.addr %s627, 4
        %s629 = scalar_lea.vmem %s18, %s628
        %v631 = vld [vmem:[%s622] sm:$0xf]
        %v632 = vld [vmem:[%s622 + $0x4] sm:$0xf]
        %v633 = vld [vmem:[%s625] sm:$0x1]
        %vm634 = vcmask 122880
        %v635 = vsel %vm634, %v633, 0.0
        %636 = vadd.xlane.f32.xlu0 %v635
        %v637 = vpop.xlane.xlu0 %636
        %v638 = vmax.f32 %v637, 1.0
        %v639 = vpack.c.bf16 %v633, %v633
        %v642 = vunpack.c.l.b16 %v631
        %v643 = vunpack.c.l.b16 %v632
        %v644 = vpack.c.b16 %v643, %v642
        %vm646 = vcmask 130048
        %v648 = vsel %vm646, %v639, 0
        %650 = vmatprep.subr.bf16.mxu0 0
        %651 = vmatpush1.bf16.msra.mxu0 %v644
        %652 = vmatprep.subr.bf16.mxu0 0
        %653 = vmatpush1.bf16.msra.mxu0 0
        %654 = vmatprep.subr.bf16.mxu0 0
        %655 = vmatpush1.bf16.msra.mxu0 0
        %656 = vmatprep.subr.bf16.mxu0 0
        %657 = vmatpush1.bf16.msra.mxu0 0
        %658 = vmatprep.subr.bf16.mxu0 0
        %659 = vmatpush1.bf16.msra.mxu0 0
        %660 = vmatprep.subr.bf16.mxu0 0
        %661 = vmatpush1.bf16.msra.mxu0 0
        %662 = vmatprep.subr.bf16.mxu0 0
        %663 = vmatpush1.bf16.msra.mxu0 0
        %664 = vmatprep.subr.bf16.mxu0 0
        %665 = vmatpush1.bf16.msra.mxu0 0
        %666 = vmatprep.subr.bf16.mxu0 0
        %667 = vmatpush1.bf16.msra.mxu0 0
        %668 = vmatprep.subr.bf16.mxu0 0
        %669 = vmatpush1.bf16.msra.mxu0 0
        %670 = vmatprep.subr.bf16.mxu0 0
        %671 = vmatpush1.bf16.msra.mxu0 0
        %672 = vmatprep.subr.bf16.mxu0 0
        %673 = vmatpush1.bf16.msra.mxu0 0
        %674 = vmatprep.subr.bf16.mxu0 0
        %675 = vmatpush1.bf16.msra.mxu0 0
        %676 = vmatprep.subr.bf16.mxu0 0
        %677 = vmatpush1.bf16.msra.mxu0 0
        %678 = vmatprep.subr.bf16.mxu0 0
        %679 = vmatpush1.bf16.msra.mxu0 0
        %680 = vmatprep.subr.bf16.mxu0 0
        %681 = vmatpush1.bf16.msra.mxu0 0
        %682 = vmatprep.mubr.bf16.mxu0 0
        %683 = vmatmul.mubr.bf16.gmra.mrb[0].mxu0 %v648
        %v684 = vpop.f32.mrb[0].mxu0
        %v685 = vadd.f32 0.0, %v684
        %v686 = vpop.f32.mrb[0].mxu0
        %v687 = vpop.f32.mrb[0].mxu0
        %v688 = vpop.f32.mrb[0].mxu0
        %689 = vdwg.mxu0
        %v690 = vrcp.pop %v638
        %v691 = vmul.f32 %v685, %v690
        %v692 = vld [vmem:[%s2] sm:$0xf]
        %v693 = vld [vmem:[%s2 + $0x4] sm:$0xf]
        %v694 = vld [vmem:[%s2 + $0x8] sm:$0xf]
        %v695 = vld [vmem:[%s2 + $0xc] sm:$0xf]
        %v696 = vld [vmem:[%s2 + $0x10] sm:$0xf]
        %v697 = vld [vmem:[%s2 + $0x14] sm:$0xf]
        %v698 = vld [vmem:[%s2 + $0x18] sm:$0xf]
        %v699 = vld [vmem:[%s2 + $0x1c] sm:$0xf]
        %v700 = vld [vmem:[%s2 + $0x20] sm:$0xf]
        %v701 = vld [vmem:[%s2 + $0x24] sm:$0xf]
        %v702 = vld [vmem:[%s2 + $0x28] sm:$0xf]
        %v703 = vld [vmem:[%s2 + $0x2c] sm:$0xf]
        %v704 = vld [vmem:[%s2 + $0x30] sm:$0xf]
        %v705 = vld [vmem:[%s2 + $0x34] sm:$0xf]
        %v706 = vld [vmem:[%s2 + $0x38] sm:$0xf]
        %v707 = vld [vmem:[%s2 + $0x3c] sm:$0xf]
        %v708 = vld [vmem:[#allocation3] sm:$0x1]
        %v710 = vlaneseq
        %v711 = vshrl.u32 %v710, 7
        %v712 = vsub.s32 0, %v711
        %v713 = vrot.slane %v708, %v712
        %v731 = vunpack.c.l.b16 %v692
        %v732 = vunpack.c.l.b16 %v693
        %v733 = vunpack.c.l.b16 %v694
        %v734 = vunpack.c.l.b16 %v695
        %v735 = vunpack.c.l.b16 %v696
        %v736 = vunpack.c.l.b16 %v697
        %v737 = vunpack.c.l.b16 %v698
        %v738 = vunpack.c.l.b16 %v699
        %v739 = vunpack.c.l.b16 %v700
        %v740 = vunpack.c.l.b16 %v701
        %v741 = vunpack.c.l.b16 %v702
        %v742 = vunpack.c.l.b16 %v703
        %v743 = vunpack.c.l.b16 %v704
        %v744 = vunpack.c.l.b16 %v705
        %v745 = vunpack.c.l.b16 %v706
        %v746 = vunpack.c.l.b16 %v707
        %v747 = vpack.c.b16 %v732, %v731
        %v748 = vpack.c.b16 %v734, %v733
        %v749 = vpack.c.b16 %v736, %v735
        %v750 = vpack.c.b16 %v738, %v737
        %v751 = vpack.c.b16 %v740, %v739
        %v752 = vpack.c.b16 %v742, %v741
        %v753 = vpack.c.b16 %v744, %v743
        %v754 = vpack.c.b16 %v746, %v745
        %763 = vmatprep.subr.bf16.mxu0 0
        %764 = vmatpush1.bf16.msra.mxu0 %v747
        %765 = vmatprep.subr.bf16.mxu0 0
        %766 = vmatpush1.bf16.msra.mxu0 %v748
        %767 = vmatprep.subr.bf16.mxu0 0
        %768 = vmatpush1.bf16.msra.mxu0 %v749
        %769 = vmatprep.subr.bf16.mxu0 0
        %770 = vmatpush1.bf16.msra.mxu0 %v750
        %771 = vmatprep.subr.bf16.mxu0 0
        %772 = vmatpush1.bf16.msra.mxu0 %v751
        %773 = vmatprep.subr.bf16.mxu0 0
        %774 = vmatpush1.bf16.msra.mxu0 %v752
        %775 = vmatprep.subr.bf16.mxu0 0
        %776 = vmatpush1.bf16.msra.mxu0 %v753
        %777 = vmatprep.subr.bf16.mxu0 0
        %778 = vmatpush1.bf16.msra.mxu0 %v754
        %779 = vmatprep.subr.bf16.mxu0 0
        %780 = vmatpush1.bf16.msra.mxu0 0
        %781 = vmatprep.subr.bf16.mxu0 0
        %782 = vmatpush1.bf16.msra.mxu0 0
        %783 = vmatprep.subr.bf16.mxu0 0
        %784 = vmatpush1.bf16.msra.mxu0 0
        %785 = vmatprep.subr.bf16.mxu0 0
        %786 = vmatpush1.bf16.msra.mxu0 0
        %787 = vmatprep.subr.bf16.mxu0 0
        %788 = vmatpush1.bf16.msra.mxu0 0
        %789 = vmatprep.subr.bf16.mxu0 0
        %790 = vmatpush1.bf16.msra.mxu0 0
        %791 = vmatprep.subr.bf16.mxu0 0
        %792 = vmatpush1.bf16.msra.mxu0 0
        %793 = vmatprep.subr.bf16.mxu0 0
        %794 = vmatpush1.bf16.msra.mxu0 0
        %795 = vmatprep.mubr.bf16.mxu0 0
        %796 = vmatmul.mubr.bf16.gmra.mrb[0].mxu0 %v644
        %v797 = vpop.f32.mrb[0].mxu0
        %v798 = vadd.f32 %v713, %v797
        %v799 = vpop.f32.mrb[0].mxu0
        %v800 = vpop.f32.mrb[0].mxu0
        %v801 = vadd.f32 %v713, %v800
        %v802 = vpop.f32.mrb[0].mxu0
        %803 = vdwg.mxu0
        %v804 = vld [vmem:[%s4] sm:$0xf]
        %v805 = vld [vmem:[%s4 + $0x4] sm:$0xf]
        %v806 = vld [vmem:[%s4 + $0x8] sm:$0xf]
        %v807 = vld [vmem:[%s4 + $0xc] sm:$0xf]
        %v808 = vld [vmem:[%s4 + $0x10] sm:$0xf]
        %v809 = vld [vmem:[%s4 + $0x14] sm:$0xf]
        %v810 = vld [vmem:[%s4 + $0x18] sm:$0xf]
        %v811 = vld [vmem:[%s4 + $0x1c] sm:$0xf]
        %v812 = vld [vmem:[%s4 + $0x20] sm:$0xf]
        %v813 = vld [vmem:[%s4 + $0x24] sm:$0xf]
        %v814 = vld [vmem:[%s4 + $0x28] sm:$0xf]
        %v815 = vld [vmem:[%s4 + $0x2c] sm:$0xf]
        %v816 = vld [vmem:[%s4 + $0x30] sm:$0xf]
        %v817 = vld [vmem:[%s4 + $0x34] sm:$0xf]
        %v818 = vld [vmem:[%s4 + $0x38] sm:$0xf]
        %v819 = vld [vmem:[%s4 + $0x3c] sm:$0xf]
        %v820 = vld [vmem:[#allocation5] sm:$0x1]
        %v822 = vlaneseq
        %v823 = vshrl.u32 %v822, 7
        %v824 = vsub.s32 0, %v823
        %v825 = vrot.slane %v820, %v824
        %v843 = vunpack.c.l.b16 %v804
        %v844 = vunpack.c.l.b16 %v805
        %v845 = vunpack.c.l.b16 %v806
        %v846 = vunpack.c.l.b16 %v807
        %v847 = vunpack.c.l.b16 %v808
        %v848 = vunpack.c.l.b16 %v809
        %v849 = vunpack.c.l.b16 %v810
        %v850 = vunpack.c.l.b16 %v811
        %v851 = vunpack.c.l.b16 %v812
        %v852 = vunpack.c.l.b16 %v813
        %v853 = vunpack.c.l.b16 %v814
        %v854 = vunpack.c.l.b16 %v815
        %v855 = vunpack.c.l.b16 %v816
        %v856 = vunpack.c.l.b16 %v817
        %v857 = vunpack.c.l.b16 %v818
        %v858 = vunpack.c.l.b16 %v819
        %v859 = vpack.c.b16 %v844, %v843
        %v860 = vpack.c.b16 %v846, %v845
        %v861 = vpack.c.b16 %v848, %v847
        %v862 = vpack.c.b16 %v850, %v849
        %v863 = vpack.c.b16 %v852, %v851
        %v864 = vpack.c.b16 %v854, %v853
        %v865 = vpack.c.b16 %v856, %v855
        %v866 = vpack.c.b16 %v858, %v857
        %875 = vmatprep.subr.bf16.mxu0 0
        %876 = vmatpush1.bf16.msra.mxu0 %v859
        %877 = vmatprep.subr.bf16.mxu0 0
        %878 = vmatpush1.bf16.msra.mxu0 %v860
        %879 = vmatprep.subr.bf16.mxu0 0
        %880 = vmatpush1.bf16.msra.mxu0 %v861
        %881 = vmatprep.subr.bf16.mxu0 0
        %882 = vmatpush1.bf16.msra.mxu0 %v862
        %883 = vmatprep.subr.bf16.mxu0 0
        %884 = vmatpush1.bf16.msra.mxu0 %v863
        %885 = vmatprep.subr.bf16.mxu0 0
        %886 = vmatpush1.bf16.msra.mxu0 %v864
        %887 = vmatprep.subr.bf16.mxu0 0
        %888 = vmatpush1.bf16.msra.mxu0 %v865
        %889 = vmatprep.subr.bf16.mxu0 0
        %890 = vmatpush1.bf16.msra.mxu0 %v866
        %891 = vmatprep.subr.bf16.mxu0 0
        %892 = vmatpush1.bf16.msra.mxu0 0
        %893 = vmatprep.subr.bf16.mxu0 0
        %894 = vmatpush1.bf16.msra.mxu0 0
        %895 = vmatprep.subr.bf16.mxu0 0
        %896 = vmatpush1.bf16.msra.mxu0 0
        %897 = vmatprep.subr.bf16.mxu0 0
        %898 = vmatpush1.bf16.msra.mxu0 0
        %899 = vmatprep.subr.bf16.mxu0 0
        %900 = vmatpush1.bf16.msra.mxu0 0
        %901 = vmatprep.subr.bf16.mxu0 0
        %902 = vmatpush1.bf16.msra.mxu0 0
        %903 = vmatprep.subr.bf16.mxu0 0
        %904 = vmatpush1.bf16.msra.mxu0 0
        %905 = vmatprep.subr.bf16.mxu0 0
        %906 = vmatpush1.bf16.msra.mxu0 0
        %907 = vmatprep.mubr.bf16.mxu0 0
        %908 = vmatmul.mubr.bf16.gmra.mrb[0].mxu0 %v644
        %v909 = vpop.f32.mrb[0].mxu0
        %v910 = vadd.f32 %v825, %v909
        %v911 = vpop.f32.mrb[0].mxu0
        %v912 = vpop.f32.mrb[0].mxu0
        %v913 = vadd.f32 %v825, %v912
        %v914 = vpop.f32.mrb[0].mxu0
        %915 = vdwg.mxu0
        %v916 = vpack.c.bf16 %v691, %v691
        %v917 = vld [vmem:[#allocation7] sm:$0xf]
        %v918 = vld [vmem:[#allocation7 + $0x4] sm:$0xf]
        %v919 = vld [vmem:[#allocation7 + $0x8] sm:$0xf]
        %v920 = vld [vmem:[#allocation7 + $0xc] sm:$0xf]
        %v921 = vld [vmem:[#allocation7 + $0x10] sm:$0xf]
        %v922 = vld [vmem:[#allocation7 + $0x14] sm:$0xf]
        %v923 = vld [vmem:[#allocation7 + $0x18] sm:$0xf]
        %v924 = vld [vmem:[#allocation7 + $0x1c] sm:$0xf]
        %v925 = vld [vmem:[#allocation7 + $0x20] sm:$0xf]
        %v926 = vld [vmem:[#allocation7 + $0x24] sm:$0xf]
        %v927 = vld [vmem:[#allocation7 + $0x28] sm:$0xf]
        %v928 = vld [vmem:[#allocation7 + $0x2c] sm:$0xf]
        %v929 = vld [vmem:[#allocation7 + $0x30] sm:$0xf]
        %v930 = vld [vmem:[#allocation7 + $0x34] sm:$0xf]
        %v931 = vld [vmem:[#allocation7 + $0x38] sm:$0xf]
        %v932 = vld [vmem:[#allocation7 + $0x3c] sm:$0xf]
        %v933 = vld [vmem:[%s7] sm:$0x1]
        %v950 = vunpack.c.l.b16 %v917
        %v951 = vunpack.c.l.b16 %v918
        %v952 = vunpack.c.l.b16 %v919
        %v953 = vunpack.c.l.b16 %v920
        %v954 = vunpack.c.l.b16 %v921
        %v955 = vunpack.c.l.b16 %v922
        %v956 = vunpack.c.l.b16 %v923
        %v957 = vunpack.c.l.b16 %v924
        %v958 = vunpack.c.l.b16 %v925
        %v959 = vunpack.c.l.b16 %v926
        %v960 = vunpack.c.l.b16 %v927
        %v961 = vunpack.c.l.b16 %v928
        %v962 = vunpack.c.l.b16 %v929
        %v963 = vunpack.c.l.b16 %v930
        %v964 = vunpack.c.l.b16 %v931
        %v965 = vunpack.c.l.b16 %v932
        %v966 = vpack.c.b16 %v951, %v950
        %v967 = vpack.c.b16 %v953, %v952
        %v968 = vpack.c.b16 %v955, %v954
        %v969 = vpack.c.b16 %v957, %v956
        %v970 = vpack.c.b16 %v959, %v958
        %v971 = vpack.c.b16 %v961, %v960
        %v972 = vpack.c.b16 %v963, %v962
        %v973 = vpack.c.b16 %v965, %v964
        %982 = vmatprep.subr.bf16.mxu0 0
        %983 = vmatpush1.bf16.msra.mxu0 %v966
        %984 = vmatprep.subr.bf16.mxu0 0
        %985 = vmatpush1.bf16.msra.mxu0 %v967
        %986 = vmatprep.subr.bf16.mxu0 0
        %987 = vmatpush1.bf16.msra.mxu0 %v968
        %988 = vmatprep.subr.bf16.mxu0 0
        %989 = vmatpush1.bf16.msra.mxu0 %v969
        %990 = vmatprep.subr.bf16.mxu0 0
        %991 = vmatpush1.bf16.msra.mxu0 %v970
        %992 = vmatprep.subr.bf16.mxu0 0
        %993 = vmatpush1.bf16.msra.mxu0 %v971
        %994 = vmatprep.subr.bf16.mxu0 0
        %995 = vmatpush1.bf16.msra.mxu0 %v972
        %996 = vmatprep.subr.bf16.mxu0 0
        %997 = vmatpush1.bf16.msra.mxu0 %v973
        %998 = vmatprep.subr.bf16.mxu0 0
        %999 = vmatpush1.bf16.msra.mxu0 0
        %1000 = vmatprep.subr.bf16.mxu0 0
        %1001 = vmatpush1.bf16.msra.mxu0 0
        %1002 = vmatprep.subr.bf16.mxu0 0
        %1003 = vmatpush1.bf16.msra.mxu0 0
        %1004 = vmatprep.subr.bf16.mxu0 0
        %1005 = vmatpush1.bf16.msra.mxu0 0
        %1006 = vmatprep.subr.bf16.mxu0 0
        %1007 = vmatpush1.bf16.msra.mxu0 0
        %1008 = vmatprep.subr.bf16.mxu0 0
        %1009 = vmatpush1.bf16.msra.mxu0 0
        %1010 = vmatprep.subr.bf16.mxu0 0
        %1011 = vmatpush1.bf16.msra.mxu0 0
        %1012 = vmatprep.subr.bf16.mxu0 0
        %1013 = vmatpush1.bf16.msra.mxu0 0
        %1014 = vmatprep.mubr.bf16.mxu0 0
        %1015 = vmatmul.mubr.bf16.gmra.mrb[0].mxu0 %v916
        %v1016 = vpop.f32.mrb[0].mxu0
        %v1017 = vadd.f32 %v933, %v1016
        %v1018 = vpop.f32.mrb[0].mxu0
        %v1019 = vpop.f32.mrb[0].mxu0
        %v1020 = vpop.f32.mrb[0].mxu0
        %1021 = vdwg.mxu0
        %v1022 = vpack.c.bf16 %v1017, %v1017
        %v1023 = vpack.c.bf16 %v801, %v798
        %1024 = vmatprep.subr.bf16.mxu0 0
        %1025 = vmatpush1.bf16.xpose.msra.mxu0 %v1023
        %1026 = vmatprep.subr.bf16.mxu0 0
        %1027 = vmatpush1.bf16.xpose.msra.mxu0 0
        %1028 = vmatprep.subr.bf16.mxu0 0
        %1029 = vmatpush1.bf16.xpose.msra.mxu0 0
        %1030 = vmatprep.subr.bf16.mxu0 0
        %1031 = vmatpush1.bf16.xpose.msra.mxu0 0
        %1032 = vmatprep.subr.bf16.mxu0 0
        %1033 = vmatpush1.bf16.xpose.msra.mxu0 0
        %1034 = vmatprep.subr.bf16.mxu0 0
        %1035 = vmatpush1.bf16.xpose.msra.mxu0 0
        %1036 = vmatprep.subr.bf16.mxu0 0
        %1037 = vmatpush1.bf16.xpose.msra.mxu0 0
        %1038 = vmatprep.subr.bf16.mxu0 0
        %1039 = vmatpush1.bf16.xpose.msra.mxu0 0
        %1040 = vmatprep.subr.bf16.mxu0 0
        %1041 = vmatpush1.bf16.xpose.msra.mxu0 0
        %1042 = vmatprep.subr.bf16.mxu0 0
        %1043 = vmatpush1.bf16.xpose.msra.mxu0 0
        %1044 = vmatprep.subr.bf16.mxu0 0
        %1045 = vmatpush1.bf16.xpose.msra.mxu0 0
        %1046 = vmatprep.subr.bf16.mxu0 0
        %1047 = vmatpush1.bf16.xpose.msra.mxu0 0
        %1048 = vmatprep.subr.bf16.mxu0 0
        %1049 = vmatpush1.bf16.xpose.msra.mxu0 0
        %1050 = vmatprep.subr.bf16.mxu0 0
        %1051 = vmatpush1.bf16.xpose.msra.mxu0 0
        %1052 = vmatprep.subr.bf16.mxu0 0
        %1053 = vmatpush1.bf16.xpose.msra.mxu0 0
        %1054 = vmatprep.subr.bf16.mxu0 0
        %1055 = vmatpush1.bf16.xpose.msra.mxu0 0
        %1056 = vmatprep.mubr.bf16.mxu0 0
        %1057 = vmatmul.mubr.bf16.gmra.mrb[0].mxu0 %v1022
        %v1058 = vpop.f32.mrb[0].mxu0
        %v1059 = vadd.f32 0.0, %v1058
        %v1060 = vpop.f32.mrb[0].mxu0
        %v1061 = vpop.f32.mrb[0].mxu0
        %v1062 = vpop.f32.mrb[0].mxu0
        %1063 = vdwg.mxu0
        %v1064 = vmul.f32 %v1059, 0.088388346
        %v1065 = vsel %vm634, %v1064, -inf
        %1066 = vmax.xlane.f32.xlu0 %v1065
        %v1067 = vpop.xlane.xlu0 %1066
        %v1068 = vsub.f32 %v1064, %v1067
        %v1069 = vmul.f32 %v1068, 1.442695
        %v1070 = vpow.pop %v1069
        %v1071 = vsel %vm634, %v1070, 0.0
        %1072 = vadd.xlane.f32.xlu0 %v1071
        %v1073 = vpop.xlane.xlu0 %1072
        %v1074 = vrcp.pop %v1073
        %v1075 = vmul.f32 %v1070, %v1074
        %1076 = vxpose.xlu0.b32.start [1/16] %v1075, 128
        %1077 = vxpose.xlu0.b32.cont [2/16] 0.0, 128
        %1078 = vxpose.xlu0.b32.cont [3/16] 0.0, 128
        %1079 = vxpose.xlu0.b32.cont [4/16] 0.0, 128
        %1080 = vxpose.xlu0.b32.cont [5/16] 0.0, 128
        %1081 = vxpose.xlu0.b32.cont [6/16] 0.0, 128
        %1082 = vxpose.xlu0.b32.cont [7/16] 0.0, 128
        %1083 = vxpose.xlu0.b32.cont [8/16] 0.0, 128
        %1084 = vxpose.xlu0.b32.cont [9/16] 0.0, 128
        %1085 = vxpose.xlu0.b32.cont [10/16] 0.0, 128
        %1086 = vxpose.xlu0.b32.cont [11/16] 0.0, 128
        %1087 = vxpose.xlu0.b32.cont [12/16] 0.0, 128
        %1088 = vxpose.xlu0.b32.cont [13/16] 0.0, 128
        %1089 = vxpose.xlu0.b32.cont [14/16] 0.0, 128
        %1090 = vxpose.xlu0.b32.cont [15/16] 0.0, 128
        %1091 = vxpose.xlu0.b32.end [16/16] 0.0, 128
        %v1092 = vpop.trf.xlu0
        %v1093 = vpop.trf.xlu0
        %v1094 = vpop.trf.xlu0
        %v1095 = vpop.trf.xlu0
        %v1096 = vpop.trf.xlu0
        %v1097 = vpop.trf.xlu0
        %v1098 = vpop.trf.xlu0
        %v1099 = vpop.trf.xlu0
        %v1100 = vpop.trf.xlu0
        %v1101 = vpop.trf.xlu0
        %v1102 = vpop.trf.xlu0
        %v1103 = vpop.trf.xlu0
        %v1104 = vpop.trf.xlu0
        %v1105 = vpop.trf.xlu0
        %v1106 = vpop.trf.xlu0
        %v1107 = vpop.trf.xlu0
        %v1108 = vunpack.c.l.bf16 %v631
        %v1109 = vunpack.c.l.bf16 %v632
        %1111 = vset.pattern.permute.xlu0 0
        %1112 = vperm.xlu0 %1111, %v1092
        %v1113 = vpop.permute.xlu0 %1112
        %1116 = vset.pattern.permute.xlu0 0
        %1117 = vperm.xlu0 %1116, %v1093
        %v1118 = vpop.permute.xlu0 %1117
        %v1120 = vmul.f32 %v1113, %v910
        %v1121 = vmul.f32 %v1118, %v913
        %v1122 = vadd.f32 %v1108, %v1120
        %v1123 = vadd.f32 %v1109, %v1121
        %v1124 = vlaneseq
        %v1125 = vand.u32 %v1124, 127
        %vm1126 = vcmp.gt.s32.totalorder %v1125, 0
        %v1127 = vsel %vm1126, 1, 0
        %v1128 = vcvt.s32.f32 %v1127
        %vm1129 = vcmp.lt.s32.totalorder %v1125, 127
        %v1130 = vsel %vm1129, 1, 0
        %v1131 = vcvt.s32.f32 %v1130
        %v1132 = vpack.c.bf16 %v1123, %v1122
        %1133 = vrot.lane.b32.xlu0 %v1122, 1
        %v1134 = vpop.permute.xlu0 %1133
        %1135 = vrot.lane.b32.xlu0 %v1123, 1
        %v1136 = vpop.permute.xlu0 %1135
        %v1137 = vmul.f32 %v1134, %v1128
        %v1138 = vmul.f32 %v1136, %v1128
        %v1139 = vpack.c.bf16 %v1138, %v1137
        %1140 = vrot.lane.b32.xlu0 %v1122, 127
        %v1141 = vpop.permute.xlu0 %1140
        %1142 = vrot.lane.b32.xlu0 %v1123, 127
        %v1143 = vpop.permute.xlu0 %1142
        %v1144 = vmul.f32 %v1141, %v1131
        %v1145 = vmul.f32 %v1143, %v1131
        %v1146 = vpack.c.bf16 %v1145, %v1144
        %v1147 = vld [vmem:[%s8] sm:$0xf]
        %v1148 = vld [vmem:[%s8 + $0x4] sm:$0xf]
        %v1149 = vld [vmem:[%s8 + $0x8] sm:$0xf]
        %v1150 = vld [vmem:[%s8 + $0xc] sm:$0xf]
        %s1151 = scalar_lea.vmem %s8, 16
        %v1152 = vld [vmem:[%s1151] sm:$0xf]
        %v1153 = vld [vmem:[%s1151 + $0x4] sm:$0xf]
        %v1154 = vld [vmem:[%s1151 + $0x8] sm:$0xf]
        %v1155 = vld [vmem:[%s1151 + $0xc] sm:$0xf]
        %v1160 = vunpack.c.l.b16 %v1152
        %v1161 = vunpack.c.l.b16 %v1153
        %v1162 = vunpack.c.l.b16 %v1154
        %v1163 = vunpack.c.l.b16 %v1155
        %v1164 = vpack.c.b16 %v1161, %v1160
        %v1165 = vpack.c.b16 %v1163, %v1162
        %v1167 = vsel %vm646, %v1164, 0
        %v1170 = vsel %vm646, %v1165, 0
        %1172 = vmatprep.subr.bf16.mxu0 0
        %1173 = vmatpush1.bf16.msra.mxu0 %v1132
        %1174 = vmatprep.subr.bf16.mxu0 0
        %1175 = vmatpush1.bf16.msra.mxu0 0
        %1176 = vmatprep.subr.bf16.mxu0 0
        %1177 = vmatpush1.bf16.msra.mxu0 0
        %1178 = vmatprep.subr.bf16.mxu0 0
        %1179 = vmatpush1.bf16.msra.mxu0 0
        %1180 = vmatprep.subr.bf16.mxu0 0
        %1181 = vmatpush1.bf16.msra.mxu0 0
        %1182 = vmatprep.subr.bf16.mxu0 0
        %1183 = vmatpush1.bf16.msra.mxu0 0
        %1184 = vmatprep.subr.bf16.mxu0 0
        %1185 = vmatpush1.bf16.msra.mxu0 0
        %1186 = vmatprep.subr.bf16.mxu0 0
        %1187 = vmatpush1.bf16.msra.mxu0 0
        %1188 = vmatprep.subr.bf16.mxu0 0
        %1189 = vmatpush1.bf16.msra.mxu0 0
        %1190 = vmatprep.subr.bf16.mxu0 0
        %1191 = vmatpush1.bf16.msra.mxu0 0
        %1192 = vmatprep.subr.bf16.mxu0 0
        %1193 = vmatpush1.bf16.msra.mxu0 0
        %1194 = vmatprep.subr.bf16.mxu0 0
        %1195 = vmatpush1.bf16.msra.mxu0 0
        %1196 = vmatprep.subr.bf16.mxu0 0
        %1197 = vmatpush1.bf16.msra.mxu0 0
        %1198 = vmatprep.subr.bf16.mxu0 0
        %1199 = vmatpush1.bf16.msra.mxu0 0
        %1200 = vmatprep.subr.bf16.mxu0 0
        %1201 = vmatpush1.bf16.msra.mxu0 0
        %1202 = vmatprep.subr.bf16.mxu0 0
        %1203 = vmatpush1.bf16.msra.mxu0 0
        %1204 = vmatprep.mubr.bf16.mxu0 0
        %1205 = vmatmul.mubr.bf16.gmra.mrb[0].mxu0 %v1167
        %v1206 = vpop.f32.mrb[0].mxu0
        %v1207 = vadd.f32 0.0, %v1206
        %v1208 = vpop.f32.mrb[0].mxu0
        %v1209 = vpop.f32.mrb[0].mxu0
        %v1210 = vadd.f32 0.0, %v1209
        %v1211 = vpop.f32.mrb[0].mxu0
        %1212 = vmatprep.mubr.bf16.mxu0 0
        %1213 = vmatmul.mubr.bf16.gmra.mrb[0].mxu0 %v1170
        %v1214 = vpop.f32.mrb[0].mxu0
        %v1215 = vadd.f32 0.0, %v1214
        %v1216 = vpop.f32.mrb[0].mxu0
        %v1217 = vpop.f32.mrb[0].mxu0
        %v1218 = vadd.f32 0.0, %v1217
        %v1219 = vpop.f32.mrb[0].mxu0
        %1220 = vdwg.mxu0
        %v1225 = vunpack.c.l.b16 %v1147
        %v1226 = vunpack.c.l.b16 %v1148
        %v1227 = vunpack.c.l.b16 %v1149
        %v1228 = vunpack.c.l.b16 %v1150
        %v1229 = vpack.c.b16 %v1226, %v1225
        %v1230 = vpack.c.b16 %v1228, %v1227
        %v1232 = vsel %vm646, %v1229, 0
        %v1235 = vsel %vm646, %v1230, 0
        %1237 = vmatprep.subr.bf16.mxu0 0
        %1238 = vmatpush1.bf16.msra.mxu0 %v1139
        %1239 = vmatprep.subr.bf16.mxu0 0
        %1240 = vmatpush1.bf16.msra.mxu0 0
        %1241 = vmatprep.subr.bf16.mxu0 0
        %1242 = vmatpush1.bf16.msra.mxu0 0
        %1243 = vmatprep.subr.bf16.mxu0 0
        %1244 = vmatpush1.bf16.msra.mxu0 0
        %1245 = vmatprep.subr.bf16.mxu0 0
        %1246 = vmatpush1.bf16.msra.mxu0 0
        %1247 = vmatprep.subr.bf16.mxu0 0
        %1248 = vmatpush1.bf16.msra.mxu0 0
        %1249 = vmatprep.subr.bf16.mxu0 0
        %1250 = vmatpush1.bf16.msra.mxu0 0
        %1251 = vmatprep.subr.bf16.mxu0 0
        %1252 = vmatpush1.bf16.msra.mxu0 0
        %1253 = vmatprep.subr.bf16.mxu0 0
        %1254 = vmatpush1.bf16.msra.mxu0 0
        %1255 = vmatprep.subr.bf16.mxu0 0
        %1256 = vmatpush1.bf16.msra.mxu0 0
        %1257 = vmatprep.subr.bf16.mxu0 0
        %1258 = vmatpush1.bf16.msra.mxu0 0
        %1259 = vmatprep.subr.bf16.mxu0 0
        %1260 = vmatpush1.bf16.msra.mxu0 0
        %1261 = vmatprep.subr.bf16.mxu0 0
        %1262 = vmatpush1.bf16.msra.mxu0 0
        %1263 = vmatprep.subr.bf16.mxu0 0
        %1264 = vmatpush1.bf16.msra.mxu0 0
        %1265 = vmatprep.subr.bf16.mxu0 0
        %1266 = vmatpush1.bf16.msra.mxu0 0
        %1267 = vmatprep.subr.bf16.mxu0 0
        %1268 = vmatpush1.bf16.msra.mxu0 0
        %1269 = vmatprep.mubr.bf16.mxu0 0
        %1270 = vmatmul.mubr.bf16.gmra.mrb[0].mxu0 %v1232
        %v1271 = vpop.f32.mrb[0].mxu0
        %v1272 = vadd.f32 %v1207, %v1271
        %v1273 = vpop.f32.mrb[0].mxu0
        %v1274 = vpop.f32.mrb[0].mxu0
        %v1275 = vadd.f32 %v1210, %v1274
        %v1276 = vpop.f32.mrb[0].mxu0
        %1277 = vmatprep.mubr.bf16.mxu0 0
        %1278 = vmatmul.mubr.bf16.gmra.mrb[0].mxu0 %v1235
        %v1279 = vpop.f32.mrb[0].mxu0
        %v1280 = vadd.f32 %v1215, %v1279
        %v1281 = vpop.f32.mrb[0].mxu0
        %v1282 = vpop.f32.mrb[0].mxu0
        %v1283 = vadd.f32 %v1218, %v1282
        %v1284 = vpop.f32.mrb[0].mxu0
        %1285 = vdwg.mxu0
        %s1286 = scalar_lea.vmem %s8, 32
        %v1287 = vld [vmem:[%s1286] sm:$0xf]
        %v1288 = vld [vmem:[%s1286 + $0x4] sm:$0xf]
        %v1289 = vld [vmem:[%s1286 + $0x8] sm:$0xf]
        %v1290 = vld [vmem:[%s1286 + $0xc] sm:$0xf]
        %v1295 = vunpack.c.l.b16 %v1287
        %v1296 = vunpack.c.l.b16 %v1288
        %v1297 = vunpack.c.l.b16 %v1289
        %v1298 = vunpack.c.l.b16 %v1290
        %v1299 = vpack.c.b16 %v1296, %v1295
        %v1300 = vpack.c.b16 %v1298, %v1297
        %v1302 = vsel %vm646, %v1299, 0
        %v1305 = vsel %vm646, %v1300, 0
        %1307 = vmatprep.subr.bf16.mxu0 0
        %1308 = vmatpush1.bf16.msra.mxu0 %v1146
        %1309 = vmatprep.subr.bf16.mxu0 0
        %1310 = vmatpush1.bf16.msra.mxu0 0
        %1311 = vmatprep.subr.bf16.mxu0 0
        %1312 = vmatpush1.bf16.msra.mxu0 0
        %1313 = vmatprep.subr.bf16.mxu0 0
        %1314 = vmatpush1.bf16.msra.mxu0 0
        %1315 = vmatprep.subr.bf16.mxu0 0
        %1316 = vmatpush1.bf16.msra.mxu0 0
        %1317 = vmatprep.subr.bf16.mxu0 0
        %1318 = vmatpush1.bf16.msra.mxu0 0
        %1319 = vmatprep.subr.bf16.mxu0 0
        %1320 = vmatpush1.bf16.msra.mxu0 0
        %1321 = vmatprep.subr.bf16.mxu0 0
        %1322 = vmatpush1.bf16.msra.mxu0 0
        %1323 = vmatprep.subr.bf16.mxu0 0
        %1324 = vmatpush1.bf16.msra.mxu0 0
        %1325 = vmatprep.subr.bf16.mxu0 0
        %1326 = vmatpush1.bf16.msra.mxu0 0
        %1327 = vmatprep.subr.bf16.mxu0 0
        %1328 = vmatpush1.bf16.msra.mxu0 0
        %1329 = vmatprep.subr.bf16.mxu0 0
        %1330 = vmatpush1.bf16.msra.mxu0 0
        %1331 = vmatprep.subr.bf16.mxu0 0
        %1332 = vmatpush1.bf16.msra.mxu0 0
        %1333 = vmatprep.subr.bf16.mxu0 0
        %1334 = vmatpush1.bf16.msra.mxu0 0
        %1335 = vmatprep.subr.bf16.mxu0 0
        %1336 = vmatpush1.bf16.msra.mxu0 0
        %1337 = vmatprep.subr.bf16.mxu0 0
        %1338 = vmatpush1.bf16.msra.mxu0 0
        %1339 = vmatprep.mubr.bf16.mxu0 0
        %1340 = vmatmul.mubr.bf16.gmra.mrb[0].mxu0 %v1302
        %v1341 = vpop.f32.mrb[0].mxu0
        %v1342 = vadd.f32 0.0, %v1341
        %v1343 = vpop.f32.mrb[0].mxu0
        %v1344 = vpop.f32.mrb[0].mxu0
        %v1345 = vadd.f32 0.0, %v1344
        %v1346 = vpop.f32.mrb[0].mxu0
        %1347 = vmatprep.mubr.bf16.mxu0 0
        %1348 = vmatmul.mubr.bf16.gmra.mrb[0].mxu0 %v1305
        %v1349 = vpop.f32.mrb[0].mxu0
        %v1350 = vadd.f32 0.0, %v1349
        %v1351 = vpop.f32.mrb[0].mxu0
        %v1352 = vpop.f32.mrb[0].mxu0
        %v1353 = vadd.f32 0.0, %v1352
        %v1354 = vpop.f32.mrb[0].mxu0
        %1355 = vdwg.mxu0
        %v1356 = vadd.f32 %v1272, %v1342
        %v1357 = vadd.f32 %v1275, %v1345
        %v1358 = vadd.f32 %v1280, %v1350
        %v1359 = vadd.f32 %v1283, %v1353
        %v1360 = vld [vmem:[%s9] sm:$0x1]
        %1361 = vxpose.xlu0.b32.start [1/16] %v1360, 128
        %1362 = vxpose.xlu0.b32.cont [2/16] 0.0, 128
        %1363 = vxpose.xlu0.b32.cont [3/16] 0.0, 128
        %1364 = vxpose.xlu0.b32.cont [4/16] 0.0, 128
        %1365 = vxpose.xlu0.b32.cont [5/16] 0.0, 128
        %1366 = vxpose.xlu0.b32.cont [6/16] 0.0, 128
        %1367 = vxpose.xlu0.b32.cont [7/16] 0.0, 128
        %1368 = vxpose.xlu0.b32.cont [8/16] 0.0, 128
        %1369 = vxpose.xlu0.b32.cont [9/16] 0.0, 128
        %1370 = vxpose.xlu0.b32.cont [10/16] 0.0, 128
        %1371 = vxpose.xlu0.b32.cont [11/16] 0.0, 128
        %1372 = vxpose.xlu0.b32.cont [12/16] 0.0, 128
        %1373 = vxpose.xlu0.b32.cont [13/16] 0.0, 128
        %1374 = vxpose.xlu0.b32.cont [14/16] 0.0, 128
        %1375 = vxpose.xlu0.b32.cont [15/16] 0.0, 128
        %1376 = vxpose.xlu0.b32.end [16/16] 0.0, 128
        %v1377 = vpop.trf.xlu0
        %v1378 = vpop.trf.xlu0
        %v1379 = vpop.trf.xlu0
        %v1380 = vpop.trf.xlu0
        %v1381 = vpop.trf.xlu0
        %v1382 = vpop.trf.xlu0
        %v1383 = vpop.trf.xlu0
        %v1384 = vpop.trf.xlu0
        %v1385 = vpop.trf.xlu0
        %v1386 = vpop.trf.xlu0
        %v1387 = vpop.trf.xlu0
        %v1388 = vpop.trf.xlu0
        %v1389 = vpop.trf.xlu0
        %v1390 = vpop.trf.xlu0
        %v1391 = vpop.trf.xlu0
        %v1392 = vpop.trf.xlu0
        %1394 = vset.pattern.permute.xlu0 0
        %1395 = vperm.xlu0 %1394, %v1377
        %v1396 = vpop.permute.xlu0 %1395
        %1399 = vset.pattern.permute.xlu0 0
        %1400 = vperm.xlu0 %1399, %v1378
        %v1401 = vpop.permute.xlu0 %1400
        %1404 = vset.pattern.permute.xlu0 0
        %1405 = vperm.xlu0 %1404, %v1379
        %v1406 = vpop.permute.xlu0 %1405
        %1409 = vset.pattern.permute.xlu0 0
        %1410 = vperm.xlu0 %1409, %v1380
        %v1411 = vpop.permute.xlu0 %1410
        %v1413 = vadd.f32 %v1356, %v1396
        %v1414 = vadd.f32 %v1357, %v1401
        %v1415 = vadd.f32 %v1358, %v1406
        %v1416 = vadd.f32 %v1359, %v1411
        %v1417 = vmax.f32 %v1413, 0.0
        %v1418 = vmax.f32 %v1414, 0.0
        %v1419 = vmax.f32 %v1415, 0.0
        %v1420 = vmax.f32 %v1416, 0.0
        %v1421 = vld [vmem:[%s10] sm:$0xf]
        %v1422 = vld [vmem:[%s10 + $0x4] sm:$0xf]
        %v1423 = vpack.c.bf16 %v1418, %v1417
        %v1424 = vpack.c.bf16 %v1420, %v1419
        %v1425 = vld [vmem:[%s11] sm:$0x1]
        %1426 = vxpose.xlu0.b32.start [1/16] %v1425, 128
        %1427 = vxpose.xlu0.b32.cont [2/16] 0.0, 128
        %1428 = vxpose.xlu0.b32.cont [3/16] 0.0, 128
        %1429 = vxpose.xlu0.b32.cont [4/16] 0.0, 128
        %1430 = vxpose.xlu0.b32.cont [5/16] 0.0, 128
        %1431 = vxpose.xlu0.b32.cont [6/16] 0.0, 128
        %1432 = vxpose.xlu0.b32.cont [7/16] 0.0, 128
        %1433 = vxpose.xlu0.b32.cont [8/16] 0.0, 128
        %1434 = vxpose.xlu0.b32.cont [9/16] 0.0, 128
        %1435 = vxpose.xlu0.b32.cont [10/16] 0.0, 128
        %1436 = vxpose.xlu0.b32.cont [11/16] 0.0, 128
        %1437 = vxpose.xlu0.b32.cont [12/16] 0.0, 128
        %1438 = vxpose.xlu0.b32.cont [13/16] 0.0, 128
        %1439 = vxpose.xlu0.b32.cont [14/16] 0.0, 128
        %1440 = vxpose.xlu0.b32.cont [15/16] 0.0, 128
        %1441 = vxpose.xlu0.b32.end [16/16] 0.0, 128
        %v1442 = vpop.trf.xlu0
        %v1443 = vpop.trf.xlu0
        %v1444 = vpop.trf.xlu0
        %v1445 = vpop.trf.xlu0
        %v1446 = vpop.trf.xlu0
        %v1447 = vpop.trf.xlu0
        %v1448 = vpop.trf.xlu0
        %v1449 = vpop.trf.xlu0
        %v1450 = vpop.trf.xlu0
        %v1451 = vpop.trf.xlu0
        %v1452 = vpop.trf.xlu0
        %v1453 = vpop.trf.xlu0
        %v1454 = vpop.trf.xlu0
        %v1455 = vpop.trf.xlu0
        %v1456 = vpop.trf.xlu0
        %v1457 = vpop.trf.xlu0
        %1459 = vset.pattern.permute.xlu0 0
        %1460 = vperm.xlu0 %1459, %v1442
        %v1461 = vpop.permute.xlu0 %1460
        %1464 = vset.pattern.permute.xlu0 0
        %1465 = vperm.xlu0 %1464, %v1443
        %v1466 = vpop.permute.xlu0 %1465
        %v1470 = vunpack.c.l.b16 %v1421
        %v1471 = vunpack.c.l.b16 %v1422
        %v1472 = vpack.c.b16 %v1471, %v1470
        %vm1473 = vcmask 261120
        %v1475 = vsel %vm1473, %v1472, 0
        %1477 = vmatprep.subr.bf16.mxu0 0
        %1478 = vmatpush1.bf16.msra.mxu0 %v1423
        %1479 = vmatprep.subr.bf16.mxu0 0
        %1480 = vmatpush1.bf16.msra.mxu0 %v1424
        %1481 = vmatprep.subr.bf16.mxu0 0
        %1482 = vmatpush1.bf16.msra.mxu0 0
        %1483 = vmatprep.subr.bf16.mxu0 0
        %1484 = vmatpush1.bf16.msra.mxu0 0
        %1485 = vmatprep.subr.bf16.mxu0 0
        %1486 = vmatpush1.bf16.msra.mxu0 0
        %1487 = vmatprep.subr.bf16.mxu0 0
        %1488 = vmatpush1.bf16.msra.mxu0 0
        %1489 = vmatprep.subr.bf16.mxu0 0
        %1490 = vmatpush1.bf16.msra.mxu0 0
        %1491 = vmatprep.subr.bf16.mxu0 0
        %1492 = vmatpush1.bf16.msra.mxu0 0
        %1493 = vmatprep.subr.bf16.mxu0 0
        %1494 = vmatpush1.bf16.msra.mxu0 0
        %1495 = vmatprep.subr.bf16.mxu0 0
        %1496 = vmatpush1.bf16.msra.mxu0 0
        %1497 = vmatprep.subr.bf16.mxu0 0
        %1498 = vmatpush1.bf16.msra.mxu0 0
        %1499 = vmatprep.subr.bf16.mxu0 0
        %1500 = vmatpush1.bf16.msra.mxu0 0
        %1501 = vmatprep.subr.bf16.mxu0 0
        %1502 = vmatpush1.bf16.msra.mxu0 0
        %1503 = vmatprep.subr.bf16.mxu0 0
        %1504 = vmatpush1.bf16.msra.mxu0 0
        %1505 = vmatprep.subr.bf16.mxu0 0
        %1506 = vmatpush1.bf16.msra.mxu0 0
        %1507 = vmatprep.subr.bf16.mxu0 0
        %1508 = vmatpush1.bf16.msra.mxu0 0
        %1509 = vmatprep.mubr.bf16.mxu0 0
        %1510 = vmatmul.mubr.bf16.gmra.mrb[0].mxu0 %v1475
        %v1511 = vpop.f32.mrb[0].mxu0
        %v1512 = vadd.f32 %v1461, %v1511
        %v1513 = vpop.f32.mrb[0].mxu0
        %v1514 = vpop.f32.mrb[0].mxu0
        %v1515 = vadd.f32 %v1466, %v1514
        %v1516 = vpop.f32.mrb[0].mxu0
        %1517 = vdwg.mxu0
        %v1518 = vadd.f32 %v1122, %v1512
        %v1519 = vadd.f32 %v1123, %v1515
        %1520 = vadd.xlane.f32.xlu0 %v1518
        %v1521 = vpop.xlane.xlu0 %1520
        %1522 = vadd.xlane.f32.xlu0 %v1519
        %v1523 = vpop.xlane.xlu0 %1522
        %v1524 = vrcp.pop 128.0
        %v1525 = vmul.f32 %v1521, %v1524
        %v1526 = vmul.f32 %v1523, %v1524
        %v1527 = vsub.f32 %v1518, %v1525
        %v1528 = vsub.f32 %v1519, %v1526
        %v1529 = vmul.f32 %v1527, %v1527
        %v1530 = vmul.f32 %v1528, %v1528
        %1531 = vadd.xlane.f32.xlu0 %v1529
        %v1532 = vpop.xlane.xlu0 %1531
        %1533 = vadd.xlane.f32.xlu0 %v1530
        %v1534 = vpop.xlane.xlu0 %1533
        %v1535 = vmul.f32 %v1532, %v1524
        %v1536 = vmul.f32 %v1534, %v1524
        %v1537 = vadd.f32 %v1535, 1e-05
        %v1538 = vadd.f32 %v1536, 1e-05
        %v1539 = vrsqrt.pop %v1537
        %v1540 = vrsqrt.pop %v1538
        %v1541 = vmul.f32 %v1527, %v1539
        %v1542 = vmul.f32 %v1528, %v1540
        %v1543 = vld [vmem:[%s12] sm:$0x1]
        %v1545 = vlaneseq
        %v1546 = vshrl.u32 %v1545, 7
        %v1547 = vsub.s32 0, %v1546
        %v1548 = vrot.slane %v1543, %v1547
        %v1550 = vmul.f32 %v1541, %v1548
        %v1551 = vmul.f32 %v1542, %v1548
        %v1552 = vld [vmem:[%s13] sm:$0x1]
        %v1554 = vlaneseq
        %v1555 = vshrl.u32 %v1554, 7
        %v1556 = vsub.s32 0, %v1555
        %v1557 = vrot.slane %v1552, %v1556
        %v1559 = vadd.f32 %v1550, %v1557
        %v1560 = vadd.f32 %v1551, %v1557
        %v1561 = vpack.c.bf16 %v1560, %v1559
        %1562 = vrot.lane.b32.xlu0 %v1559, 1
        %v1563 = vpop.permute.xlu0 %1562
        %1564 = vrot.lane.b32.xlu0 %v1560, 1
        %v1565 = vpop.permute.xlu0 %1564
        %v1566 = vmul.f32 %v1563, %v1128
        %v1567 = vmul.f32 %v1565, %v1128
        %v1568 = vpack.c.bf16 %v1567, %v1566
        %1569 = vrot.lane.b32.xlu0 %v1559, 127
        %v1570 = vpop.permute.xlu0 %1569
        %1571 = vrot.lane.b32.xlu0 %v1560, 127
        %v1572 = vpop.permute.xlu0 %1571
        %v1573 = vmul.f32 %v1570, %v1131
        %v1574 = vmul.f32 %v1572, %v1131
        %v1575 = vpack.c.bf16 %v1574, %v1573
        %s1576 = scalar_lea.vmem %s8, 48
        %v1577 = vld [vmem:[%s1576] sm:$0xf]
        %v1578 = vld [vmem:[%s1576 + $0x4] sm:$0xf]
        %v1579 = vld [vmem:[%s1576 + $0x8] sm:$0xf]
        %v1580 = vld [vmem:[%s1576 + $0xc] sm:$0xf]
        %s1581 = scalar_lea.vmem %s8, 64
        %v1582 = vld [vmem:[%s1581] sm:$0xf]
        %v1583 = vld [vmem:[%s1581 + $0x4] sm:$0xf]
        %v1584 = vld [vmem:[%s1581 + $0x8] sm:$0xf]
        %v1585 = vld [vmem:[%s1581 + $0xc] sm:$0xf]
        %v1590 = vunpack.c.l.b16 %v1582
        %v1591 = vunpack.c.l.b16 %v1583
        %v1592 = vunpack.c.l.b16 %v1584
        %v1593 = vunpack.c.l.b16 %v1585
        %v1594 = vpack.c.b16 %v1591, %v1590
        %v1595 = vpack.c.b16 %v1593, %v1592
        %v1597 = vsel %vm646, %v1594, 0
        %v1600 = vsel %vm646, %v1595, 0
        %1602 = vmatprep.subr.bf16.mxu0 0
        %1603 = vmatpush1.bf16.msra.mxu0 %v1561
        %1604 = vmatprep.subr.bf16.mxu0 0
        %1605 = vmatpush1.bf16.msra.mxu0 0
        %1606 = vmatprep.subr.bf16.mxu0 0
        %1607 = vmatpush1.bf16.msra.mxu0 0
        %1608 = vmatprep.subr.bf16.mxu0 0
        %1609 = vmatpush1.bf16.msra.mxu0 0
        %1610 = vmatprep.subr.bf16.mxu0 0
        %1611 = vmatpush1.bf16.msra.mxu0 0
        %1612 = vmatprep.subr.bf16.mxu0 0
        %1613 = vmatpush1.bf16.msra.mxu0 0
        %1614 = vmatprep.subr.bf16.mxu0 0
        %1615 = vmatpush1.bf16.msra.mxu0 0
        %1616 = vmatprep.subr.bf16.mxu0 0
        %1617 = vmatpush1.bf16.msra.mxu0 0
        %1618 = vmatprep.subr.bf16.mxu0 0
        %1619 = vmatpush1.bf16.msra.mxu0 0
        %1620 = vmatprep.subr.bf16.mxu0 0
        %1621 = vmatpush1.bf16.msra.mxu0 0
        %1622 = vmatprep.subr.bf16.mxu0 0
        %1623 = vmatpush1.bf16.msra.mxu0 0
        %1624 = vmatprep.subr.bf16.mxu0 0
        %1625 = vmatpush1.bf16.msra.mxu0 0
        %1626 = vmatprep.subr.bf16.mxu0 0
        %1627 = vmatpush1.bf16.msra.mxu0 0
        %1628 = vmatprep.subr.bf16.mxu0 0
        %1629 = vmatpush1.bf16.msra.mxu0 0
        %1630 = vmatprep.subr.bf16.mxu0 0
        %1631 = vmatpush1.bf16.msra.mxu0 0
        %1632 = vmatprep.subr.bf16.mxu0 0
        %1633 = vmatpush1.bf16.msra.mxu0 0
        %1634 = vmatprep.mubr.bf16.mxu0 0
        %1635 = vmatmul.mubr.bf16.gmra.mrb[0].mxu0 %v1597
        %v1636 = vpop.f32.mrb[0].mxu0
        %v1637 = vadd.f32 0.0, %v1636
        %v1638 = vpop.f32.mrb[0].mxu0
        %v1639 = vpop.f32.mrb[0].mxu0
        %v1640 = vadd.f32 0.0, %v1639
        %v1641 = vpop.f32.mrb[0].mxu0
        %1642 = vmatprep.mubr.bf16.mxu0 0
        %1643 = vmatmul.mubr.bf16.gmra.mrb[0].mxu0 %v1600
        %v1644 = vpop.f32.mrb[0].mxu0
        %v1645 = vadd.f32 0.0, %v1644
        %v1646 = vpop.f32.mrb[0].mxu0
        %v1647 = vpop.f32.mrb[0].mxu0
        %v1648 = vadd.f32 0.0, %v1647
        %v1649 = vpop.f32.mrb[0].mxu0
        %1650 = vdwg.mxu0
        %v1655 = vunpack.c.l.b16 %v1577
        %v1656 = vunpack.c.l.b16 %v1578
        %v1657 = vunpack.c.l.b16 %v1579
        %v1658 = vunpack.c.l.b16 %v1580
        %v1659 = vpack.c.b16 %v1656, %v1655
        %v1660 = vpack.c.b16 %v1658, %v1657
        %v1662 = vsel %vm646, %v1659, 0
        %v1665 = vsel %vm646, %v1660, 0
        %1667 = vmatprep.subr.bf16.mxu0 0
        %1668 = vmatpush1.bf16.msra.mxu0 %v1568
        %1669 = vmatprep.subr.bf16.mxu0 0
        %1670 = vmatpush1.bf16.msra.mxu0 0
        %1671 = vmatprep.subr.bf16.mxu0 0
        %1672 = vmatpush1.bf16.msra.mxu0 0
        %1673 = vmatprep.subr.bf16.mxu0 0
        %1674 = vmatpush1.bf16.msra.mxu0 0
        %1675 = vmatprep.subr.bf16.mxu0 0
        %1676 = vmatpush1.bf16.msra.mxu0 0
        %1677 = vmatprep.subr.bf16.mxu0 0
        %1678 = vmatpush1.bf16.msra.mxu0 0
        %1679 = vmatprep.subr.bf16.mxu0 0
        %1680 = vmatpush1.bf16.msra.mxu0 0
        %1681 = vmatprep.subr.bf16.mxu0 0
        %1682 = vmatpush1.bf16.msra.mxu0 0
        %1683 = vmatprep.subr.bf16.mxu0 0
        %1684 = vmatpush1.bf16.msra.mxu0 0
        %1685 = vmatprep.subr.bf16.mxu0 0
        %1686 = vmatpush1.bf16.msra.mxu0 0
        %1687 = vmatprep.subr.bf16.mxu0 0
        %1688 = vmatpush1.bf16.msra.mxu0 0
        %1689 = vmatprep.subr.bf16.mxu0 0
        %1690 = vmatpush1.bf16.msra.mxu0 0
        %1691 = vmatprep.subr.bf16.mxu0 0
        %1692 = vmatpush1.bf16.msra.mxu0 0
        %1693 = vmatprep.subr.bf16.mxu0 0
        %1694 = vmatpush1.bf16.msra.mxu0 0
        %1695 = vmatprep.subr.bf16.mxu0 0
        %1696 = vmatpush1.bf16.msra.mxu0 0
        %1697 = vmatprep.subr.bf16.mxu0 0
        %1698 = vmatpush1.bf16.msra.mxu0 0
        %1699 = vmatprep.mubr.bf16.mxu0 0
        %1700 = vmatmul.mubr.bf16.gmra.mrb[0].mxu0 %v1662
        %v1701 = vpop.f32.mrb[0].mxu0
        %v1702 = vadd.f32 %v1637, %v1701
        %v1703 = vpop.f32.mrb[0].mxu0
        %v1704 = vpop.f32.mrb[0].mxu0
        %v1705 = vadd.f32 %v1640, %v1704
        %v1706 = vpop.f32.mrb[0].mxu0
        %1707 = vmatprep.mubr.bf16.mxu0 0
        %1708 = vmatmul.mubr.bf16.gmra.mrb[0].mxu0 %v1665
        %v1709 = vpop.f32.mrb[0].mxu0
        %v1710 = vadd.f32 %v1645, %v1709
        %v1711 = vpop.f32.mrb[0].mxu0
        %v1712 = vpop.f32.mrb[0].mxu0
        %v1713 = vadd.f32 %v1648, %v1712
        %v1714 = vpop.f32.mrb[0].mxu0
        %1715 = vdwg.mxu0
        %s1716 = scalar_lea.vmem %s8, 80
        %v1717 = vld [vmem:[%s1716] sm:$0xf]
        %v1718 = vld [vmem:[%s1716 + $0x4] sm:$0xf]
        %v1719 = vld [vmem:[%s1716 + $0x8] sm:$0xf]
        %v1720 = vld [vmem:[%s1716 + $0xc] sm:$0xf]
        %v1725 = vunpack.c.l.b16 %v1717
        %v1726 = vunpack.c.l.b16 %v1718
        %v1727 = vunpack.c.l.b16 %v1719
        %v1728 = vunpack.c.l.b16 %v1720
        %v1729 = vpack.c.b16 %v1726, %v1725
        %v1730 = vpack.c.b16 %v1728, %v1727
        %v1732 = vsel %vm646, %v1729, 0
        %v1735 = vsel %vm646, %v1730, 0
        %1737 = vmatprep.subr.bf16.mxu0 0
        %1738 = vmatpush1.bf16.msra.mxu0 %v1575
        %1739 = vmatprep.subr.bf16.mxu0 0
        %1740 = vmatpush1.bf16.msra.mxu0 0
        %1741 = vmatprep.subr.bf16.mxu0 0
        %1742 = vmatpush1.bf16.msra.mxu0 0
        %1743 = vmatprep.subr.bf16.mxu0 0
        %1744 = vmatpush1.bf16.msra.mxu0 0
        %1745 = vmatprep.subr.bf16.mxu0 0
        %1746 = vmatpush1.bf16.msra.mxu0 0
        %1747 = vmatprep.subr.bf16.mxu0 0
        %1748 = vmatpush1.bf16.msra.mxu0 0
        %1749 = vmatprep.subr.bf16.mxu0 0
        %1750 = vmatpush1.bf16.msra.mxu0 0
        %1751 = vmatprep.subr.bf16.mxu0 0
        %1752 = vmatpush1.bf16.msra.mxu0 0
        %1753 = vmatprep.subr.bf16.mxu0 0
        %1754 = vmatpush1.bf16.msra.mxu0 0
        %1755 = vmatprep.subr.bf16.mxu0 0
        %1756 = vmatpush1.bf16.msra.mxu0 0
        %1757 = vmatprep.subr.bf16.mxu0 0
        %1758 = vmatpush1.bf16.msra.mxu0 0
        %1759 = vmatprep.subr.bf16.mxu0 0
        %1760 = vmatpush1.bf16.msra.mxu0 0
        %1761 = vmatprep.subr.bf16.mxu0 0
        %1762 = vmatpush1.bf16.msra.mxu0 0
        %1763 = vmatprep.subr.bf16.mxu0 0
        %1764 = vmatpush1.bf16.msra.mxu0 0
        %1765 = vmatprep.subr.bf16.mxu0 0
        %1766 = vmatpush1.bf16.msra.mxu0 0
        %1767 = vmatprep.subr.bf16.mxu0 0
        %1768 = vmatpush1.bf16.msra.mxu0 0
        %1769 = vmatprep.mubr.bf16.mxu0 0
        %1770 = vmatmul.mubr.bf16.gmra.mrb[0].mxu0 %v1732
        %v1771 = vpop.f32.mrb[0].mxu0
        %v1772 = vadd.f32 0.0, %v1771
        %v1773 = vpop.f32.mrb[0].mxu0
        %v1774 = vpop.f32.mrb[0].mxu0
        %v1775 = vadd.f32 0.0, %v1774
        %v1776 = vpop.f32.mrb[0].mxu0
        %1777 = vmatprep.mubr.bf16.mxu0 0
        %1778 = vmatmul.mubr.bf16.gmra.mrb[0].mxu0 %v1735
        %v1779 = vpop.f32.mrb[0].mxu0
        %v1780 = vadd.f32 0.0, %v1779
        %v1781 = vpop.f32.mrb[0].mxu0
        %v1782 = vpop.f32.mrb[0].mxu0
        %v1783 = vadd.f32 0.0, %v1782
        %v1784 = vpop.f32.mrb[0].mxu0
        %1785 = vdwg.mxu0
        %v1786 = vadd.f32 %v1702, %v1772
        %v1787 = vadd.f32 %v1705, %v1775
        %v1788 = vadd.f32 %v1710, %v1780
        %v1789 = vadd.f32 %v1713, %v1783
        %s1790 = scalar_lea.vmem %s9, 1
        %v1791 = vld [vmem:[%s1790] sm:$0x1]
        %1792 = vxpose.xlu0.b32.start [1/16] %v1791, 128
        %1793 = vxpose.xlu0.b32.cont [2/16] 0.0, 128
        %1794 = vxpose.xlu0.b32.cont [3/16] 0.0, 128
        %1795 = vxpose.xlu0.b32.cont [4/16] 0.0, 128
        %1796 = vxpose.xlu0.b32.cont [5/16] 0.0, 128
        %1797 = vxpose.xlu0.b32.cont [6/16] 0.0, 128
        %1798 = vxpose.xlu0.b32.cont [7/16] 0.0, 128
        %1799 = vxpose.xlu0.b32.cont [8/16] 0.0, 128
        %1800 = vxpose.xlu0.b32.cont [9/16] 0.0, 128
        %1801 = vxpose.xlu0.b32.cont [10/16] 0.0, 128
        %1802 = vxpose.xlu0.b32.cont [11/16] 0.0, 128
        %1803 = vxpose.xlu0.b32.cont [12/16] 0.0, 128
        %1804 = vxpose.xlu0.b32.cont [13/16] 0.0, 128
        %1805 = vxpose.xlu0.b32.cont [14/16] 0.0, 128
        %1806 = vxpose.xlu0.b32.cont [15/16] 0.0, 128
        %1807 = vxpose.xlu0.b32.end [16/16] 0.0, 128
        %v1808 = vpop.trf.xlu0
        %v1809 = vpop.trf.xlu0
        %v1810 = vpop.trf.xlu0
        %v1811 = vpop.trf.xlu0
        %v1812 = vpop.trf.xlu0
        %v1813 = vpop.trf.xlu0
        %v1814 = vpop.trf.xlu0
        %v1815 = vpop.trf.xlu0
        %v1816 = vpop.trf.xlu0
        %v1817 = vpop.trf.xlu0
        %v1818 = vpop.trf.xlu0
        %v1819 = vpop.trf.xlu0
        %v1820 = vpop.trf.xlu0
        %v1821 = vpop.trf.xlu0
        %v1822 = vpop.trf.xlu0
        %v1823 = vpop.trf.xlu0
        %1825 = vset.pattern.permute.xlu0 0
        %1826 = vperm.xlu0 %1825, %v1808
        %v1827 = vpop.permute.xlu0 %1826
        %1830 = vset.pattern.permute.xlu0 0
        %1831 = vperm.xlu0 %1830, %v1809
        %v1832 = vpop.permute.xlu0 %1831
        %1835 = vset.pattern.permute.xlu0 0
        %1836 = vperm.xlu0 %1835, %v1810
        %v1837 = vpop.permute.xlu0 %1836
        %1840 = vset.pattern.permute.xlu0 0
        %1841 = vperm.xlu0 %1840, %v1811
        %v1842 = vpop.permute.xlu0 %1841
        %v1844 = vadd.f32 %v1786, %v1827
        %v1845 = vadd.f32 %v1787, %v1832
        %v1846 = vadd.f32 %v1788, %v1837
        %v1847 = vadd.f32 %v1789, %v1842
        %v1848 = vmax.f32 %v1844, 0.0
        %v1849 = vmax.f32 %v1845, 0.0
        %v1850 = vmax.f32 %v1846, 0.0
        %v1851 = vmax.f32 %v1847, 0.0
        %s1852 = scalar_lea.vmem %s10, 8
        %v1853 = vld [vmem:[%s1852] sm:$0xf]
        %v1854 = vld [vmem:[%s1852 + $0x4] sm:$0xf]
        %v1855 = vpack.c.bf16 %v1849, %v1848
        %v1856 = vpack.c.bf16 %v1851, %v1850
        %s1857 = scalar_lea.vmem %s11, 1
        %v1858 = vld [vmem:[%s1857] sm:$0x1]
        %1859 = vxpose.xlu0.b32.start [1/16] %v1858, 128
        %1860 = vxpose.xlu0.b32.cont [2/16] 0.0, 128
        %1861 = vxpose.xlu0.b32.cont [3/16] 0.0, 128
        %1862 = vxpose.xlu0.b32.cont [4/16] 0.0, 128
        %1863 = vxpose.xlu0.b32.cont [5/16] 0.0, 128
        %1864 = vxpose.xlu0.b32.cont [6/16] 0.0, 128
        %1865 = vxpose.xlu0.b32.cont [7/16] 0.0, 128
        %1866 = vxpose.xlu0.b32.cont [8/16] 0.0, 128
        %1867 = vxpose.xlu0.b32.cont [9/16] 0.0, 128
        %1868 = vxpose.xlu0.b32.cont [10/16] 0.0, 128
        %1869 = vxpose.xlu0.b32.cont [11/16] 0.0, 128
        %1870 = vxpose.xlu0.b32.cont [12/16] 0.0, 128
        %1871 = vxpose.xlu0.b32.cont [13/16] 0.0, 128
        %1872 = vxpose.xlu0.b32.cont [14/16] 0.0, 128
        %1873 = vxpose.xlu0.b32.cont [15/16] 0.0, 128
        %1874 = vxpose.xlu0.b32.end [16/16] 0.0, 128
        %v1875 = vpop.trf.xlu0
        %v1876 = vpop.trf.xlu0
        %v1877 = vpop.trf.xlu0
        %v1878 = vpop.trf.xlu0
        %v1879 = vpop.trf.xlu0
        %v1880 = vpop.trf.xlu0
        %v1881 = vpop.trf.xlu0
        %v1882 = vpop.trf.xlu0
        %v1883 = vpop.trf.xlu0
        %v1884 = vpop.trf.xlu0
        %v1885 = vpop.trf.xlu0
        %v1886 = vpop.trf.xlu0
        %v1887 = vpop.trf.xlu0
        %v1888 = vpop.trf.xlu0
        %v1889 = vpop.trf.xlu0
        %v1890 = vpop.trf.xlu0
        %1892 = vset.pattern.permute.xlu0 0
        %1893 = vperm.xlu0 %1892, %v1875
        %v1894 = vpop.permute.xlu0 %1893
        %1897 = vset.pattern.permute.xlu0 0
        %1898 = vperm.xlu0 %1897, %v1876
        %v1899 = vpop.permute.xlu0 %1898
        %v1903 = vunpack.c.l.b16 %v1853
        %v1904 = vunpack.c.l.b16 %v1854
        %v1905 = vpack.c.b16 %v1904, %v1903
        %v1907 = vsel %vm1473, %v1905, 0
        %1909 = vmatprep.subr.bf16.mxu0 0
        %1910 = vmatpush1.bf16.msra.mxu0 %v1855
        %1911 = vmatprep.subr.bf16.mxu0 0
        %1912 = vmatpush1.bf16.msra.mxu0 %v1856
        %1913 = vmatprep.subr.bf16.mxu0 0
        %1914 = vmatpush1.bf16.msra.mxu0 0
        %1915 = vmatprep.subr.bf16.mxu0 0
        %1916 = vmatpush1.bf16.msra.mxu0 0
        %1917 = vmatprep.subr.bf16.mxu0 0
        %1918 = vmatpush1.bf16.msra.mxu0 0
        %1919 = vmatprep.subr.bf16.mxu0 0
        %1920 = vmatpush1.bf16.msra.mxu0 0
        %1921 = vmatprep.subr.bf16.mxu0 0
        %1922 = vmatpush1.bf16.msra.mxu0 0
        %1923 = vmatprep.subr.bf16.mxu0 0
        %1924 = vmatpush1.bf16.msra.mxu0 0
        %1925 = vmatprep.subr.bf16.mxu0 0
        %1926 = vmatpush1.bf16.msra.mxu0 0
        %1927 = vmatprep.subr.bf16.mxu0 0
        %1928 = vmatpush1.bf16.msra.mxu0 0
        %1929 = vmatprep.subr.bf16.mxu0 0
        %1930 = vmatpush1.bf16.msra.mxu0 0
        %1931 = vmatprep.subr.bf16.mxu0 0
        %1932 = vmatpush1.bf16.msra.mxu0 0
        %1933 = vmatprep.subr.bf16.mxu0 0
        %1934 = vmatpush1.bf16.msra.mxu0 0
        %1935 = vmatprep.subr.bf16.mxu0 0
        %1936 = vmatpush1.bf16.msra.mxu0 0
        %1937 = vmatprep.subr.bf16.mxu0 0
        %1938 = vmatpush1.bf16.msra.mxu0 0
        %1939 = vmatprep.subr.bf16.mxu0 0
        %1940 = vmatpush1.bf16.msra.mxu0 0
        %1941 = vmatprep.mubr.bf16.mxu0 0
        %1942 = vmatmul.mubr.bf16.gmra.mrb[0].mxu0 %v1907
        %v1943 = vpop.f32.mrb[0].mxu0
        %v1944 = vadd.f32 %v1894, %v1943
        %v1945 = vpop.f32.mrb[0].mxu0
        %v1946 = vpop.f32.mrb[0].mxu0
        %v1947 = vadd.f32 %v1899, %v1946
        %v1948 = vpop.f32.mrb[0].mxu0
        %1949 = vdwg.mxu0
        %v1950 = vadd.f32 %v1559, %v1944
        %v1951 = vadd.f32 %v1560, %v1947
        %1952 = vadd.xlane.f32.xlu0 %v1950
        %v1953 = vpop.xlane.xlu0 %1952
        %1954 = vadd.xlane.f32.xlu0 %v1951
        %v1955 = vpop.xlane.xlu0 %1954
        %v1956 = vmul.f32 %v1953, %v1524
        %v1957 = vmul.f32 %v1955, %v1524
        %v1958 = vsub.f32 %v1950, %v1956
        %v1959 = vsub.f32 %v1951, %v1957
        %v1960 = vmul.f32 %v1958, %v1958
        %v1961 = vmul.f32 %v1959, %v1959
        %1962 = vadd.xlane.f32.xlu0 %v1960
        %v1963 = vpop.xlane.xlu0 %1962
        %1964 = vadd.xlane.f32.xlu0 %v1961
        %v1965 = vpop.xlane.xlu0 %1964
        %v1966 = vmul.f32 %v1963, %v1524
        %v1967 = vmul.f32 %v1965, %v1524
        %v1968 = vadd.f32 %v1966, 1e-05
        %v1969 = vadd.f32 %v1967, 1e-05
        %v1970 = vrsqrt.pop %v1968
        %v1971 = vrsqrt.pop %v1969
        %v1972 = vmul.f32 %v1958, %v1970
        %v1973 = vmul.f32 %v1959, %v1971
        %s1974 = scalar_lea.vmem %s12, 1
        %v1975 = vld [vmem:[%s1974] sm:$0x1]
        %v1977 = vlaneseq
        %v1978 = vshrl.u32 %v1977, 7
        %v1979 = vsub.s32 0, %v1978
        %v1980 = vrot.slane %v1975, %v1979
        %v1982 = vmul.f32 %v1972, %v1980
        %v1983 = vmul.f32 %v1973, %v1980
        %s1984 = scalar_lea.vmem %s13, 1
        %v1985 = vld [vmem:[%s1984] sm:$0x1]
        %v1987 = vlaneseq
        %v1988 = vshrl.u32 %v1987, 7
        %v1989 = vsub.s32 0, %v1988
        %v1990 = vrot.slane %v1985, %v1989
        %v1992 = vadd.f32 %v1982, %v1990
        %v1993 = vadd.f32 %v1983, %v1990
        %v1994 = vld [vmem:[%s14] sm:$0x1]
        %v1995 = vpack.c.bf16 %v1993, %v1992
        %v1996 = vld [vmem:[%s15] sm:$0x3]
        %1998 = vset.pattern.permute.xlu0 0
        %1999 = vperm.xlu0 %1998, %v1996
        %v2000 = vpop.permute.xlu0 %1999
        %2002 = vmatprep.subr.bf16.mxu0 0
        %2003 = vmatpush1.bf16.xpose.msra.mxu0 %v1995
        %2004 = vmatprep.subr.bf16.mxu0 0
        %2005 = vmatpush1.bf16.xpose.msra.mxu0 0
        %2006 = vmatprep.subr.bf16.mxu0 0
        %2007 = vmatpush1.bf16.xpose.msra.mxu0 0
        %2008 = vmatprep.subr.bf16.mxu0 0
        %2009 = vmatpush1.bf16.xpose.msra.mxu0 0
        %2010 = vmatprep.subr.bf16.mxu0 0
        %2011 = vmatpush1.bf16.xpose.msra.mxu0 0
        %2012 = vmatprep.subr.bf16.mxu0 0
        %2013 = vmatpush1.bf16.xpose.msra.mxu0 0
        %2014 = vmatprep.subr.bf16.mxu0 0
        %2015 = vmatpush1.bf16.xpose.msra.mxu0 0
        %2016 = vmatprep.subr.bf16.mxu0 0
        %2017 = vmatpush1.bf16.xpose.msra.mxu0 0
        %2018 = vmatprep.subr.bf16.mxu0 0
        %2019 = vmatpush1.bf16.xpose.msra.mxu0 0
        %2020 = vmatprep.subr.bf16.mxu0 0
        %2021 = vmatpush1.bf16.xpose.msra.mxu0 0
        %2022 = vmatprep.subr.bf16.mxu0 0
        %2023 = vmatpush1.bf16.xpose.msra.mxu0 0
        %2024 = vmatprep.subr.bf16.mxu0 0
        %2025 = vmatpush1.bf16.xpose.msra.mxu0 0
        %2026 = vmatprep.subr.bf16.mxu0 0
        %2027 = vmatpush1.bf16.xpose.msra.mxu0 0
        %2028 = vmatprep.subr.bf16.mxu0 0
        %2029 = vmatpush1.bf16.xpose.msra.mxu0 0
        %2030 = vmatprep.subr.bf16.mxu0 0
        %2031 = vmatpush1.bf16.xpose.msra.mxu0 0
        %2032 = vmatprep.subr.bf16.mxu0 0
        %2033 = vmatpush1.bf16.xpose.msra.mxu0 0
        %2034 = vmatprep.mubr.bf16.mxu0 0
        %2035 = vmatmul.mubr.bf16.gmra.mrb[0].mxu0 %v1994
        %v2036 = vpop.f32.mrb[0].mxu0
        %v2037 = vadd.f32 %v2000, %v2036
        %v2038 = vpop.f32.mrb[0].mxu0
        %v2039 = vpop.f32.mrb[0].mxu0
        %v2040 = vpop.f32.mrb[0].mxu0
        %2041 = vdwg.mxu0
        %v2042 = vld [vmem:[%s16] sm:$0x1]
        %v2043 = vunpack.c.l.bf16 %v916
        %v2044 = vunpack.c.l.bf16 %v2042
        %v2045 = vmul.f32 %v2043, %v2044
        %vm2046 = vcmask 1040384
        %v2047 = vsel %vm2046, %v2045, 0.0
        %2048 = vadd.xlane.f32.xlu0 %v2047
        %v2049 = vpop.xlane.xlu0 %2048
        %v2050 = vld [vmem:[#allocation2] sm:$0x1]
        %v2051 = vadd.f32 %v2049, %v2050
        %v2052 = vxor.u32 %v2051, 2147483648
        %v2053 = vmul.f32 %v2052, 1.442695
        %v2054 = vpow.pop %v2053
        %v2055 = vadd.f32 %v2054, 1.0
        %v2056 = vrcp.pop %v2055
        %v2057 = vmul.f32 1.0, %v2056
        %2059 = vset.pattern.permute.xlu0 0
        %2060 = vperm.xlu0 %2059, %v2057
        %v2061 = vpop.permute.xlu0 %2060
        %v2062 = vrot.slane %v2061, 6
        %vm2064 = vcmask 1041408
        %v2065 = vsel %vm2064, %v2037, %v2062
        %vm2066 = vcmask 124928
        %2067 = vst.msk [vmem:[%s629] sm:$0x7] %vm2066, %v2065
        %p2068 = scmp.lt.s32.totalorder %s33, 1
        %s2069 = scalar_select %p2068, %s33, 1
        %s2070 = smul.addr %s2069, 4
        %s2071 = scalar_lea.vmem %s18, %s2070
        // Predicated region
        $region105: #{tpu_custom_call.1} parent=91 // pred_check
          %p2072 = pneg %p439
        $region106: #{tpu_custom_call.1} parent=91 // pred_check_branch
          %2074 = sbr.rel (%p2072) target = $region108
        $region107: #{tpu_custom_call.1} parent=91 // pred_region
          _
        $region108: #{tpu_custom_call.1} parent=91 // pred_fallthru
          _
      $region92: #{tpu_custom_call.1} parent=5 // pred_fallthru
        _
      %p2075 = scmp.le.s32.totalorder 2, %s28
      // Predicated region
      $region109: #{tpu_custom_call.1} parent=5 // pred_check
        %p2076 = pneg %p2075
      $region110: #{tpu_custom_call.1} parent=5 // pred_check_branch
        %2078 = sbr.rel (%p2076) target = $region112
      $region111: #{tpu_custom_call.1} parent=5 // pred_region
        %s2079 = ssub.s32 %s28, 2
        // Predicated region
        $region113: #{tpu_custom_call.1} parent=111 // pred_check
          %p2080 = pneg %p445
        $region114: #{tpu_custom_call.1} parent=111 // pred_check_branch
          %2082 = sbr.rel (%p2080) target = $region116
        $region115: #{tpu_custom_call.1} parent=111 // pred_region
          %p2083 = scmp.lt.s32.totalorder %s34, 1
          %s2084 = scalar_select %p2083, %s34, 1
          %s2085 = smul.addr %s2084, 4
          %s2086 = scalar_lea.vmem %s18, %s2085
        $region116: #{tpu_custom_call.1} parent=111 // pred_fallthru
          _
      $region112: #{tpu_custom_call.1} parent=5 // pred_fallthru
        _
    $region6: #{tpu_custom_call.1} parent=1 // loop_footer
      %s32 = sadd.s32 1, %s28
    $region7: #{tpu_custom_call.1} parent=1 // loop_footer_branch
      %27 = sbr.rel target = $region3
    $region8: #{tpu_custom_call.1} parent=1 // loop_exit
      _
    %2087 = vsyncpa [#allocation4], 1
    %s2088 = scalar_lea.sflag [#allocation4], 1
    %2089 = vsyncpa %s2088, 1
    %2090 = vsyncpa [#allocation6], 1

// kernel: tpu_custom_call.1
$region0: #{tpu_custom_call.1}
  #allocation0 [shape = 'u32[]', space=smem, size = 0x4, offset = 0x4, fixed_abs, tag = 'smem constant byte address 0x4 - core index']
  #allocation1 [shape = 'u32[144,128]{1,0:T(1,128)}', space=vmem, size = 0x12000, scoped, tag = 'internal scratch']
  #allocation2 [shape = 'f32[1,1]{1,0:T(1,128)S(1)}', space=vmem, size = 0x200, scoped, tag = 'scoped memory for tpu_custom_call.1']
  %s0 = inlined_call_operand.vmem [shape: bf16[2,16,128], index: 0, kind: input, shape index: {}]
  %s1 = inlined_call_operand.vmem [shape: f32[2,1,16], index: 1, kind: input, shape index: {}]
  %s2 = inlined_call_operand.vmem [shape: bf16[128,128], index: 2, kind: input, shape index: {}]
  %s3 = inlined_call_operand.hbm [shape: f32[1,128], index: 3, kind: input, shape index: {}]
  %s4 = inlined_call_operand.vmem [shape: bf16[128,128], index: 4, kind: input, shape index: {}]
  %s5 = inlined_call_operand.hbm [shape: f32[1,128], index: 5, kind: input, shape index: {}]
  %s6 = inlined_call_operand.hbm [shape: bf16[128,128], index: 6, kind: input, shape index: {}]
  %s7 = inlined_call_operand.vmem [shape: f32[1,128], index: 7, kind: input, shape index: {}]
  %s8 = inlined_call_operand.vmem [shape: bf16[6,32,16], index: 8, kind: input, shape index: {}]
  %s9 = inlined_call_operand.vmem [shape: f32[2,1,32], index: 9, kind: input, shape index: {}]
  %s10 = inlined_call_operand.vmem [shape: bf16[2,16,32], index: 10, kind: input, shape index: {}]
  %s11 = inlined_call_operand.vmem [shape: f32[2,1,16], index: 11, kind: input, shape index: {}]
  %s12 = inlined_call_operand.vmem [shape: f32[2,1,128], index: 12, kind: input, shape index: {}]
  %s13 = inlined_call_operand.vmem [shape: f32[2,1,128], index: 13, kind: input, shape index: {}]
  %s14 = inlined_call_operand.vmem [shape: bf16[2,128], index: 14, kind: input, shape index: {}]
  %s15 = inlined_call_operand.vmem [shape: f32[2,1], index: 15, kind: input, shape index: {}]
  %s16 = inlined_call_operand.vmem [shape: bf16[1,128], index: 16, kind: input, shape index: {}]
  %s17 = inlined_call_operand.<no memory space> [shape: f32[1,1], index: 17, kind: input, shape index: {}]
  %s18 = inlined_call_operand.vmem [shape: f32[2,3,16], index: 18, kind: output, shape index: {}]
  %s19 = sld [smem:[#allocation0]]
  $region117: #{tpu_custom_call.1} parent=0
    _
  %s21 = ssub.s32 1, %s19
  %s22 = scalar_select 0, %s21, %s19
  %v23 = vstv %s17
  %24 = vst [vmem:[#allocation2] sm:$0x1] %v23
  $region1: #{tpu_custom_call.1} parent=0
    #allocation3 [shape = 'u8[512]{0}', space=vmem, size = 0x400, scoped, tag = 'input window, operand 3, single buffered']
    #allocation4 [shape = 's32[2]{0}', space=sflag, size = 0x8, scoped, tag = 'scoped memory for tpu_custom_call.1']
    #allocation5 [shape = 'u8[512]{0}', space=vmem, size = 0x400, scoped, tag = 'input window, operand 5, single buffered']
    #allocation6 [shape = 's32[1]{0}', space=sflag, size = 0x4, scoped, tag = 'scoped memory for tpu_custom_call.1']
    #allocation7 [shape = 'u8[32768]{0}', space=vmem, size = 0x8000, scoped, tag = 'input window, operand 6, single buffered']
    %25 = vsyncpa [#allocation4], 0
    %26 = vsyncpa [#allocation6], 0
    loop: start=0, step=1, limit=4
    $region2: #{tpu_custom_call.1} parent=1 // loop_pre_header
      _
    $region3: #{tpu_custom_call.1} parent=1 // loop_header
      %s28 = sphi 0, %s32
      %p29 = scmp.ge.s32.totalorder %s28, 4
      %s38 = sphi 0, %s40
      %s41 = sphi 0, %s38
      %s42 = sphi 0, %s41
      %s58 = sphi 0, %s42
      %s64 = sphi 0, %s66
      %s67 = sphi 0, %s64
      %s68 = sphi 0, %s67
      %s84 = sphi 0, %s68
      %s88 = sphi 0, %s88
      %s90 = sphi 0, %s88
      %s91 = sphi 0, %s90
      %s105 = sphi 0, %s91
      %s109 = sphi 0, %s109
      %s111 = sphi 0, %s109
      %s112 = sphi 0, %s111
      %s126 = sphi 0, %s112
      %s130 = sphi 0, %s130
      %s132 = sphi 0, %s130
      %s133 = sphi 0, %s132
      %s147 = sphi 0, %s133
      %s151 = sphi 0, %s151
      %s153 = sphi 0, %s151
      %s154 = sphi 0, %s153
      %s168 = sphi 0, %s154
      %s172 = sphi 0, %s172
      %s174 = sphi 0, %s172
      %s175 = sphi 0, %s174
      %s189 = sphi 0, %s175
      %s193 = sphi 0, %s193
      %s195 = sphi 0, %s193
      %s196 = sphi 0, %s195
      %s210 = sphi 0, %s196
      %s214 = sphi 0, %s214
      %s216 = sphi 0, %s214
      %s217 = sphi 0, %s216
      %s231 = sphi 0, %s217
      %s235 = sphi 0, %s235
      %s237 = sphi 0, %s235
      %s238 = sphi 0, %s237
      %s252 = sphi 0, %s238
      %s256 = sphi 0, %s256
      %s258 = sphi 0, %s256
      %s259 = sphi 0, %s258
      %s273 = sphi 0, %s259
      %s277 = sphi 0, %s277
      %s279 = sphi 0, %s277
      %s280 = sphi 0, %s279
      %s294 = sphi 0, %s280
      %s298 = sphi 0, %s298
      %s300 = sphi 0, %s298
      %s301 = sphi 0, %s300
      %s315 = sphi 0, %s301
      %s319 = sphi 0, %s319
      %s321 = sphi 0, %s319
      %s322 = sphi 0, %s321
      %s336 = sphi 0, %s322
      %s340 = sphi 0, %s340
      %s342 = sphi 0, %s340
      %s343 = sphi 0, %s342
      %s357 = sphi 0, %s343
      %s361 = sphi 0, %s361
      %s363 = sphi 0, %s361
      %s364 = sphi 0, %s363
      %s378 = sphi 0, %s364
      %s382 = sphi 0, %s382
      %s384 = sphi 0, %s382
      %s385 = sphi 0, %s384
      %s399 = sphi 0, %s385
      %s403 = sphi 0, %s403
      %s405 = sphi 0, %s403
      %s406 = sphi 0, %s405
      %s420 = sphi 0, %s406
      %s426 = sphi 0, %s428
      %s429 = sphi 0, %s426
      %s430 = sphi 0, %s429
      %s446 = sphi 0, %s430
    $region4: #{tpu_custom_call.1} parent=1 // loop_header_branch
      %31 = sbr.rel (%p29) target = $region8
    $region5: #{tpu_custom_call.1} parent=1 // loop_body
      %s33 = ssub.s32 %s28, 1
      %s34 = ssub.s32 %s28, 2
      %s35 = sadd.s32 %s28, 1
      %s36 = ssub.s32 %s28, %s35
      %p37 = scmp.eq.s32.totalorder %s36, 0
      %s39 = sadd.s32 %s38, 1
      %s40 = scalar_select %p37, %s38, %s39
      %p43 = pneg %p37
      %p44 = scmp.eq.s32.totalorder %s28, 1
      %p45 = por %p43, %p44
      %p46 = scmp.ne.s32.totalorder %s38, %s41
      %p47 = scmp.eq.s32.totalorder %s28, 0
      %p48 = por %p46, %p47
      %p49 = scmp.ne.s32.totalorder %s38, %s41
      %p50 = scmp.eq.s32.totalorder %s33, 1
      %p51 = por %p49, %p50
      %p52 = scmp.ne.s32.totalorder %s41, %s42
      %p53 = scmp.eq.s32.totalorder %s33, 0
      %p54 = por %p52, %p53
      %p55 = scmp.ne.s32.totalorder %s41, %s42
      %p56 = scmp.eq.s32.totalorder %s34, 1
      %p57 = por %p55, %p56
      %p59 = scmp.ne.s32.totalorder %s42, %s58
      %p60 = scmp.eq.s32.totalorder %s34, 0
      %p61 = por %p59, %p60
      %s62 = ssub.s32 %s28, %s35
      %p63 = scmp.eq.s32.totalorder %s62, 0
      %s65 = sadd.s32 %s64, 1
      %s66 = scalar_select %p63, %s64, %s65
      %p69 = pneg %p63
      %p70 = scmp.eq.s32.totalorder %s28, 1
      %p71 = por %p69, %p70
      %p72 = scmp.ne.s32.totalorder %s64, %s67
      %p73 = scmp.eq.s32.totalorder %s28, 0
      %p74 = por %p72, %p73
      %p75 = scmp.ne.s32.totalorder %s64, %s67
      %p76 = scmp.eq.s32.totalorder %s33, 1
      %p77 = por %p75, %p76
      %p78 = scmp.ne.s32.totalorder %s67, %s68
      %p79 = scmp.eq.s32.totalorder %s33, 0
      %p80 = por %p78, %p79
      %p81 = scmp.ne.s32.totalorder %s67, %s68
      %p82 = scmp.eq.s32.totalorder %s34, 1
      %p83 = por %p81, %p82
      %p85 = scmp.ne.s32.totalorder %s68, %s84
      %p86 = scmp.eq.s32.totalorder %s34, 0
      %p87 = por %p85, %p86
      %s89 = sadd.s32 %s88, 1
      %p92 = scmp.eq.s32.totalorder %s28, 1
      %p93 = scmp.ne.s32.totalorder %s88, %s90
      %p94 = scmp.eq.s32.totalorder %s28, 0
      %p95 = por %p93, %p94
      %p96 = scmp.ne.s32.totalorder %s88, %s90
      %p97 = scmp.eq.s32.totalorder %s33, 1
      %p98 = por %p96, %p97
      %p99 = scmp.ne.s32.totalorder %s90, %s91
      %p100 = scmp.eq.s32.totalorder %s33, 0
      %p101 = por %p99, %p100
      %p102 = scmp.ne.s32.totalorder %s90, %s91
      %p103 = scmp.eq.s32.totalorder %s34, 1
      %p104 = por %p102, %p103
      %p106 = scmp.ne.s32.totalorder %s91, %s105
      %p107 = scmp.eq.s32.totalorder %s34, 0
      %p108 = por %p106, %p107
      %s110 = sadd.s32 %s109, 1
      %p113 = scmp.eq.s32.totalorder %s28, 1
      %p114 = scmp.ne.s32.totalorder %s109, %s111
      %p115 = scmp.eq.s32.totalorder %s28, 0
      %p116 = por %p114, %p115
      %p117 = scmp.ne.s32.totalorder %s109, %s111
      %p118 = scmp.eq.s32.totalorder %s33, 1
      %p119 = por %p117, %p118
      %p120 = scmp.ne.s32.totalorder %s111, %s112
      %p121 = scmp.eq.s32.totalorder %s33, 0
      %p122 = por %p120, %p121
      %p123 = scmp.ne.s32.totalorder %s111, %s112
      %p124 = scmp.eq.s32.totalorder %s34, 1
      %p125 = por %p123, %p124
      %p127 = scmp.ne.s32.totalorder %s112, %s126
      %p128 = scmp.eq.s32.totalorder %s34, 0
      %p129 = por %p127, %p128
      %s131 = sadd.s32 %s130, 1
      %p134 = scmp.eq.s32.totalorder %s28, 1
      %p135 = scmp.ne.s32.totalorder %s130, %s132
      %p136 = scmp.eq.s32.totalorder %s28, 0
      %p137 = por %p135, %p136
      %p138 = scmp.ne.s32.totalorder %s130, %s132
      %p139 = scmp.eq.s32.totalorder %s33, 1
      %p140 = por %p138, %p139
      %p141 = scmp.ne.s32.totalorder %s132, %s133
      %p142 = scmp.eq.s32.totalorder %s33, 0
      %p143 = por %p141, %p142
      %p144 = scmp.ne.s32.totalorder %s132, %s133
      %p145 = scmp.eq.s32.totalorder %s34, 1
      %p146 = por %p144, %p145
      %p148 = scmp.ne.s32.totalorder %s133, %s147
      %p149 = scmp.eq.s32.totalorder %s34, 0
      %p150 = por %p148, %p149
      %s152 = sadd.s32 %s151, 1
      %p155 = scmp.eq.s32.totalorder %s28, 1
      %p156 = scmp.ne.s32.totalorder %s151, %s153
      %p157 = scmp.eq.s32.totalorder %s28, 0
      %p158 = por %p156, %p157
      %p159 = scmp.ne.s32.totalorder %s151, %s153
      %p160 = scmp.eq.s32.totalorder %s33, 1
      %p161 = por %p159, %p160
      %p162 = scmp.ne.s32.totalorder %s153, %s154
      %p163 = scmp.eq.s32.totalorder %s33, 0
      %p164 = por %p162, %p163
      %p165 = scmp.ne.s32.totalorder %s153, %s154
      %p166 = scmp.eq.s32.totalorder %s34, 1
      %p167 = por %p165, %p166
      %p169 = scmp.ne.s32.totalorder %s154, %s168
      %p170 = scmp.eq.s32.totalorder %s34, 0
      %p171 = por %p169, %p170
      %s173 = sadd.s32 %s172, 1
      %p176 = scmp.eq.s32.totalorder %s28, 1
      %p177 = scmp.ne.s32.totalorder %s172, %s174
      %p178 = scmp.eq.s32.totalorder %s28, 0
      %p179 = por %p177, %p178
      %p180 = scmp.ne.s32.totalorder %s172, %s174
      %p181 = scmp.eq.s32.totalorder %s33, 1
      %p182 = por %p180, %p181
      %p183 = scmp.ne.s32.totalorder %s174, %s175
      %p184 = scmp.eq.s32.totalorder %s33, 0
      %p185 = por %p183, %p184
      %p186 = scmp.ne.s32.totalorder %s174, %s175
      %p187 = scmp.eq.s32.totalorder %s34, 1
      %p188 = por %p186, %p187
      %p190 = scmp.ne.s32.totalorder %s175, %s189
      %p191 = scmp.eq.s32.totalorder %s34, 0
      %p192 = por %p190, %p191
      %s194 = sadd.s32 %s193, 1
      %p197 = scmp.eq.s32.totalorder %s28, 1
      %p198 = scmp.ne.s32.totalorder %s193, %s195
      %p199 = scmp.eq.s32.totalorder %s28, 0
      %p200 = por %p198, %p199
      %p201 = scmp.ne.s32.totalorder %s193, %s195
      %p202 = scmp.eq.s32.totalorder %s33, 1
      %p203 = por %p201, %p202
      %p204 = scmp.ne.s32.totalorder %s195, %s196
      %p205 = scmp.eq.s32.totalorder %s33, 0
      %p206 = por %p204, %p205
      %p207 = scmp.ne.s32.totalorder %s195, %s196
      %p208 = scmp.eq.s32.totalorder %s34, 1
      %p209 = por %p207, %p208
      %p211 = scmp.ne.s32.totalorder %s196, %s210
      %p212 = scmp.eq.s32.totalorder %s34, 0
      %p213 = por %p211, %p212
      %s215 = sadd.s32 %s214, 1
      %p218 = scmp.eq.s32.totalorder %s28, 1
      %p219 = scmp.ne.s32.totalorder %s214, %s216
      %p220 = scmp.eq.s32.totalorder %s28, 0
      %p221 = por %p219, %p220
      %p222 = scmp.ne.s32.totalorder %s214, %s216
      %p223 = scmp.eq.s32.totalorder %s33, 1
      %p224 = por %p222, %p223
      %p225 = scmp.ne.s32.totalorder %s216, %s217
      %p226 = scmp.eq.s32.totalorder %s33, 0
      %p227 = por %p225, %p226
      %p228 = scmp.ne.s32.totalorder %s216, %s217
      %p229 = scmp.eq.s32.totalorder %s34, 1
      %p230 = por %p228, %p229
      %p232 = scmp.ne.s32.totalorder %s217, %s231
      %p233 = scmp.eq.s32.totalorder %s34, 0
      %p234 = por %p232, %p233
      %s236 = sadd.s32 %s235, 1
      %p239 = scmp.eq.s32.totalorder %s28, 1
      %p240 = scmp.ne.s32.totalorder %s235, %s237
      %p241 = scmp.eq.s32.totalorder %s28, 0
      %p242 = por %p240, %p241
      %p243 = scmp.ne.s32.totalorder %s235, %s237
      %p244 = scmp.eq.s32.totalorder %s33, 1
      %p245 = por %p243, %p244
      %p246 = scmp.ne.s32.totalorder %s237, %s238
      %p247 = scmp.eq.s32.totalorder %s33, 0
      %p248 = por %p246, %p247
      %p249 = scmp.ne.s32.totalorder %s237, %s238
      %p250 = scmp.eq.s32.totalorder %s34, 1
      %p251 = por %p249, %p250
      %p253 = scmp.ne.s32.totalorder %s238, %s252
      %p254 = scmp.eq.s32.totalorder %s34, 0
      %p255 = por %p253, %p254
      %s257 = sadd.s32 %s256, 1
      %p260 = scmp.eq.s32.totalorder %s28, 1
      %p261 = scmp.ne.s32.totalorder %s256, %s258
      %p262 = scmp.eq.s32.totalorder %s28, 0
      %p263 = por %p261, %p262
      %p264 = scmp.ne.s32.totalorder %s256, %s258
      %p265 = scmp.eq.s32.totalorder %s33, 1
      %p266 = por %p264, %p265
      %p267 = scmp.ne.s32.totalorder %s258, %s259
      %p268 = scmp.eq.s32.totalorder %s33, 0
      %p269 = por %p267, %p268
      %p270 = scmp.ne.s32.totalorder %s258, %s259
      %p271 = scmp.eq.s32.totalorder %s34, 1
      %p272 = por %p270, %p271
      %p274 = scmp.ne.s32.totalorder %s259, %s273
      %p275 = scmp.eq.s32.totalorder %s34, 0
      %p276 = por %p274, %p275
      %s278 = sadd.s32 %s277, 1
      %p281 = scmp.eq.s32.totalorder %s28, 1
      %p282 = scmp.ne.s32.totalorder %s277, %s279
      %p283 = scmp.eq.s32.totalorder %s28, 0
      %p284 = por %p282, %p283
      %p285 = scmp.ne.s32.totalorder %s277, %s279
      %p286 = scmp.eq.s32.totalorder %s33, 1
      %p287 = por %p285, %p286
      %p288 = scmp.ne.s32.totalorder %s279, %s280
      %p289 = scmp.eq.s32.totalorder %s33, 0
      %p290 = por %p288, %p289
      %p291 = scmp.ne.s32.totalorder %s279, %s280
      %p292 = scmp.eq.s32.totalorder %s34, 1
      %p293 = por %p291, %p292
      %p295 = scmp.ne.s32.totalorder %s280, %s294
      %p296 = scmp.eq.s32.totalorder %s34, 0
      %p297 = por %p295, %p296
      %s299 = sadd.s32 %s298, 1
      %p302 = scmp.eq.s32.totalorder %s28, 1
      %p303 = scmp.ne.s32.totalorder %s298, %s300
      %p304 = scmp.eq.s32.totalorder %s28, 0
      %p305 = por %p303, %p304
      %p306 = scmp.ne.s32.totalorder %s298, %s300
      %p307 = scmp.eq.s32.totalorder %s33, 1
      %p308 = por %p306, %p307
      %p309 = scmp.ne.s32.totalorder %s300, %s301
      %p310 = scmp.eq.s32.totalorder %s33, 0
      %p311 = por %p309, %p310
      %p312 = scmp.ne.s32.totalorder %s300, %s301
      %p313 = scmp.eq.s32.totalorder %s34, 1
      %p314 = por %p312, %p313
      %p316 = scmp.ne.s32.totalorder %s301, %s315
      %p317 = scmp.eq.s32.totalorder %s34, 0
      %p318 = por %p316, %p317
      %s320 = sadd.s32 %s319, 1
      %p323 = scmp.eq.s32.totalorder %s28, 1
      %p324 = scmp.ne.s32.totalorder %s319, %s321
      %p325 = scmp.eq.s32.totalorder %s28, 0
      %p326 = por %p324, %p325
      %p327 = scmp.ne.s32.totalorder %s319, %s321
      %p328 = scmp.eq.s32.totalorder %s33, 1
      %p329 = por %p327, %p328
      %p330 = scmp.ne.s32.totalorder %s321, %s322
      %p331 = scmp.eq.s32.totalorder %s33, 0
      %p332 = por %p330, %p331
      %p333 = scmp.ne.s32.totalorder %s321, %s322
      %p334 = scmp.eq.s32.totalorder %s34, 1
      %p335 = por %p333, %p334
      %p337 = scmp.ne.s32.totalorder %s322, %s336
      %p338 = scmp.eq.s32.totalorder %s34, 0
      %p339 = por %p337, %p338
      %s341 = sadd.s32 %s340, 1
      %p344 = scmp.eq.s32.totalorder %s28, 1
      %p345 = scmp.ne.s32.totalorder %s340, %s342
      %p346 = scmp.eq.s32.totalorder %s28, 0
      %p347 = por %p345, %p346
      %p348 = scmp.ne.s32.totalorder %s340, %s342
      %p349 = scmp.eq.s32.totalorder %s33, 1
      %p350 = por %p348, %p349
      %p351 = scmp.ne.s32.totalorder %s342, %s343
      %p352 = scmp.eq.s32.totalorder %s33, 0
      %p353 = por %p351, %p352
      %p354 = scmp.ne.s32.totalorder %s342, %s343
      %p355 = scmp.eq.s32.totalorder %s34, 1
      %p356 = por %p354, %p355
      %p358 = scmp.ne.s32.totalorder %s343, %s357
      %p359 = scmp.eq.s32.totalorder %s34, 0
      %p360 = por %p358, %p359
      %s362 = sadd.s32 %s361, 1
      %p365 = scmp.eq.s32.totalorder %s28, 1
      %p366 = scmp.ne.s32.totalorder %s361, %s363
      %p367 = scmp.eq.s32.totalorder %s28, 0
      %p368 = por %p366, %p367
      %p369 = scmp.ne.s32.totalorder %s361, %s363
      %p370 = scmp.eq.s32.totalorder %s33, 1
      %p371 = por %p369, %p370
      %p372 = scmp.ne.s32.totalorder %s363, %s364
      %p373 = scmp.eq.s32.totalorder %s33, 0
      %p374 = por %p372, %p373
      %p375 = scmp.ne.s32.totalorder %s363, %s364
      %p376 = scmp.eq.s32.totalorder %s34, 1
      %p377 = por %p375, %p376
      %p379 = scmp.ne.s32.totalorder %s364, %s378
      %p380 = scmp.eq.s32.totalorder %s34, 0
      %p381 = por %p379, %p380
      %s383 = sadd.s32 %s382, 1
      %p386 = scmp.eq.s32.totalorder %s28, 1
      %p387 = scmp.ne.s32.totalorder %s382, %s384
      %p388 = scmp.eq.s32.totalorder %s28, 0
      %p389 = por %p387, %p388
      %p390 = scmp.ne.s32.totalorder %s382, %s384
      %p391 = scmp.eq.s32.totalorder %s33, 1
      %p392 = por %p390, %p391
      %p393 = scmp.ne.s32.totalorder %s384, %s385
      %p394 = scmp.eq.s32.totalorder %s33, 0
      %p395 = por %p393, %p394
      %p396 = scmp.ne.s32.totalorder %s384, %s385
      %p397 = scmp.eq.s32.totalorder %s34, 1
      %p398 = por %p396, %p397
      %p400 = scmp.ne.s32.totalorder %s385, %s399
      %p401 = scmp.eq.s32.totalorder %s34, 0
      %p402 = por %p400, %p401
      %s404 = sadd.s32 %s403, 1
      %p407 = scmp.eq.s32.totalorder %s28, 1
      %p408 = scmp.ne.s32.totalorder %s403, %s405
      %p409 = scmp.eq.s32.totalorder %s28, 0
      %p410 = por %p408, %p409
      %p411 = scmp.ne.s32.totalorder %s403, %s405
      %p412 = scmp.eq.s32.totalorder %s33, 1
      %p413 = por %p411, %p412
      %p414 = scmp.ne.s32.totalorder %s405, %s406
      %p415 = scmp.eq.s32.totalorder %s33, 0
      %p416 = por %p414, %p415
      %p417 = scmp.ne.s32.totalorder %s405, %s406
      %p418 = scmp.eq.s32.totalorder %s34, 1
      %p419 = por %p417, %p418
      %p421 = scmp.ne.s32.totalorder %s406, %s420
      %p422 = scmp.eq.s32.totalorder %s34, 0
      %p423 = por %p421, %p422
      %s424 = ssub.s32 %s28, %s35
      %p425 = scmp.eq.s32.totalorder %s424, 0
      %s427 = sadd.s32 %s426, 1
      %s428 = scalar_select %p425, %s426, %s427
      %p431 = pneg %p425
      %p432 = scmp.eq.s32.totalorder %s28, 1
      %p433 = por %p431, %p432
      %p434 = scmp.ne.s32.totalorder %s426, %s429
      %p435 = scmp.eq.s32.totalorder %s28, 0
      %p436 = por %p434, %p435
      %p437 = scmp.ne.s32.totalorder %s426, %s429
      %p438 = scmp.eq.s32.totalorder %s33, 1
      %p439 = por %p437, %p438
      %p440 = scmp.ne.s32.totalorder %s429, %s430
      %p441 = scmp.eq.s32.totalorder %s33, 0
      %p442 = por %p440, %p441
      %p443 = scmp.ne.s32.totalorder %s429, %s430
      %p444 = scmp.eq.s32.totalorder %s34, 1
      %p445 = por %p443, %p444
      %p447 = scmp.ne.s32.totalorder %s430, %s446
      %p448 = scmp.eq.s32.totalorder %s34, 0
      %p449 = por %p447, %p448
      %p450 = scmp.le.s32.totalorder 1, %s28
      %p451 = scmp.lt.s32.totalorder %s28, 3
      %p452 = pnand %p450, %p451
      %p453 = pneg %p452
      // Predicated region
      $region9: #{tpu_custom_call.1} parent=5 // pred_check
        _
      $region10: #{tpu_custom_call.1} parent=5 // pred_check_branch
        %455 = sbr.rel (%p452) target = $region12
      $region11: #{tpu_custom_call.1} parent=5 // pred_region
        %s456 = ssub.s32 %s28, 1
        // Predicated region
        $region13: #{tpu_custom_call.1} parent=11 // pred_check
          %p457 = pneg %p101
        $region14: #{tpu_custom_call.1} parent=11 // pred_check_branch
          %459 = sbr.rel (%p457) target = $region16
        $region15: #{tpu_custom_call.1} parent=11 // pred_region
          _
        $region16: #{tpu_custom_call.1} parent=11 // pred_fallthru
          _
        // Predicated region
        $region17: #{tpu_custom_call.1} parent=11 // pred_check
          %p460 = pneg %p122
        $region18: #{tpu_custom_call.1} parent=11 // pred_check_branch
          %462 = sbr.rel (%p460) target = $region20
        $region19: #{tpu_custom_call.1} parent=11 // pred_region
          %s464 = ssub.s32 16, 16
          %465 = vsyncadd [#allocation4], %s464
          %s467 = sshll.u32 [#allocation3], 4
          %s468 = int_to_ptr.vmem [resolvable:$true] %s467
          %470 = dma.hbm_to_vmem [thread:$0]  %s3, 16, %s468, [#allocation4]
        $region20: #{tpu_custom_call.1} parent=11 // pred_fallthru
          _
        // Predicated region
        $region21: #{tpu_custom_call.1} parent=11 // pred_check
          %p471 = pneg %p143
        $region22: #{tpu_custom_call.1} parent=11 // pred_check_branch
          %473 = sbr.rel (%p471) target = $region24
        $region23: #{tpu_custom_call.1} parent=11 // pred_region
          _
        $region24: #{tpu_custom_call.1} parent=11 // pred_fallthru
          _
        // Predicated region
        $region25: #{tpu_custom_call.1} parent=11 // pred_check
          %p474 = pneg %p164
        $region26: #{tpu_custom_call.1} parent=11 // pred_check_branch
          %476 = sbr.rel (%p474) target = $region28
        $region27: #{tpu_custom_call.1} parent=11 // pred_region
          %s478 = ssub.s32 16, 16
          %479 = vsyncadd [#allocation6], %s478
          %s481 = sshll.u32 [#allocation5], 4
          %s482 = int_to_ptr.vmem [resolvable:$true] %s481
          %484 = dma.hbm_to_vmem [thread:$0]  %s5, 16, %s482, [#allocation6]
        $region28: #{tpu_custom_call.1} parent=11 // pred_fallthru
          _
        // Predicated region
        $region29: #{tpu_custom_call.1} parent=11 // pred_check
          %p485 = pneg %p185
        $region30: #{tpu_custom_call.1} parent=11 // pred_check_branch
          %487 = sbr.rel (%p485) target = $region32
        $region31: #{tpu_custom_call.1} parent=11 // pred_region
          %s489 = ssub.s32 1024, 1024
          %490 = vsyncadd [#allocation6], %s489
          %s491 = sshll.u32 [#allocation7], 4
          %s492 = int_to_ptr.vmem [resolvable:$true] %s491
          %497 = dma.hbm_to_vmem [thread:$0]  %s6, 1024, %s492, [#allocation6], 64, 64, 4
        $region32: #{tpu_custom_call.1} parent=11 // pred_fallthru
          _
        // Predicated region
        $region33: #{tpu_custom_call.1} parent=11 // pred_check
          %p498 = pneg %p206
        $region34: #{tpu_custom_call.1} parent=11 // pred_check_branch
          %500 = sbr.rel (%p498) target = $region36
        $region35: #{tpu_custom_call.1} parent=11 // pred_region
          _
        $region36: #{tpu_custom_call.1} parent=11 // pred_fallthru
          _
        // Predicated region
        $region37: #{tpu_custom_call.1} parent=11 // pred_check
          %p501 = pneg %p227
        $region38: #{tpu_custom_call.1} parent=11 // pred_check_branch
          %503 = sbr.rel (%p501) target = $region40
        $region39: #{tpu_custom_call.1} parent=11 // pred_region
          _
        $region40: #{tpu_custom_call.1} parent=11 // pred_fallthru
          _
        // Predicated region
        $region41: #{tpu_custom_call.1} parent=11 // pred_check
          %p504 = pneg %p248
        $region42: #{tpu_custom_call.1} parent=11 // pred_check_branch
          %506 = sbr.rel (%p504) target = $region44
        $region43: #{tpu_custom_call.1} parent=11 // pred_region
          _
        $region44: #{tpu_custom_call.1} parent=11 // pred_fallthru
          _
        // Predicated region
        $region45: #{tpu_custom_call.1} parent=11 // pred_check
          %p507 = pneg %p269
        $region46: #{tpu_custom_call.1} parent=11 // pred_check_branch
          %509 = sbr.rel (%p507) target = $region48
        $region47: #{tpu_custom_call.1} parent=11 // pred_region
          _
        $region48: #{tpu_custom_call.1} parent=11 // pred_fallthru
          _
        // Predicated region
        $region49: #{tpu_custom_call.1} parent=11 // pred_check
          %p510 = pneg %p290
        $region50: #{tpu_custom_call.1} parent=11 // pred_check_branch
          %512 = sbr.rel (%p510) target = $region52
        $region51: #{tpu_custom_call.1} parent=11 // pred_region
          _
        $region52: #{tpu_custom_call.1} parent=11 // pred_fallthru
          _
        // Predicated region
        $region53: #{tpu_custom_call.1} parent=11 // pred_check
          %p513 = pneg %p311
        $region54: #{tpu_custom_call.1} parent=11 // pred_check_branch
          %515 = sbr.rel (%p513) target = $region56
        $region55: #{tpu_custom_call.1} parent=11 // pred_region
          _
        $region56: #{tpu_custom_call.1} parent=11 // pred_fallthru
          _
        // Predicated region
        $region57: #{tpu_custom_call.1} parent=11 // pred_check
          %p516 = pneg %p332
        $region58: #{tpu_custom_call.1} parent=11 // pred_check_branch
          %518 = sbr.rel (%p516) target = $region60
        $region59: #{tpu_custom_call.1} parent=11 // pred_region
          _
        $region60: #{tpu_custom_call.1} parent=11 // pred_fallthru
          _
        // Predicated region
        $region61: #{tpu_custom_call.1} parent=11 // pred_check
          %p519 = pneg %p353
        $region62: #{tpu_custom_call.1} parent=11 // pred_check_branch
          %521 = sbr.rel (%p519) target = $region64
        $region63: #{tpu_custom_call.1} parent=11 // pred_region
          _
        $region64: #{tpu_custom_call.1} parent=11 // pred_fallthru
          _
        // Predicated region
        $region65: #{tpu_custom_call.1} parent=11 // pred_check
          %p522 = pneg %p374
        $region66: #{tpu_custom_call.1} parent=11 // pred_check_branch
          %524 = sbr.rel (%p522) target = $region68
        $region67: #{tpu_custom_call.1} parent=11 // pred_region
          _
        $region68: #{tpu_custom_call.1} parent=11 // pred_fallthru
          _
        // Predicated region
        $region69: #{tpu_custom_call.1} parent=11 // pred_check
          %p525 = pneg %p395
        $region70: #{tpu_custom_call.1} parent=11 // pred_check_branch
          %527 = sbr.rel (%p525) target = $region72
        $region71: #{tpu_custom_call.1} parent=11 // pred_region
          _
        $region72: #{tpu_custom_call.1} parent=11 // pred_fallthru
          _
        // Predicated region
        $region73: #{tpu_custom_call.1} parent=11 // pred_check
          %p528 = pneg %p416
        $region74: #{tpu_custom_call.1} parent=11 // pred_check_branch
          %530 = sbr.rel (%p528) target = $region76
        $region75: #{tpu_custom_call.1} parent=11 // pred_region
          _
        $region76: #{tpu_custom_call.1} parent=11 // pred_fallthru
          _
      $region12: #{tpu_custom_call.1} parent=5 // pred_fallthru
        _
      %p531 = scmp.lt.s32.totalorder %s28, 2
      // Predicated region
      $region77: #{tpu_custom_call.1} parent=5 // pred_check
        %p532 = pneg %p531
      $region78: #{tpu_custom_call.1} parent=5 // pred_check_branch
        %534 = sbr.rel (%p532) target = $region80
      $region79: #{tpu_custom_call.1} parent=5 // pred_region
        // Predicated region
        $region81: #{tpu_custom_call.1} parent=79 // pred_check
          %p535 = pneg %p48
        $region82: #{tpu_custom_call.1} parent=79 // pred_check_branch
          %537 = sbr.rel (%p535) target = $region84
        $region83: #{tpu_custom_call.1} parent=79 // pred_region
          %p538 = scmp.lt.s32.totalorder %s28, 1
          %s539 = scalar_select %p538, %s28, 1
          %s540 = smul.addr %s539, 2
          %s541 = smul.addr %s540, 4
          %s542 = scalar_lea.vmem %s0, %s541
        $region84: #{tpu_custom_call.1} parent=79 // pred_fallthru
          _
        // Predicated region
        $region85: #{tpu_custom_call.1} parent=79 // pred_check
          %p543 = pneg %p74
        $region86: #{tpu_custom_call.1} parent=79 // pred_check_branch
          %545 = sbr.rel (%p543) target = $region88
        $region87: #{tpu_custom_call.1} parent=79 // pred_region
          %p546 = scmp.lt.s32.totalorder %s28, 1
          %s547 = scalar_select %p546, %s28, 1
          %s548 = scalar_lea.vmem %s1, %s547
        $region88: #{tpu_custom_call.1} parent=79 // pred_fallthru
          _
      $region80: #{tpu_custom_call.1} parent=5 // pred_fallthru
        _
      %p549 = scmp.le.s32.totalorder 1, %s28
      %p550 = scmp.lt.s32.totalorder %s28, 3
      %p551 = pnand %p549, %p550
      %p552 = pneg %p551
      // Predicated region
      $region89: #{tpu_custom_call.1} parent=5 // pred_check
        _
      $region90: #{tpu_custom_call.1} parent=5 // pred_check_branch
        %554 = sbr.rel (%p551) target = $region92
      $region91: #{tpu_custom_call.1} parent=5 // pred_region
        %s555 = ssub.s32 %s28, 1
        // Predicated region
        $region93: #{tpu_custom_call.1} parent=91 // pred_check
          %p556 = pneg %p122
        $region94: #{tpu_custom_call.1} parent=91 // pred_check_branch
          %558 = sbr.rel (%p556) target = $region96
        $region95: #{tpu_custom_call.1} parent=91 // pred_region
          %559 = dma.done [#allocation4], 16
        $region96: #{tpu_custom_call.1} parent=91 // pred_fallthru
          _
        // Predicated region
        $region97: #{tpu_custom_call.1} parent=91 // pred_check
          %p560 = pneg %p164
        $region98: #{tpu_custom_call.1} parent=91 // pred_check_branch
          %562 = sbr.rel (%p560) target = $region100
        $region99: #{tpu_custom_call.1} parent=91 // pred_region
          %563 = dma.done [#allocation6], 16
        $region100: #{tpu_custom_call.1} parent=91 // pred_fallthru
          _
        // Predicated region
        $region101: #{tpu_custom_call.1} parent=91 // pred_check
          %p564 = pneg %p185
        $region102: #{tpu_custom_call.1} parent=91 // pred_check_branch
          %566 = sbr.rel (%p564) target = $region104
        $region103: #{tpu_custom_call.1} parent=91 // pred_region
          %567 = dma.done [#allocation6], 1024
        $region104: #{tpu_custom_call.1} parent=91 // pred_fallthru
          _
        %p568 = scmp.lt.s32.totalorder %s33, 1
        %s569 = scalar_select %p568, %s33, 1
        %s570 = smul.addr %s569, 2
        %s571 = smul.addr %s570, 4
        %s572 = scalar_lea.vmem %s0, %s571
        %p573 = pneg %p54
        %p574 = pneg %p51
        %p575 = scmp.lt.s32.totalorder %s33, 1
        %s576 = scalar_select %p575, %s33, 1
        %s577 = scalar_lea.vmem %s1, %s576
        %p578 = pneg %p80
        %p579 = pneg %p77
        %p580 = pneg %p101
        %p581 = pneg %p98
        %p582 = pneg %p122
        %p583 = pneg %p119
        %p584 = pneg %p143
        %p585 = pneg %p140
        %p586 = pneg %p164
        %p587 = pneg %p161
        %p588 = pneg %p185
        %p589 = pneg %p182
        %p590 = pneg %p206
        %p591 = pneg %p203
        %p592 = pneg %p227
        %p593 = pneg %p224
        %p594 = pneg %p248
        %p595 = pneg %p245
        %p596 = pneg %p269
        %p597 = pneg %p266
        %p598 = pneg %p290
        %p599 = pneg %p287
        %p600 = pneg %p311
        %p601 = pneg %p308
        %p602 = pneg %p332
        %p603 = pneg %p329
        %p604 = pneg %p353
        %p605 = pneg %p350
        %p606 = pneg %p374
        %p607 = pneg %p371
        %p608 = pneg %p395
        %p609 = pneg %p392
        %p610 = pneg %p416
        %p611 = pneg %p413
        %p612 = pneg %p442
        %p613 = pneg %p439
        %p614 = scmp.lt.s32.totalorder %s33, 1
        %s615 = scalar_select %p614, %s33, 1
        %s616 = smul.addr %s615, 4
        %s617 = scalar_lea.vmem %s18, %s616
        %p618 = scmp.lt.s32.totalorder %s33, 1
        %s619 = scalar_select %p618, %s33, 1
        %s620 = smul.addr %s619, 2
        %s621 = smul.addr %s620, 4
        %s622 = scalar_lea.vmem %s0, %s621
        %p623 = scmp.lt.s32.totalorder %s33, 1
        %s624 = scalar_select %p623, %s33, 1
        %s625 = scalar_lea.vmem %s1, %s624
        %p626 = scmp.lt.s32.totalorder %s33, 1
        %s627 = scalar_select %p626, %s33, 1
        %s628 = smul.addr %s627, 4
        %s629 = scalar_lea.vmem %s18, %s628
        %v631 = vld [vmem:[%s622] sm:$0xf]
        %v632 = vld [vmem:[%s622 + $0x4] sm:$0xf]
        %v633 = vld [vmem:[%s625] sm:$0x1]
        %vm634 = vcmask 122880
        %v635 = vsel %vm634, %v633, 0.0
        %636 = vadd.xlane.f32.xlu0 %v635
        %v637 = vpop.xlane.xlu0 %636
        %v638 = vmax.f32 %v637, 1.0
        %v639 = vpack.c.bf16 %v633, %v633
        %v642 = vunpack.c.l.b16 %v631
        %v643 = vunpack.c.l.b16 %v632
        %v644 = vpack.c.b16 %v643, %v642
        %vm646 = vcmask 130048
        %v648 = vsel %vm646, %v639, 0
        %650 = vmatprep.subr.bf16.mxu0 0
        %651 = vmatpush1.bf16.msra.mxu0 %v644
        %652 = vmatprep.subr.bf16.mxu0 0
        %653 = vmatpush1.bf16.msra.mxu0 0
        %654 = vmatprep.subr.bf16.mxu0 0
        %655 = vmatpush1.bf16.msra.mxu0 0
        %656 = vmatprep.subr.bf16.mxu0 0
        %657 = vmatpush1.bf16.msra.mxu0 0
        %658 = vmatprep.subr.bf16.mxu0 0
        %659 = vmatpush1.bf16.msra.mxu0 0
        %660 = vmatprep.subr.bf16.mxu0 0
        %661 = vmatpush1.bf16.msra.mxu0 0
        %662 = vmatprep.subr.bf16.mxu0 0
        %663 = vmatpush1.bf16.msra.mxu0 0
        %664 = vmatprep.subr.bf16.mxu0 0
        %665 = vmatpush1.bf16.msra.mxu0 0
        %666 = vmatprep.subr.bf16.mxu0 0
        %667 = vmatpush1.bf16.msra.mxu0 0
        %668 = vmatprep.subr.bf16.mxu0 0
        %669 = vmatpush1.bf16.msra.mxu0 0
        %670 = vmatprep.subr.bf16.mxu0 0
        %671 = vmatpush1.bf16.msra.mxu0 0
        %672 = vmatprep.subr.bf16.mxu0 0
        %673 = vmatpush1.bf16.msra.mxu0 0
        %674 = vmatprep.subr.bf16.mxu0 0
        %675 = vmatpush1.bf16.msra.mxu0 0
        %676 = vmatprep.subr.bf16.mxu0 0
        %677 = vmatpush1.bf16.msra.mxu0 0
        %678 = vmatprep.subr.bf16.mxu0 0
        %679 = vmatpush1.bf16.msra.mxu0 0
        %680 = vmatprep.subr.bf16.mxu0 0
        %681 = vmatpush1.bf16.msra.mxu0 0
        %682 = vmatprep.mubr.bf16.mxu0 0
        %683 = vmatmul.mubr.bf16.gmra.mrb[0].mxu0 %v648
        %v684 = vpop.f32.mrb[0].mxu0
        %v685 = vadd.f32 0.0, %v684
        %v686 = vpop.f32.mrb[0].mxu0
        %v687 = vpop.f32.mrb[0].mxu0
        %v688 = vpop.f32.mrb[0].mxu0
        %689 = vdwg.mxu0
        %v690 = vrcp.pop %v638
        %v691 = vmul.f32 %v685, %v690
        %v692 = vld [vmem:[%s2] sm:$0xf]
        %v693 = vld [vmem:[%s2 + $0x4] sm:$0xf]
        %v694 = vld [vmem:[%s2 + $0x8] sm:$0xf]
        %v695 = vld [vmem:[%s2 + $0xc] sm:$0xf]
        %v696 = vld [vmem:[%s2 + $0x10] sm:$0xf]
        %v697 = vld [vmem:[%s2 + $0x14] sm:$0xf]
        %v698 = vld [vmem:[%s2 + $0x18] sm:$0xf]
        %v699 = vld [vmem:[%s2 + $0x1c] sm:$0xf]
        %v700 = vld [vmem:[%s2 + $0x20] sm:$0xf]
        %v701 = vld [vmem:[%s2 + $0x24] sm:$0xf]
        %v702 = vld [vmem:[%s2 + $0x28] sm:$0xf]
        %v703 = vld [vmem:[%s2 + $0x2c] sm:$0xf]
        %v704 = vld [vmem:[%s2 + $0x30] sm:$0xf]
        %v705 = vld [vmem:[%s2 + $0x34] sm:$0xf]
        %v706 = vld [vmem:[%s2 + $0x38] sm:$0xf]
        %v707 = vld [vmem:[%s2 + $0x3c] sm:$0xf]
        %v708 = vld [vmem:[#allocation3] sm:$0x1]
        %v710 = vlaneseq
        %v711 = vshrl.u32 %v710, 7
        %v712 = vsub.s32 0, %v711
        %v713 = vrot.slane %v708, %v712
        %v731 = vunpack.c.l.b16 %v692
        %v732 = vunpack.c.l.b16 %v693
        %v733 = vunpack.c.l.b16 %v694
        %v734 = vunpack.c.l.b16 %v695
        %v735 = vunpack.c.l.b16 %v696
        %v736 = vunpack.c.l.b16 %v697
        %v737 = vunpack.c.l.b16 %v698
        %v738 = vunpack.c.l.b16 %v699
        %v739 = vunpack.c.l.b16 %v700
        %v740 = vunpack.c.l.b16 %v701
        %v741 = vunpack.c.l.b16 %v702
        %v742 = vunpack.c.l.b16 %v703
        %v743 = vunpack.c.l.b16 %v704
        %v744 = vunpack.c.l.b16 %v705
        %v745 = vunpack.c.l.b16 %v706
        %v746 = vunpack.c.l.b16 %v707
        %v747 = vpack.c.b16 %v732, %v731
        %v748 = vpack.c.b16 %v734, %v733
        %v749 = vpack.c.b16 %v736, %v735
        %v750 = vpack.c.b16 %v738, %v737
        %v751 = vpack.c.b16 %v740, %v739
        %v752 = vpack.c.b16 %v742, %v741
        %v753 = vpack.c.b16 %v744, %v743
        %v754 = vpack.c.b16 %v746, %v745
        %763 = vmatprep.subr.bf16.mxu0 0
        %764 = vmatpush1.bf16.msra.mxu0 %v747
        %765 = vmatprep.subr.bf16.mxu0 0
        %766 = vmatpush1.bf16.msra.mxu0 %v748
        %767 = vmatprep.subr.bf16.mxu0 0
        %768 = vmatpush1.bf16.msra.mxu0 %v749
        %769 = vmatprep.subr.bf16.mxu0 0
        %770 = vmatpush1.bf16.msra.mxu0 %v750
        %771 = vmatprep.subr.bf16.mxu0 0
        %772 = vmatpush1.bf16.msra.mxu0 %v751
        %773 = vmatprep.subr.bf16.mxu0 0
        %774 = vmatpush1.bf16.msra.mxu0 %v752
        %775 = vmatprep.subr.bf16.mxu0 0
        %776 = vmatpush1.bf16.msra.mxu0 %v753
        %777 = vmatprep.subr.bf16.mxu0 0
        %778 = vmatpush1.bf16.msra.mxu0 %v754
        %779 = vmatprep.subr.bf16.mxu0 0
        %780 = vmatpush1.bf16.msra.mxu0 0
        %781 = vmatprep.subr.bf16.mxu0 0
        %782 = vmatpush1.bf16.msra.mxu0 0
        %783 = vmatprep.subr.bf16.mxu0 0
        %784 = vmatpush1.bf16.msra.mxu0 0
        %785 = vmatprep.subr.bf16.mxu0 0
        %786 = vmatpush1.bf16.msra.mxu0 0
        %787 = vmatprep.subr.bf16.mxu0 0
        %788 = vmatpush1.bf16.msra.mxu0 0
        %789 = vmatprep.subr.bf16.mxu0 0
        %790 = vmatpush1.bf16.msra.mxu0 0
        %791 = vmatprep.subr.bf16.mxu0 0
        %792 = vmatpush1.bf16.msra.mxu0 0
        %793 = vmatprep.subr.bf16.mxu0 0
        %794 = vmatpush1.bf16.msra.mxu0 0
        %795 = vmatprep.mubr.bf16.mxu0 0
        %796 = vmatmul.mubr.bf16.gmra.mrb[0].mxu0 %v644
        %v797 = vpop.f32.mrb[0].mxu0
        %v798 = vadd.f32 %v713, %v797
        %v799 = vpop.f32.mrb[0].mxu0
        %v800 = vpop.f32.mrb[0].mxu0
        %v801 = vadd.f32 %v713, %v800
        %v802 = vpop.f32.mrb[0].mxu0
        %803 = vdwg.mxu0
        %v804 = vld [vmem:[%s4] sm:$0xf]
        %v805 = vld [vmem:[%s4 + $0x4] sm:$0xf]
        %v806 = vld [vmem:[%s4 + $0x8] sm:$0xf]
        %v807 = vld [vmem:[%s4 + $0xc] sm:$0xf]
        %v808 = vld [vmem:[%s4 + $0x10] sm:$0xf]
        %v809 = vld [vmem:[%s4 + $0x14] sm:$0xf]
        %v810 = vld [vmem:[%s4 + $0x18] sm:$0xf]
        %v811 = vld [vmem:[%s4 + $0x1c] sm:$0xf]
        %v812 = vld [vmem:[%s4 + $0x20] sm:$0xf]
        %v813 = vld [vmem:[%s4 + $0x24] sm:$0xf]
        %v814 = vld [vmem:[%s4 + $0x28] sm:$0xf]
        %v815 = vld [vmem:[%s4 + $0x2c] sm:$0xf]
        %v816 = vld [vmem:[%s4 + $0x30] sm:$0xf]
        %v817 = vld [vmem:[%s4 + $0x34] sm:$0xf]
        %v818 = vld [vmem:[%s4 + $0x38] sm:$0xf]
        %v819 = vld [vmem:[%s4 + $0x3c] sm:$0xf]
        %v820 = vld [vmem:[#allocation5] sm:$0x1]
        %v822 = vlaneseq
        %v823 = vshrl.u32 %v822, 7
        %v824 = vsub.s32 0, %v823
        %v825 = vrot.slane %v820, %v824
        %v843 = vunpack.c.l.b16 %v804
        %v844 = vunpack.c.l.b16 %v805
        %v845 = vunpack.c.l.b16 %v806
        %v846 = vunpack.c.l.b16 %v807
        %v847 = vunpack.c.l.b16 %v808
        %v848 = vunpack.c.l.b16 %v809
        %v849 = vunpack.c.l.b16 %v810
        %v850 = vunpack.c.l.b16 %v811
        %v851 = vunpack.c.l.b16 %v812
        %v852 = vunpack.c.l.b16 %v813
        %v853 = vunpack.c.l.b16 %v814
        %v854 = vunpack.c.l.b16 %v815
        %v855 = vunpack.c.l.b16 %v816
        %v856 = vunpack.c.l.b16 %v817
        %v857 = vunpack.c.l.b16 %v818
        %v858 = vunpack.c.l.b16 %v819
        %v859 = vpack.c.b16 %v844, %v843
        %v860 = vpack.c.b16 %v846, %v845
        %v861 = vpack.c.b16 %v848, %v847
        %v862 = vpack.c.b16 %v850, %v849
        %v863 = vpack.c.b16 %v852, %v851
        %v864 = vpack.c.b16 %v854, %v853
        %v865 = vpack.c.b16 %v856, %v855
        %v866 = vpack.c.b16 %v858, %v857
        %875 = vmatprep.subr.bf16.mxu0 0
        %876 = vmatpush1.bf16.msra.mxu0 %v859
        %877 = vmatprep.subr.bf16.mxu0 0
        %878 = vmatpush1.bf16.msra.mxu0 %v860
        %879 = vmatprep.subr.bf16.mxu0 0
        %880 = vmatpush1.bf16.msra.mxu0 %v861
        %881 = vmatprep.subr.bf16.mxu0 0
        %882 = vmatpush1.bf16.msra.mxu0 %v862
        %883 = vmatprep.subr.bf16.mxu0 0
        %884 = vmatpush1.bf16.msra.mxu0 %v863
        %885 = vmatprep.subr.bf16.mxu0 0
        %886 = vmatpush1.bf16.msra.mxu0 %v864
        %887 = vmatprep.subr.bf16.mxu0 0
        %888 = vmatpush1.bf16.msra.mxu0 %v865
        %889 = vmatprep.subr.bf16.mxu0 0
        %890 = vmatpush1.bf16.msra.mxu0 %v866
        %891 = vmatprep.subr.bf16.mxu0 0
        %892 = vmatpush1.bf16.msra.mxu0 0
        %893 = vmatprep.subr.bf16.mxu0 0
        %894 = vmatpush1.bf16.msra.mxu0 0
        %895 = vmatprep.subr.bf16.mxu0 0
        %896 = vmatpush1.bf16.msra.mxu0 0
        %897 = vmatprep.subr.bf16.mxu0 0
        %898 = vmatpush1.bf16.msra.mxu0 0
        %899 = vmatprep.subr.bf16.mxu0 0
        %900 = vmatpush1.bf16.msra.mxu0 0
        %901 = vmatprep.subr.bf16.mxu0 0
        %902 = vmatpush1.bf16.msra.mxu0 0
        %903 = vmatprep.subr.bf16.mxu0 0
        %904 = vmatpush1.bf16.msra.mxu0 0
        %905 = vmatprep.subr.bf16.mxu0 0
        %906 = vmatpush1.bf16.msra.mxu0 0
        %907 = vmatprep.mubr.bf16.mxu0 0
        %908 = vmatmul.mubr.bf16.gmra.mrb[0].mxu0 %v644
        %v909 = vpop.f32.mrb[0].mxu0
        %v910 = vadd.f32 %v825, %v909
        %v911 = vpop.f32.mrb[0].mxu0
        %v912 = vpop.f32.mrb[0].mxu0
        %v913 = vadd.f32 %v825, %v912
        %v914 = vpop.f32.mrb[0].mxu0
        %915 = vdwg.mxu0
        %v916 = vpack.c.bf16 %v691, %v691
        %v917 = vld [vmem:[#allocation7] sm:$0xf]
        %v918 = vld [vmem:[#allocation7 + $0x4] sm:$0xf]
        %v919 = vld [vmem:[#allocation7 + $0x8] sm:$0xf]
        %v920 = vld [vmem:[#allocation7 + $0xc] sm:$0xf]
        %v921 = vld [vmem:[#allocation7 + $0x10] sm:$0xf]
        %v922 = vld [vmem:[#allocation7 + $0x14] sm:$0xf]
        %v923 = vld [vmem:[#allocation7 + $0x18] sm:$0xf]
        %v924 = vld [vmem:[#allocation7 + $0x1c] sm:$0xf]
        %v925 = vld [vmem:[#allocation7 + $0x20] sm:$0xf]
        %v926 = vld [vmem:[#allocation7 + $0x24] sm:$0xf]
        %v927 = vld [vmem:[#allocation7 + $0x28] sm:$0xf]
        %v928 = vld [vmem:[#allocation7 + $0x2c] sm:$0xf]
        %v929 = vld [vmem:[#allocation7 + $0x30] sm:$0xf]
        %v930 = vld [vmem:[#allocation7 + $0x34] sm:$0xf]
        %v931 = vld [vmem:[#allocation7 + $0x38] sm:$0xf]
        %v932 = vld [vmem:[#allocation7 + $0x3c] sm:$0xf]
        %v933 = vld [vmem:[%s7] sm:$0x1]
        %v950 = vunpack.c.l.b16 %v917
        %v951 = vunpack.c.l.b16 %v918
        %v952 = vunpack.c.l.b16 %v919
        %v953 = vunpack.c.l.b16 %v920
        %v954 = vunpack.c.l.b16 %v921
        %v955 = vunpack.c.l.b16 %v922
        %v956 = vunpack.c.l.b16 %v923
        %v957 = vunpack.c.l.b16 %v924
        %v958 = vunpack.c.l.b16 %v925
        %v959 = vunpack.c.l.b16 %v926
        %v960 = vunpack.c.l.b16 %v927
        %v961 = vunpack.c.l.b16 %v928
        %v962 = vunpack.c.l.b16 %v929
        %v963 = vunpack.c.l.b16 %v930
        %v964 = vunpack.c.l.b16 %v931
        %v965 = vunpack.c.l.b16 %v932
        %v966 = vpack.c.b16 %v951, %v950
        %v967 = vpack.c.b16 %v953, %v952
        %v968 = vpack.c.b16 %v955, %v954
        %v969 = vpack.c.b16 %v957, %v956
        %v970 = vpack.c.b16 %v959, %v958
        %v971 = vpack.c.b16 %v961, %v960
        %v972 = vpack.c.b16 %v963, %v962
        %v973 = vpack.c.b16 %v965, %v964
        %982 = vmatprep.subr.bf16.mxu0 0
        %983 = vmatpush1.bf16.msra.mxu0 %v966
        %984 = vmatprep.subr.bf16.mxu0 0
        %985 = vmatpush1.bf16.msra.mxu0 %v967
        %986 = vmatprep.subr.bf16.mxu0 0
        %987 = vmatpush1.bf16.msra.mxu0 %v968
        %988 = vmatprep.subr.bf16.mxu0 0
        %989 = vmatpush1.bf16.msra.mxu0 %v969
        %990 = vmatprep.subr.bf16.mxu0 0
        %991 = vmatpush1.bf16.msra.mxu0 %v970
        %992 = vmatprep.subr.bf16.mxu0 0
        %993 = vmatpush1.bf16.msra.mxu0 %v971
        %994 = vmatprep.subr.bf16.mxu0 0
        %995 = vmatpush1.bf16.msra.mxu0 %v972
        %996 = vmatprep.subr.bf16.mxu0 0
        %997 = vmatpush1.bf16.msra.mxu0 %v973
        %998 = vmatprep.subr.bf16.mxu0 0
        %999 = vmatpush1.bf16.msra.mxu0 0
        %1000 = vmatprep.subr.bf16.mxu0 0
        %1001 = vmatpush1.bf16.msra.mxu0 0
        %1002 = vmatprep.subr.bf16.mxu0 0
        %1003 = vmatpush1.bf16.msra.mxu0 0
        %1004 = vmatprep.subr.bf16.mxu0 0
        %1005 = vmatpush1.bf16.msra.mxu0 0
        %1006 = vmatprep.subr.bf16.mxu0 0
        %1007 = vmatpush1.bf16.msra.mxu0 0
        %1008 = vmatprep.subr.bf16.mxu0 0
        %1009 = vmatpush1.bf16.msra.mxu0 0
        %1010 = vmatprep.subr.bf16.mxu0 0
        %1011 = vmatpush1.bf16.msra.mxu0 0
        %1012 = vmatprep.subr.bf16.mxu0 0
        %1013 = vmatpush1.bf16.msra.mxu0 0
        %1014 = vmatprep.mubr.bf16.mxu0 0
        %1015 = vmatmul.mubr.bf16.gmra.mrb[0].mxu0 %v916
        %v1016 = vpop.f32.mrb[0].mxu0
        %v1017 = vadd.f32 %v933, %v1016
        %v1018 = vpop.f32.mrb[0].mxu0
        %v1019 = vpop.f32.mrb[0].mxu0
        %v1020 = vpop.f32.mrb[0].mxu0
        %1021 = vdwg.mxu0
        %v1022 = vpack.c.bf16 %v1017, %v1017
        %v1023 = vpack.c.bf16 %v801, %v798
        %1024 = vmatprep.subr.bf16.mxu0 0
        %1025 = vmatpush1.bf16.xpose.msra.mxu0 %v1023
        %1026 = vmatprep.subr.bf16.mxu0 0
        %1027 = vmatpush1.bf16.xpose.msra.mxu0 0
        %1028 = vmatprep.subr.bf16.mxu0 0
        %1029 = vmatpush1.bf16.xpose.msra.mxu0 0
        %1030 = vmatprep.subr.bf16.mxu0 0
        %1031 = vmatpush1.bf16.xpose.msra.mxu0 0
        %1032 = vmatprep.subr.bf16.mxu0 0
        %1033 = vmatpush1.bf16.xpose.msra.mxu0 0
        %1034 = vmatprep.subr.bf16.mxu0 0
        %1035 = vmatpush1.bf16.xpose.msra.mxu0 0
        %1036 = vmatprep.subr.bf16.mxu0 0
        %1037 = vmatpush1.bf16.xpose.msra.mxu0 0
        %1038 = vmatprep.subr.bf16.mxu0 0
        %1039 = vmatpush1.bf16.xpose.msra.mxu0 0
        %1040 = vmatprep.subr.bf16.mxu0 0
        %1041 = vmatpush1.bf16.xpose.msra.mxu0 0
        %1042 = vmatprep.subr.bf16.mxu0 0
        %1043 = vmatpush1.bf16.xpose.msra.mxu0 0
        %1044 = vmatprep.subr.bf16.mxu0 0
        %1045 = vmatpush1.bf16.xpose.msra.mxu0 0
        %1046 = vmatprep.subr.bf16.mxu0 0
        %1047 = vmatpush1.bf16.xpose.msra.mxu0 0
        %1048 = vmatprep.subr.bf16.mxu0 0
        %1049 = vmatpush1.bf16.xpose.msra.mxu0 0
        %1050 = vmatprep.subr.bf16.mxu0 0
        %1051 = vmatpush1.bf16.xpose.msra.mxu0 0
        %1052 = vmatprep.subr.bf16.mxu0 0
        %1053 = vmatpush1.bf16.xpose.msra.mxu0 0
        %1054 = vmatprep.subr.bf16.mxu0 0
        %1055 = vmatpush1.bf16.xpose.msra.mxu0 0
        %1056 = vmatprep.mubr.bf16.mxu0 0
        %1057 = vmatmul.mubr.bf16.gmra.mrb[0].mxu0 %v1022
        %v1058 = vpop.f32.mrb[0].mxu0
        %v1059 = vadd.f32 0.0, %v1058
        %v1060 = vpop.f32.mrb[0].mxu0
        %v1061 = vpop.f32.mrb[0].mxu0
        %v1062 = vpop.f32.mrb[0].mxu0
        %1063 = vdwg.mxu0
        %v1064 = vmul.f32 %v1059, 0.088388346
        %v1065 = vsel %vm634, %v1064, -inf
        %1066 = vmax.xlane.f32.xlu0 %v1065
        %v1067 = vpop.xlane.xlu0 %1066
        %v1068 = vsub.f32 %v1064, %v1067
        %v1069 = vmul.f32 %v1068, 1.442695
        %v1070 = vpow.pop %v1069
        %v1071 = vsel %vm634, %v1070, 0.0
        %1072 = vadd.xlane.f32.xlu0 %v1071
        %v1073 = vpop.xlane.xlu0 %1072
        %v1074 = vrcp.pop %v1073
        %v1075 = vmul.f32 %v1070, %v1074
        %1076 = vxpose.xlu0.b32.start [1/16] %v1075, 128
        %1077 = vxpose.xlu0.b32.cont [2/16] 0.0, 128
        %1078 = vxpose.xlu0.b32.cont [3/16] 0.0, 128
        %1079 = vxpose.xlu0.b32.cont [4/16] 0.0, 128
        %1080 = vxpose.xlu0.b32.cont [5/16] 0.0, 128
        %1081 = vxpose.xlu0.b32.cont [6/16] 0.0, 128
        %1082 = vxpose.xlu0.b32.cont [7/16] 0.0, 128
        %1083 = vxpose.xlu0.b32.cont [8/16] 0.0, 128
        %1084 = vxpose.xlu0.b32.cont [9/16] 0.0, 128
        %1085 = vxpose.xlu0.b32.cont [10/16] 0.0, 128
        %1086 = vxpose.xlu0.b32.cont [11/16] 0.0, 128
        %1087 = vxpose.xlu0.b32.cont [12/16] 0.0, 128
        %1088 = vxpose.xlu0.b32.cont [13/16] 0.0, 128
        %1089 = vxpose.xlu0.b32.cont [14/16] 0.0, 128
        %1090 = vxpose.xlu0.b32.cont [15/16] 0.0, 128
        %1091 = vxpose.xlu0.b32.end [16/16] 0.0, 128
        %v1092 = vpop.trf.xlu0
        %v1093 = vpop.trf.xlu0
        %v1094 = vpop.trf.xlu0
        %v1095 = vpop.trf.xlu0
        %v1096 = vpop.trf.xlu0
        %v1097 = vpop.trf.xlu0
        %v1098 = vpop.trf.xlu0
        %v1099 = vpop.trf.xlu0
        %v1100 = vpop.trf.xlu0
        %v1101 = vpop.trf.xlu0
        %v1102 = vpop.trf.xlu0
        %v1103 = vpop.trf.xlu0
        %v1104 = vpop.trf.xlu0
        %v1105 = vpop.trf.xlu0
        %v1106 = vpop.trf.xlu0
        %v1107 = vpop.trf.xlu0
        %v1108 = vunpack.c.l.bf16 %v631
        %v1109 = vunpack.c.l.bf16 %v632
        %1111 = vset.pattern.permute.xlu0 0
        %1112 = vperm.xlu0 %1111, %v1092
        %v1113 = vpop.permute.xlu0 %1112
        %1116 = vset.pattern.permute.xlu0 0
        %1117 = vperm.xlu0 %1116, %v1093
        %v1118 = vpop.permute.xlu0 %1117
        %v1120 = vmul.f32 %v1113, %v910
        %v1121 = vmul.f32 %v1118, %v913
        %v1122 = vadd.f32 %v1108, %v1120
        %v1123 = vadd.f32 %v1109, %v1121
        %v1124 = vlaneseq
        %v1125 = vand.u32 %v1124, 127
        %vm1126 = vcmp.gt.s32.totalorder %v1125, 0
        %v1127 = vsel %vm1126, 1, 0
        %v1128 = vcvt.s32.f32 %v1127
        %vm1129 = vcmp.lt.s32.totalorder %v1125, 127
        %v1130 = vsel %vm1129, 1, 0
        %v1131 = vcvt.s32.f32 %v1130
        %v1132 = vpack.c.bf16 %v1123, %v1122
        %1133 = vrot.lane.b32.xlu0 %v1122, 1
        %v1134 = vpop.permute.xlu0 %1133
        %1135 = vrot.lane.b32.xlu0 %v1123, 1
        %v1136 = vpop.permute.xlu0 %1135
        %v1137 = vmul.f32 %v1134, %v1128
        %v1138 = vmul.f32 %v1136, %v1128
        %v1139 = vpack.c.bf16 %v1138, %v1137
        %1140 = vrot.lane.b32.xlu0 %v1122, 127
        %v1141 = vpop.permute.xlu0 %1140
        %1142 = vrot.lane.b32.xlu0 %v1123, 127
        %v1143 = vpop.permute.xlu0 %1142
        %v1144 = vmul.f32 %v1141, %v1131
        %v1145 = vmul.f32 %v1143, %v1131
        %v1146 = vpack.c.bf16 %v1145, %v1144
        %v1147 = vld [vmem:[%s8] sm:$0xf]
        %v1148 = vld [vmem:[%s8 + $0x4] sm:$0xf]
        %v1149 = vld [vmem:[%s8 + $0x8] sm:$0xf]
        %v1150 = vld [vmem:[%s8 + $0xc] sm:$0xf]
        %s1151 = scalar_lea.vmem %s8, 16
        %v1152 = vld [vmem:[%s1151] sm:$0xf]
        %v1153 = vld [vmem:[%s1151 + $0x4] sm:$0xf]
        %v1154 = vld [vmem:[%s1151 + $0x8] sm:$0xf]
        %v1155 = vld [vmem:[%s1151 + $0xc] sm:$0xf]
        %v1160 = vunpack.c.l.b16 %v1152
        %v1161 = vunpack.c.l.b16 %v1153
        %v1162 = vunpack.c.l.b16 %v1154
        %v1163 = vunpack.c.l.b16 %v1155
        %v1164 = vpack.c.b16 %v1161, %v1160
        %v1165 = vpack.c.b16 %v1163, %v1162
        %v1167 = vsel %vm646, %v1164, 0
        %v1170 = vsel %vm646, %v1165, 0
        %1172 = vmatprep.subr.bf16.mxu0 0
        %1173 = vmatpush1.bf16.msra.mxu0 %v1132
        %1174 = vmatprep.subr.bf16.mxu0 0
        %1175 = vmatpush1.bf16.msra.mxu0 0
        %1176 = vmatprep.subr.bf16.mxu0 0
        %1177 = vmatpush1.bf16.msra.mxu0 0
        %1178 = vmatprep.subr.bf16.mxu0 0
        %1179 = vmatpush1.bf16.msra.mxu0 0
        %1180 = vmatprep.subr.bf16.mxu0 0
        %1181 = vmatpush1.bf16.msra.mxu0 0
        %1182 = vmatprep.subr.bf16.mxu0 0
        %1183 = vmatpush1.bf16.msra.mxu0 0
        %1184 = vmatprep.subr.bf16.mxu0 0
        %1185 = vmatpush1.bf16.msra.mxu0 0
        %1186 = vmatprep.subr.bf16.mxu0 0
        %1187 = vmatpush1.bf16.msra.mxu0 0
        %1188 = vmatprep.subr.bf16.mxu0 0
        %1189 = vmatpush1.bf16.msra.mxu0 0
        %1190 = vmatprep.subr.bf16.mxu0 0
        %1191 = vmatpush1.bf16.msra.mxu0 0
        %1192 = vmatprep.subr.bf16.mxu0 0
        %1193 = vmatpush1.bf16.msra.mxu0 0
        %1194 = vmatprep.subr.bf16.mxu0 0
        %1195 = vmatpush1.bf16.msra.mxu0 0
        %1196 = vmatprep.subr.bf16.mxu0 0
        %1197 = vmatpush1.bf16.msra.mxu0 0
        %1198 = vmatprep.subr.bf16.mxu0 0
        %1199 = vmatpush1.bf16.msra.mxu0 0
        %1200 = vmatprep.subr.bf16.mxu0 0
        %1201 = vmatpush1.bf16.msra.mxu0 0
        %1202 = vmatprep.subr.bf16.mxu0 0
        %1203 = vmatpush1.bf16.msra.mxu0 0
        %1204 = vmatprep.mubr.bf16.mxu0 0
        %1205 = vmatmul.mubr.bf16.gmra.mrb[0].mxu0 %v1167
        %v1206 = vpop.f32.mrb[0].mxu0
        %v1207 = vadd.f32 0.0, %v1206
        %v1208 = vpop.f32.mrb[0].mxu0
        %v1209 = vpop.f32.mrb[0].mxu0
        %v1210 = vadd.f32 0.0, %v1209
        %v1211 = vpop.f32.mrb[0].mxu0
        %1212 = vmatprep.mubr.bf16.mxu0 0
        %1213 = vmatmul.mubr.bf16.gmra.mrb[0].mxu0 %v1170
        %v1214 = vpop.f32.mrb[0].mxu0
        %v1215 = vadd.f32 0.0, %v1214
        %v1216 = vpop.f32.mrb[0].mxu0
        %v1217 = vpop.f32.mrb[0].mxu0
        %v1218 = vadd.f32 0.0, %v1217
        %v1219 = vpop.f32.mrb[0].mxu0
        %1220 = vdwg.mxu0
        %v1225 = vunpack.c.l.b16 %v1147
        %v1226 = vunpack.c.l.b16 %v1148
        %v1227 = vunpack.c.l.b16 %v1149
        %v1228 = vunpack.c.l.b16 %v1150
        %v1229 = vpack.c.b16 %v1226, %v1225
        %v1230 = vpack.c.b16 %v1228, %v1227
        %v1232 = vsel %vm646, %v1229, 0
        %v1235 = vsel %vm646, %v1230, 0
        %1237 = vmatprep.subr.bf16.mxu0 0
        %1238 = vmatpush1.bf16.msra.mxu0 %v1139
        %1239 = vmatprep.subr.bf16.mxu0 0
        %1240 = vmatpush1.bf16.msra.mxu0 0
        %1241 = vmatprep.subr.bf16.mxu0 0
        %1242 = vmatpush1.bf16.msra.mxu0 0
        %1243 = vmatprep.subr.bf16.mxu0 0
        %1244 = vmatpush1.bf16.msra.mxu0 0
        %1245 = vmatprep.subr.bf16.mxu0 0
        %1246 = vmatpush1.bf16.msra.mxu0 0
        %1247 = vmatprep.subr.bf16.mxu0 0
        %1248 = vmatpush1.bf16.msra.mxu0 0
        %1249 = vmatprep.subr.bf16.mxu0 0
        %1250 = vmatpush1.bf16.msra.mxu0 0
        %1251 = vmatprep.subr.bf16.mxu0 0
        %1252 = vmatpush1.bf16.msra.mxu0 0
        %1253 = vmatprep.subr.bf16.mxu0 0
        %1254 = vmatpush1.bf16.msra.mxu0 0
        %1255 = vmatprep.subr.bf16.mxu0 0
        %1256 = vmatpush1.bf16.msra.mxu0 0
        %1257 = vmatprep.subr.bf16.mxu0 0
        %1258 = vmatpush1.bf16.msra.mxu0 0
        %1259 = vmatprep.subr.bf16.mxu0 0
        %1260 = vmatpush1.bf16.msra.mxu0 0
        %1261 = vmatprep.subr.bf16.mxu0 0
        %1262 = vmatpush1.bf16.msra.mxu0 0
        %1263 = vmatprep.subr.bf16.mxu0 0
        %1264 = vmatpush1.bf16.msra.mxu0 0
        %1265 = vmatprep.subr.bf16.mxu0 0
        %1266 = vmatpush1.bf16.msra.mxu0 0
        %1267 = vmatprep.subr.bf16.mxu0 0
        %1268 = vmatpush1.bf16.msra.mxu0 0
        %1269 = vmatprep.mubr.bf16.mxu0 0
        %1270 = vmatmul.mubr.bf16.gmra.mrb[0].mxu0 %v1232
        %v1271 = vpop.f32.mrb[0].mxu0
        %v1272 = vadd.f32 %v1207, %v1271
        %v1273 = vpop.f32.mrb[0].mxu0
        %v1274 = vpop.f32.mrb[0].mxu0
        %v1275 = vadd.f32 %v1210, %v1274
        %v1276 = vpop.f32.mrb[0].mxu0
        %1277 = vmatprep.mubr.bf16.mxu0 0
        %1278 = vmatmul.mubr.bf16.gmra.mrb[0].mxu0 %v1235
        %v1279 = vpop.f32.mrb[0].mxu0
        %v1280 = vadd.f32 %v1215, %v1279
        %v1281 = vpop.f32.mrb[0].mxu0
        %v1282 = vpop.f32.mrb[0].mxu0
        %v1283 = vadd.f32 %v1218, %v1282
        %v1284 = vpop.f32.mrb[0].mxu0
        %1285 = vdwg.mxu0
        %s1286 = scalar_lea.vmem %s8, 32
        %v1287 = vld [vmem:[%s1286] sm:$0xf]
        %v1288 = vld [vmem:[%s1286 + $0x4] sm:$0xf]
        %v1289 = vld [vmem:[%s1286 + $0x8] sm:$0xf]
        %v1290 = vld [vmem:[%s1286 + $0xc] sm:$0xf]
        %v1295 = vunpack.c.l.b16 %v1287
        %v1296 = vunpack.c.l.b16 %v1288
        %v1297 = vunpack.c.l.b16 %v1289
        %v1298 = vunpack.c.l.b16 %v1290
        %v1299 = vpack.c.b16 %v1296, %v1295
        %v1300 = vpack.c.b16 %v1298, %v1297
        %v1302 = vsel %vm646, %v1299, 0
        %v1305 = vsel %vm646, %v1300, 0
        %1307 = vmatprep.subr.bf16.mxu0 0
        %1308 = vmatpush1.bf16.msra.mxu0 %v1146
        %1309 = vmatprep.subr.bf16.mxu0 0
        %1310 = vmatpush1.bf16.msra.mxu0 0
        %1311 = vmatprep.subr.bf16.mxu0 0
        %1312 = vmatpush1.bf16.msra.mxu0 0
        %1313 = vmatprep.subr.bf16.mxu0 0
        %1314 = vmatpush1.bf16.msra.mxu0 0
        %1315 = vmatprep.subr.bf16.mxu0 0
        %1316 = vmatpush1.bf16.msra.mxu0 0
        %1317 = vmatprep.subr.bf16.mxu0 0
        %1318 = vmatpush1.bf16.msra.mxu0 0
        %1319 = vmatprep.subr.bf16.mxu0 0
        %1320 = vmatpush1.bf16.msra.mxu0 0
        %1321 = vmatprep.subr.bf16.mxu0 0
        %1322 = vmatpush1.bf16.msra.mxu0 0
        %1323 = vmatprep.subr.bf16.mxu0 0
        %1324 = vmatpush1.bf16.msra.mxu0 0
        %1325 = vmatprep.subr.bf16.mxu0 0
        %1326 = vmatpush1.bf16.msra.mxu0 0
        %1327 = vmatprep.subr.bf16.mxu0 0
        %1328 = vmatpush1.bf16.msra.mxu0 0
        %1329 = vmatprep.subr.bf16.mxu0 0
        %1330 = vmatpush1.bf16.msra.mxu0 0
        %1331 = vmatprep.subr.bf16.mxu0 0
        %1332 = vmatpush1.bf16.msra.mxu0 0
        %1333 = vmatprep.subr.bf16.mxu0 0
        %1334 = vmatpush1.bf16.msra.mxu0 0
        %1335 = vmatprep.subr.bf16.mxu0 0
        %1336 = vmatpush1.bf16.msra.mxu0 0
        %1337 = vmatprep.subr.bf16.mxu0 0
        %1338 = vmatpush1.bf16.msra.mxu0 0
        %1339 = vmatprep.mubr.bf16.mxu0 0
        %1340 = vmatmul.mubr.bf16.gmra.mrb[0].mxu0 %v1302
        %v1341 = vpop.f32.mrb[0].mxu0
        %v1342 = vadd.f32 0.0, %v1341
        %v1343 = vpop.f32.mrb[0].mxu0
        %v1344 = vpop.f32.mrb[0].mxu0
        %v1345 = vadd.f32 0.0, %v1344
        %v1346 = vpop.f32.mrb[0].mxu0
        %1347 = vmatprep.mubr.bf16.mxu0 0
        %1348 = vmatmul.mubr.bf16.gmra.mrb[0].mxu0 %v1305
        %v1349 = vpop.f32.mrb[0].mxu0
        %v1350 = vadd.f32 0.0, %v1349
        %v1351 = vpop.f32.mrb[0].mxu0
        %v1352 = vpop.f32.mrb[0].mxu0
        %v1353 = vadd.f32 0.0, %v1352
        %v1354 = vpop.f32.mrb[0].mxu0
        %1355 = vdwg.mxu0
        %v1356 = vadd.f32 %v1272, %v1342
        %v1357 = vadd.f32 %v1275, %v1345
        %v1358 = vadd.f32 %v1280, %v1350
        %v1359 = vadd.f32 %v1283, %v1353
        %v1360 = vld [vmem:[%s9] sm:$0x1]
        %1361 = vxpose.xlu0.b32.start [1/16] %v1360, 128
        %1362 = vxpose.xlu0.b32.cont [2/16] 0.0, 128
        %1363 = vxpose.xlu0.b32.cont [3/16] 0.0, 128
        %1364 = vxpose.xlu0.b32.cont [4/16] 0.0, 128
        %1365 = vxpose.xlu0.b32.cont [5/16] 0.0, 128
        %1366 = vxpose.xlu0.b32.cont [6/16] 0.0, 128
        %1367 = vxpose.xlu0.b32.cont [7/16] 0.0, 128
        %1368 = vxpose.xlu0.b32.cont [8/16] 0.0, 128
        %1369 = vxpose.xlu0.b32.cont [9/16] 0.0, 128
        %1370 = vxpose.xlu0.b32.cont [10/16] 0.0, 128
        %1371 = vxpose.xlu0.b32.cont [11/16] 0.0, 128
        %1372 = vxpose.xlu0.b32.cont [12/16] 0.0, 128
        %1373 = vxpose.xlu0.b32.cont [13/16] 0.0, 128
        %1374 = vxpose.xlu0.b32.cont [14/16] 0.0, 128
        %1375 = vxpose.xlu0.b32.cont [15/16] 0.0, 128
        %1376 = vxpose.xlu0.b32.end [16/16] 0.0, 128
        %v1377 = vpop.trf.xlu0
        %v1378 = vpop.trf.xlu0
        %v1379 = vpop.trf.xlu0
        %v1380 = vpop.trf.xlu0
        %v1381 = vpop.trf.xlu0
        %v1382 = vpop.trf.xlu0
        %v1383 = vpop.trf.xlu0
        %v1384 = vpop.trf.xlu0
        %v1385 = vpop.trf.xlu0
        %v1386 = vpop.trf.xlu0
        %v1387 = vpop.trf.xlu0
        %v1388 = vpop.trf.xlu0
        %v1389 = vpop.trf.xlu0
        %v1390 = vpop.trf.xlu0
        %v1391 = vpop.trf.xlu0
        %v1392 = vpop.trf.xlu0
        %1394 = vset.pattern.permute.xlu0 0
        %1395 = vperm.xlu0 %1394, %v1377
        %v1396 = vpop.permute.xlu0 %1395
        %1399 = vset.pattern.permute.xlu0 0
        %1400 = vperm.xlu0 %1399, %v1378
        %v1401 = vpop.permute.xlu0 %1400
        %1404 = vset.pattern.permute.xlu0 0
        %1405 = vperm.xlu0 %1404, %v1379
        %v1406 = vpop.permute.xlu0 %1405
        %1409 = vset.pattern.permute.xlu0 0
        %1410 = vperm.xlu0 %1409, %v1380
        %v1411 = vpop.permute.xlu0 %1410
        %v1413 = vadd.f32 %v1356, %v1396
        %v1414 = vadd.f32 %v1357, %v1401
        %v1415 = vadd.f32 %v1358, %v1406
        %v1416 = vadd.f32 %v1359, %v1411
        %v1417 = vmax.f32 %v1413, 0.0
        %v1418 = vmax.f32 %v1414, 0.0
        %v1419 = vmax.f32 %v1415, 0.0
        %v1420 = vmax.f32 %v1416, 0.0
        %v1421 = vld [vmem:[%s10] sm:$0xf]
        %v1422 = vld [vmem:[%s10 + $0x4] sm:$0xf]
        %v1423 = vpack.c.bf16 %v1418, %v1417
        %v1424 = vpack.c.bf16 %v1420, %v1419
        %v1425 = vld [vmem:[%s11] sm:$0x1]
        %1426 = vxpose.xlu0.b32.start [1/16] %v1425, 128
        %1427 = vxpose.xlu0.b32.cont [2/16] 0.0, 128
        %1428 = vxpose.xlu0.b32.cont [3/16] 0.0, 128
        %1429 = vxpose.xlu0.b32.cont [4/16] 0.0, 128
        %1430 = vxpose.xlu0.b32.cont [5/16] 0.0, 128
        %1431 = vxpose.xlu0.b32.cont [6/16] 0.0, 128
        %1432 = vxpose.xlu0.b32.cont [7/16] 0.0, 128
        %1433 = vxpose.xlu0.b32.cont [8/16] 0.0, 128
        %1434 = vxpose.xlu0.b32.cont [9/16] 0.0, 128
        %1435 = vxpose.xlu0.b32.cont [10/16] 0.0, 128
        %1436 = vxpose.xlu0.b32.cont [11/16] 0.0, 128
        %1437 = vxpose.xlu0.b32.cont [12/16] 0.0, 128
        %1438 = vxpose.xlu0.b32.cont [13/16] 0.0, 128
        %1439 = vxpose.xlu0.b32.cont [14/16] 0.0, 128
        %1440 = vxpose.xlu0.b32.cont [15/16] 0.0, 128
        %1441 = vxpose.xlu0.b32.end [16/16] 0.0, 128
        %v1442 = vpop.trf.xlu0
        %v1443 = vpop.trf.xlu0
        %v1444 = vpop.trf.xlu0
        %v1445 = vpop.trf.xlu0
        %v1446 = vpop.trf.xlu0
        %v1447 = vpop.trf.xlu0
        %v1448 = vpop.trf.xlu0
        %v1449 = vpop.trf.xlu0
        %v1450 = vpop.trf.xlu0
        %v1451 = vpop.trf.xlu0
        %v1452 = vpop.trf.xlu0
        %v1453 = vpop.trf.xlu0
        %v1454 = vpop.trf.xlu0
        %v1455 = vpop.trf.xlu0
        %v1456 = vpop.trf.xlu0
        %v1457 = vpop.trf.xlu0
        %1459 = vset.pattern.permute.xlu0 0
        %1460 = vperm.xlu0 %1459, %v1442
        %v1461 = vpop.permute.xlu0 %1460
        %1464 = vset.pattern.permute.xlu0 0
        %1465 = vperm.xlu0 %1464, %v1443
        %v1466 = vpop.permute.xlu0 %1465
        %v1470 = vunpack.c.l.b16 %v1421
        %v1471 = vunpack.c.l.b16 %v1422
        %v1472 = vpack.c.b16 %v1471, %v1470
        %vm1473 = vcmask 261120
        %v1475 = vsel %vm1473, %v1472, 0
        %1477 = vmatprep.subr.bf16.mxu0 0
        %1478 = vmatpush1.bf16.msra.mxu0 %v1423
        %1479 = vmatprep.subr.bf16.mxu0 0
        %1480 = vmatpush1.bf16.msra.mxu0 %v1424
        %1481 = vmatprep.subr.bf16.mxu0 0
        %1482 = vmatpush1.bf16.msra.mxu0 0
        %1483 = vmatprep.subr.bf16.mxu0 0
        %1484 = vmatpush1.bf16.msra.mxu0 0
        %1485 = vmatprep.subr.bf16.mxu0 0
        %1486 = vmatpush1.bf16.msra.mxu0 0
        %1487 = vmatprep.subr.bf16.mxu0 0
        %1488 = vmatpush1.bf16.msra.mxu0 0
        %1489 = vmatprep.subr.bf16.mxu0 0
        %1490 = vmatpush1.bf16.msra.mxu0 0
        %1491 = vmatprep.subr.bf16.mxu0 0
        %1492 = vmatpush1.bf16.msra.mxu0 0
        %1493 = vmatprep.subr.bf16.mxu0 0
        %1494 = vmatpush1.bf16.msra.mxu0 0
        %1495 = vmatprep.subr.bf16.mxu0 0
        %1496 = vmatpush1.bf16.msra.mxu0 0
        %1497 = vmatprep.subr.bf16.mxu0 0
        %1498 = vmatpush1.bf16.msra.mxu0 0
        %1499 = vmatprep.subr.bf16.mxu0 0
        %1500 = vmatpush1.bf16.msra.mxu0 0
        %1501 = vmatprep.subr.bf16.mxu0 0
        %1502 = vmatpush1.bf16.msra.mxu0 0
        %1503 = vmatprep.subr.bf16.mxu0 0
        %1504 = vmatpush1.bf16.msra.mxu0 0
        %1505 = vmatprep.subr.bf16.mxu0 0
        %1506 = vmatpush1.bf16.msra.mxu0 0
        %1507 = vmatprep.subr.bf16.mxu0 0
        %1508 = vmatpush1.bf16.msra.mxu0 0
        %1509 = vmatprep.mubr.bf16.mxu0 0
        %1510 = vmatmul.mubr.bf16.gmra.mrb[0].mxu0 %v1475
        %v1511 = vpop.f32.mrb[0].mxu0
        %v1512 = vadd.f32 %v1461, %v1511
        %v1513 = vpop.f32.mrb[0].mxu0
        %v1514 = vpop.f32.mrb[0].mxu0
        %v1515 = vadd.f32 %v1466, %v1514
        %v1516 = vpop.f32.mrb[0].mxu0
        %1517 = vdwg.mxu0
        %v1518 = vadd.f32 %v1122, %v1512
        %v1519 = vadd.f32 %v1123, %v1515
        %1520 = vadd.xlane.f32.xlu0 %v1518
        %v1521 = vpop.xlane.xlu0 %1520
        %1522 = vadd.xlane.f32.xlu0 %v1519
        %v1523 = vpop.xlane.xlu0 %1522
        %v1524 = vrcp.pop 128.0
        %v1525 = vmul.f32 %v1521, %v1524
        %v1526 = vmul.f32 %v1523, %v1524
        %v1527 = vsub.f32 %v1518, %v1525
        %v1528 = vsub.f32 %v1519, %v1526
        %v1529 = vmul.f32 %v1527, %v1527
        %v1530 = vmul.f32 %v1528, %v1528
        %1531 = vadd.xlane.f32.xlu0 %v1529
        %v1532 = vpop.xlane.xlu0 %1531
        %1533 = vadd.xlane.f32.xlu0 %v1530
        %v1534 = vpop.xlane.xlu0 %1533
        %v1535 = vmul.f32 %v1532, %v1524
        %v1536 = vmul.f32 %v1534, %v1524
        %v1537 = vadd.f32 %v1535, 1e-05
        %v1538 = vadd.f32 %v1536, 1e-05
        %v1539 = vrsqrt.pop %v1537
        %v1540 = vrsqrt.pop %v1538
        %v1541 = vmul.f32 %v1527, %v1539
        %v1542 = vmul.f32 %v1528, %v1540
        %v1543 = vld [vmem:[%s12] sm:$0x1]
        %v1545 = vlaneseq
        %v1546 = vshrl.u32 %v1545, 7
        %v1547 = vsub.s32 0, %v1546
        %v1548 = vrot.slane %v1543, %v1547
        %v1550 = vmul.f32 %v1541, %v1548
        %v1551 = vmul.f32 %v1542, %v1548
        %v1552 = vld [vmem:[%s13] sm:$0x1]
        %v1554 = vlaneseq
        %v1555 = vshrl.u32 %v1554, 7
        %v1556 = vsub.s32 0, %v1555
        %v1557 = vrot.slane %v1552, %v1556
        %v1559 = vadd.f32 %v1550, %v1557
        %v1560 = vadd.f32 %v1551, %v1557
        %v1561 = vpack.c.bf16 %v1560, %v1559
        %1562 = vrot.lane.b32.xlu0 %v1559, 1
        %v1563 = vpop.permute.xlu0 %1562
        %1564 = vrot.lane.b32.xlu0 %v1560, 1
        %v1565 = vpop.permute.xlu0 %1564
        %v1566 = vmul.f32 %v1563, %v1128
        %v1567 = vmul.f32 %v1565, %v1128
        %v1568 = vpack.c.bf16 %v1567, %v1566
        %1569 = vrot.lane.b32.xlu0 %v1559, 127
        %v1570 = vpop.permute.xlu0 %1569
        %1571 = vrot.lane.b32.xlu0 %v1560, 127
        %v1572 = vpop.permute.xlu0 %1571
        %v1573 = vmul.f32 %v1570, %v1131
        %v1574 = vmul.f32 %v1572, %v1131
        %v1575 = vpack.c.bf16 %v1574, %v1573
        %s1576 = scalar_lea.vmem %s8, 48
        %v1577 = vld [vmem:[%s1576] sm:$0xf]
        %v1578 = vld [vmem:[%s1576 + $0x4] sm:$0xf]
        %v1579 = vld [vmem:[%s1576 + $0x8] sm:$0xf]
        %v1580 = vld [vmem:[%s1576 + $0xc] sm:$0xf]
        %s1581 = scalar_lea.vmem %s8, 64
        %v1582 = vld [vmem:[%s1581] sm:$0xf]
        %v1583 = vld [vmem:[%s1581 + $0x4] sm:$0xf]
        %v1584 = vld [vmem:[%s1581 + $0x8] sm:$0xf]
        %v1585 = vld [vmem:[%s1581 + $0xc] sm:$0xf]
        %v1590 = vunpack.c.l.b16 %v1582
        %v1591 = vunpack.c.l.b16 %v1583
        %v1592 = vunpack.c.l.b16 %v1584
        %v1593 = vunpack.c.l.b16 %v1585
        %v1594 = vpack.c.b16 %v1591, %v1590
        %v1595 = vpack.c.b16 %v1593, %v1592
        %v1597 = vsel %vm646, %v1594, 0
        %v1600 = vsel %vm646, %v1595, 0
        %1602 = vmatprep.subr.bf16.mxu0 0
        %1603 = vmatpush1.bf16.msra.mxu0 %v1561
        %1604 = vmatprep.subr.bf16.mxu0 0
        %1605 = vmatpush1.bf16.msra.mxu0 0
        %1606 = vmatprep.subr.bf16.mxu0 0
        %1607 = vmatpush1.bf16.msra.mxu0 0
        %1608 = vmatprep.subr.bf16.mxu0 0
        %1609 = vmatpush1.bf16.msra.mxu0 0
        %1610 = vmatprep.subr.bf16.mxu0 0
        %1611 = vmatpush1.bf16.msra.mxu0 0
        %1612 = vmatprep.subr.bf16.mxu0 0
        %1613 = vmatpush1.bf16.msra.mxu0 0
        %1614 = vmatprep.subr.bf16.mxu0 0
        %1615 = vmatpush1.bf16.msra.mxu0 0
        %1616 = vmatprep.subr.bf16.mxu0 0
        %1617 = vmatpush1.bf16.msra.mxu0 0
        %1618 = vmatprep.subr.bf16.mxu0 0
        %1619 = vmatpush1.bf16.msra.mxu0 0
        %1620 = vmatprep.subr.bf16.mxu0 0
        %1621 = vmatpush1.bf16.msra.mxu0 0
        %1622 = vmatprep.subr.bf16.mxu0 0
        %1623 = vmatpush1.bf16.msra.mxu0 0
        %1624 = vmatprep.subr.bf16.mxu0 0
        %1625 = vmatpush1.bf16.msra.mxu0 0
        %1626 = vmatprep.subr.bf16.mxu0 0
        %1627 = vmatpush1.bf16.msra.mxu0 0
        %1628 = vmatprep.subr.bf16.mxu0 0
        %1629 = vmatpush1.bf16.msra.mxu0 0
        %1630 = vmatprep.subr.bf16.mxu0 0
        %1631 = vmatpush1.bf16.msra.mxu0 0
        %1632 = vmatprep.subr.bf16.mxu0 0
        %1633 = vmatpush1.bf16.msra.mxu0 0
        %1634 = vmatprep.mubr.bf16.mxu0 0
        %1635 = vmatmul.mubr.bf16.gmra.mrb[0].mxu0 %v1597
        %v1636 = vpop.f32.mrb[0].mxu0
        %v1637 = vadd.f32 0.0, %v1636
        %v1638 = vpop.f32.mrb[0].mxu0
        %v1639 = vpop.f32.mrb[0].mxu0
        %v1640 = vadd.f32 0.0, %v1639
        %v1641 = vpop.f32.mrb[0].mxu0
        %1642 = vmatprep.mubr.bf16.mxu0 0
        %1643 = vmatmul.mubr.bf16.gmra.mrb[0].mxu0 %v1600
        %v1644 = vpop.f32.mrb[0].mxu0
        %v1645 = vadd.f32 0.0, %v1644
        %v1646 = vpop.f32.mrb[0].mxu0
        %v1647 = vpop.f32.mrb[0].mxu0
        %v1648 = vadd.f32 0.0, %v1647
        %v1649 = vpop.f32.mrb[0].mxu0
        %1650 = vdwg.mxu0
        %v1655 = vunpack.c.l.b16 %v1577
        %v1656 = vunpack.c.l.b16 %v1578
        %v1657 = vunpack.c.l.b16 %v1579
        %v1658 = vunpack.c.l.b16 %v1580
        %v1659 = vpack.c.b16 %v1656, %v1655
        %v1660 = vpack.c.b16 %v1658, %v1657
        %v1662 = vsel %vm646, %v1659, 0
        %v1665 = vsel %vm646, %v1660, 0
        %1667 = vmatprep.subr.bf16.mxu0 0
        %1668 = vmatpush1.bf16.msra.mxu0 %v1568
        %1669 = vmatprep.subr.bf16.mxu0 0
        %1670 = vmatpush1.bf16.msra.mxu0 0
        %1671 = vmatprep.subr.bf16.mxu0 0
        %1672 = vmatpush1.bf16.msra.mxu0 0
        %1673 = vmatprep.subr.bf16.mxu0 0
        %1674 = vmatpush1.bf16.msra.mxu0 0
        %1675 = vmatprep.subr.bf16.mxu0 0
        %1676 = vmatpush1.bf16.msra.mxu0 0
        %1677 = vmatprep.subr.bf16.mxu0 0
        %1678 = vmatpush1.bf16.msra.mxu0 0
        %1679 = vmatprep.subr.bf16.mxu0 0
        %1680 = vmatpush1.bf16.msra.mxu0 0
        %1681 = vmatprep.subr.bf16.mxu0 0
        %1682 = vmatpush1.bf16.msra.mxu0 0
        %1683 = vmatprep.subr.bf16.mxu0 0
        %1684 = vmatpush1.bf16.msra.mxu0 0
        %1685 = vmatprep.subr.bf16.mxu0 0
        %1686 = vmatpush1.bf16.msra.mxu0 0
        %1687 = vmatprep.subr.bf16.mxu0 0
        %1688 = vmatpush1.bf16.msra.mxu0 0
        %1689 = vmatprep.subr.bf16.mxu0 0
        %1690 = vmatpush1.bf16.msra.mxu0 0
        %1691 = vmatprep.subr.bf16.mxu0 0
        %1692 = vmatpush1.bf16.msra.mxu0 0
        %1693 = vmatprep.subr.bf16.mxu0 0
        %1694 = vmatpush1.bf16.msra.mxu0 0
        %1695 = vmatprep.subr.bf16.mxu0 0
        %1696 = vmatpush1.bf16.msra.mxu0 0
        %1697 = vmatprep.subr.bf16.mxu0 0
        %1698 = vmatpush1.bf16.msra.mxu0 0
        %1699 = vmatprep.mubr.bf16.mxu0 0
        %1700 = vmatmul.mubr.bf16.gmra.mrb[0].mxu0 %v1662
        %v1701 = vpop.f32.mrb[0].mxu0
        %v1702 = vadd.f32 %v1637, %v1701
        %v1703 = vpop.f32.mrb[0].mxu0
        %v1704 = vpop.f32.mrb[0].mxu0
        %v1705 = vadd.f32 %v1640, %v1704
        %v1706 = vpop.f32.mrb[0].mxu0
        %1707 = vmatprep.mubr.bf16.mxu0 0
        %1708 = vmatmul.mubr.bf16.gmra.mrb[0].mxu0 %v1665
        %v1709 = vpop.f32.mrb[0].mxu0
        %v1710 = vadd.f32 %v1645, %v1709
        %v1711 = vpop.f32.mrb[0].mxu0
        %v1712 = vpop.f32.mrb[0].mxu0
        %v1713 = vadd.f32 %v1648, %v1712
        %v1714 = vpop.f32.mrb[0].mxu0
        %1715 = vdwg.mxu0
        %s1716 = scalar_lea.vmem %s8, 80
        %v1717 = vld [vmem:[%s1716] sm:$0xf]
        %v1718 = vld [vmem:[%s1716 + $0x4] sm:$0xf]
        %v1719 = vld [vmem:[%s1716 + $0x8] sm:$0xf]
        %v1720 = vld [vmem:[%s1716 + $0xc] sm:$0xf]
        %v1725 = vunpack.c.l.b16 %v1717
        %v1726 = vunpack.c.l.b16 %v1718
        %v1727 = vunpack.c.l.b16 %v1719
        %v1728 = vunpack.c.l.b16 %v1720
        %v1729 = vpack.c.b16 %v1726, %v1725
        %v1730 = vpack.c.b16 %v1728, %v1727
        %v1732 = vsel %vm646, %v1729, 0
        %v1735 = vsel %vm646, %v1730, 0
        %1737 = vmatprep.subr.bf16.mxu0 0
        %1738 = vmatpush1.bf16.msra.mxu0 %v1575
        %1739 = vmatprep.subr.bf16.mxu0 0
        %1740 = vmatpush1.bf16.msra.mxu0 0
        %1741 = vmatprep.subr.bf16.mxu0 0
        %1742 = vmatpush1.bf16.msra.mxu0 0
        %1743 = vmatprep.subr.bf16.mxu0 0
        %1744 = vmatpush1.bf16.msra.mxu0 0
        %1745 = vmatprep.subr.bf16.mxu0 0
        %1746 = vmatpush1.bf16.msra.mxu0 0
        %1747 = vmatprep.subr.bf16.mxu0 0
        %1748 = vmatpush1.bf16.msra.mxu0 0
        %1749 = vmatprep.subr.bf16.mxu0 0
        %1750 = vmatpush1.bf16.msra.mxu0 0
        %1751 = vmatprep.subr.bf16.mxu0 0
        %1752 = vmatpush1.bf16.msra.mxu0 0
        %1753 = vmatprep.subr.bf16.mxu0 0
        %1754 = vmatpush1.bf16.msra.mxu0 0
        %1755 = vmatprep.subr.bf16.mxu0 0
        %1756 = vmatpush1.bf16.msra.mxu0 0
        %1757 = vmatprep.subr.bf16.mxu0 0
        %1758 = vmatpush1.bf16.msra.mxu0 0
        %1759 = vmatprep.subr.bf16.mxu0 0
        %1760 = vmatpush1.bf16.msra.mxu0 0
        %1761 = vmatprep.subr.bf16.mxu0 0
        %1762 = vmatpush1.bf16.msra.mxu0 0
        %1763 = vmatprep.subr.bf16.mxu0 0
        %1764 = vmatpush1.bf16.msra.mxu0 0
        %1765 = vmatprep.subr.bf16.mxu0 0
        %1766 = vmatpush1.bf16.msra.mxu0 0
        %1767 = vmatprep.subr.bf16.mxu0 0
        %1768 = vmatpush1.bf16.msra.mxu0 0
        %1769 = vmatprep.mubr.bf16.mxu0 0
        %1770 = vmatmul.mubr.bf16.gmra.mrb[0].mxu0 %v1732
        %v1771 = vpop.f32.mrb[0].mxu0
        %v1772 = vadd.f32 0.0, %v1771
        %v1773 = vpop.f32.mrb[0].mxu0
        %v1774 = vpop.f32.mrb[0].mxu0
        %v1775 = vadd.f32 0.0, %v1774
        %v1776 = vpop.f32.mrb[0].mxu0
        %1777 = vmatprep.mubr.bf16.mxu0 0
        %1778 = vmatmul.mubr.bf16.gmra.mrb[0].mxu0 %v1735
        %v1779 = vpop.f32.mrb[0].mxu0
        %v1780 = vadd.f32 0.0, %v1779
        %v1781 = vpop.f32.mrb[0].mxu0
        %v1782 = vpop.f32.mrb[0].mxu0
        %v1783 = vadd.f32 0.0, %v1782
        %v1784 = vpop.f32.mrb[0].mxu0
        %1785 = vdwg.mxu0
        %v1786 = vadd.f32 %v1702, %v1772
        %v1787 = vadd.f32 %v1705, %v1775
        %v1788 = vadd.f32 %v1710, %v1780
        %v1789 = vadd.f32 %v1713, %v1783
        %s1790 = scalar_lea.vmem %s9, 1
        %v1791 = vld [vmem:[%s1790] sm:$0x1]
        %1792 = vxpose.xlu0.b32.start [1/16] %v1791, 128
        %1793 = vxpose.xlu0.b32.cont [2/16] 0.0, 128
        %1794 = vxpose.xlu0.b32.cont [3/16] 0.0, 128
        %1795 = vxpose.xlu0.b32.cont [4/16] 0.0, 128
        %1796 = vxpose.xlu0.b32.cont [5/16] 0.0, 128
        %1797 = vxpose.xlu0.b32.cont [6/16] 0.0, 128
        %1798 = vxpose.xlu0.b32.cont [7/16] 0.0, 128
        %1799 = vxpose.xlu0.b32.cont [8/16] 0.0, 128
        %1800 = vxpose.xlu0.b32.cont [9/16] 0.0, 128
        %1801 = vxpose.xlu0.b32.cont [10/16] 0.0, 128
        %1802 = vxpose.xlu0.b32.cont [11/16] 0.0, 128
        %1803 = vxpose.xlu0.b32.cont [12/16] 0.0, 128
        %1804 = vxpose.xlu0.b32.cont [13/16] 0.0, 128
        %1805 = vxpose.xlu0.b32.cont [14/16] 0.0, 128
        %1806 = vxpose.xlu0.b32.cont [15/16] 0.0, 128
        %1807 = vxpose.xlu0.b32.end [16/16] 0.0, 128
        %v1808 = vpop.trf.xlu0
        %v1809 = vpop.trf.xlu0
        %v1810 = vpop.trf.xlu0
        %v1811 = vpop.trf.xlu0
        %v1812 = vpop.trf.xlu0
        %v1813 = vpop.trf.xlu0
        %v1814 = vpop.trf.xlu0
        %v1815 = vpop.trf.xlu0
        %v1816 = vpop.trf.xlu0
        %v1817 = vpop.trf.xlu0
        %v1818 = vpop.trf.xlu0
        %v1819 = vpop.trf.xlu0
        %v1820 = vpop.trf.xlu0
        %v1821 = vpop.trf.xlu0
        %v1822 = vpop.trf.xlu0
        %v1823 = vpop.trf.xlu0
        %1825 = vset.pattern.permute.xlu0 0
        %1826 = vperm.xlu0 %1825, %v1808
        %v1827 = vpop.permute.xlu0 %1826
        %1830 = vset.pattern.permute.xlu0 0
        %1831 = vperm.xlu0 %1830, %v1809
        %v1832 = vpop.permute.xlu0 %1831
        %1835 = vset.pattern.permute.xlu0 0
        %1836 = vperm.xlu0 %1835, %v1810
        %v1837 = vpop.permute.xlu0 %1836
        %1840 = vset.pattern.permute.xlu0 0
        %1841 = vperm.xlu0 %1840, %v1811
        %v1842 = vpop.permute.xlu0 %1841
        %v1844 = vadd.f32 %v1786, %v1827
        %v1845 = vadd.f32 %v1787, %v1832
        %v1846 = vadd.f32 %v1788, %v1837
        %v1847 = vadd.f32 %v1789, %v1842
        %v1848 = vmax.f32 %v1844, 0.0
        %v1849 = vmax.f32 %v1845, 0.0
        %v1850 = vmax.f32 %v1846, 0.0
        %v1851 = vmax.f32 %v1847, 0.0
        %s1852 = scalar_lea.vmem %s10, 8
        %v1853 = vld [vmem:[%s1852] sm:$0xf]
        %v1854 = vld [vmem:[%s1852 + $0x4] sm:$0xf]
        %v1855 = vpack.c.bf16 %v1849, %v1848
        %v1856 = vpack.c.bf16 %v1851, %v1850
        %s1857 = scalar_lea.vmem %s11, 1
        %v1858 = vld [vmem:[%s1857] sm:$0x1]
        %1859 = vxpose.xlu0.b32.start [1/16] %v1858, 128
        %1860 = vxpose.xlu0.b32.cont [2/16] 0.0, 128
        %1861 = vxpose.xlu0.b32.cont [3/16] 0.0, 128
        %1862 = vxpose.xlu0.b32.cont [4/16] 0.0, 128
        %1863 = vxpose.xlu0.b32.cont [5/16] 0.0, 128
        %1864 = vxpose.xlu0.b32.cont [6/16] 0.0, 128
        %1865 = vxpose.xlu0.b32.cont [7/16] 0.0, 128
        %1866 = vxpose.xlu0.b32.cont [8/16] 0.0, 128
        %1867 = vxpose.xlu0.b32.cont [9/16] 0.0, 128
        %1868 = vxpose.xlu0.b32.cont [10/16] 0.0, 128
        %1869 = vxpose.xlu0.b32.cont [11/16] 0.0, 128
        %1870 = vxpose.xlu0.b32.cont [12/16] 0.0, 128
        %1871 = vxpose.xlu0.b32.cont [13/16] 0.0, 128
        %1872 = vxpose.xlu0.b32.cont [14/16] 0.0, 128
        %1873 = vxpose.xlu0.b32.cont [15/16] 0.0, 128
        %1874 = vxpose.xlu0.b32.end [16/16] 0.0, 128
        %v1875 = vpop.trf.xlu0
        %v1876 = vpop.trf.xlu0
        %v1877 = vpop.trf.xlu0
        %v1878 = vpop.trf.xlu0
        %v1879 = vpop.trf.xlu0
        %v1880 = vpop.trf.xlu0
        %v1881 = vpop.trf.xlu0
        %v1882 = vpop.trf.xlu0
        %v1883 = vpop.trf.xlu0
        %v1884 = vpop.trf.xlu0
        %v1885 = vpop.trf.xlu0
        %v1886 = vpop.trf.xlu0
        %v1887 = vpop.trf.xlu0
        %v1888 = vpop.trf.xlu0
        %v1889 = vpop.trf.xlu0
        %v1890 = vpop.trf.xlu0
        %1892 = vset.pattern.permute.xlu0 0
        %1893 = vperm.xlu0 %1892, %v1875
        %v1894 = vpop.permute.xlu0 %1893
        %1897 = vset.pattern.permute.xlu0 0
        %1898 = vperm.xlu0 %1897, %v1876
        %v1899 = vpop.permute.xlu0 %1898
        %v1903 = vunpack.c.l.b16 %v1853
        %v1904 = vunpack.c.l.b16 %v1854
        %v1905 = vpack.c.b16 %v1904, %v1903
        %v1907 = vsel %vm1473, %v1905, 0
        %1909 = vmatprep.subr.bf16.mxu0 0
        %1910 = vmatpush1.bf16.msra.mxu0 %v1855
        %1911 = vmatprep.subr.bf16.mxu0 0
        %1912 = vmatpush1.bf16.msra.mxu0 %v1856
        %1913 = vmatprep.subr.bf16.mxu0 0
        %1914 = vmatpush1.bf16.msra.mxu0 0
        %1915 = vmatprep.subr.bf16.mxu0 0
        %1916 = vmatpush1.bf16.msra.mxu0 0
        %1917 = vmatprep.subr.bf16.mxu0 0
        %1918 = vmatpush1.bf16.msra.mxu0 0
        %1919 = vmatprep.subr.bf16.mxu0 0
        %1920 = vmatpush1.bf16.msra.mxu0 0
        %1921 = vmatprep.subr.bf16.mxu0 0
        %1922 = vmatpush1.bf16.msra.mxu0 0
        %1923 = vmatprep.subr.bf16.mxu0 0
        %1924 = vmatpush1.bf16.msra.mxu0 0
        %1925 = vmatprep.subr.bf16.mxu0 0
        %1926 = vmatpush1.bf16.msra.mxu0 0
        %1927 = vmatprep.subr.bf16.mxu0 0
        %1928 = vmatpush1.bf16.msra.mxu0 0
        %1929 = vmatprep.subr.bf16.mxu0 0
        %1930 = vmatpush1.bf16.msra.mxu0 0
        %1931 = vmatprep.subr.bf16.mxu0 0
        %1932 = vmatpush1.bf16.msra.mxu0 0
        %1933 = vmatprep.subr.bf16.mxu0 0
        %1934 = vmatpush1.bf16.msra.mxu0 0
        %1935 = vmatprep.subr.bf16.mxu0 0
        %1936 = vmatpush1.bf16.msra.mxu0 0
        %1937 = vmatprep.subr.bf16.mxu0 0
        %1938 = vmatpush1.bf16.msra.mxu0 0
        %1939 = vmatprep.subr.bf16.mxu0 0
        %1940 = vmatpush1.bf16.msra.mxu0 0
        %1941 = vmatprep.mubr.bf16.mxu0 0
        %1942 = vmatmul.mubr.bf16.gmra.mrb[0].mxu0 %v1907
        %v1943 = vpop.f32.mrb[0].mxu0
        %v1944 = vadd.f32 %v1894, %v1943
        %v1945 = vpop.f32.mrb[0].mxu0
        %v1946 = vpop.f32.mrb[0].mxu0
        %v1947 = vadd.f32 %v1899, %v1946
        %v1948 = vpop.f32.mrb[0].mxu0
        %1949 = vdwg.mxu0
        %v1950 = vadd.f32 %v1559, %v1944
        %v1951 = vadd.f32 %v1560, %v1947
        %1952 = vadd.xlane.f32.xlu0 %v1950
        %v1953 = vpop.xlane.xlu0 %1952
        %1954 = vadd.xlane.f32.xlu0 %v1951
        %v1955 = vpop.xlane.xlu0 %1954
        %v1956 = vmul.f32 %v1953, %v1524
        %v1957 = vmul.f32 %v1955, %v1524
        %v1958 = vsub.f32 %v1950, %v1956
        %v1959 = vsub.f32 %v1951, %v1957
        %v1960 = vmul.f32 %v1958, %v1958
        %v1961 = vmul.f32 %v1959, %v1959
        %1962 = vadd.xlane.f32.xlu0 %v1960
        %v1963 = vpop.xlane.xlu0 %1962
        %1964 = vadd.xlane.f32.xlu0 %v1961
        %v1965 = vpop.xlane.xlu0 %1964
        %v1966 = vmul.f32 %v1963, %v1524
        %v1967 = vmul.f32 %v1965, %v1524
        %v1968 = vadd.f32 %v1966, 1e-05
        %v1969 = vadd.f32 %v1967, 1e-05
        %v1970 = vrsqrt.pop %v1968
        %v1971 = vrsqrt.pop %v1969
        %v1972 = vmul.f32 %v1958, %v1970
        %v1973 = vmul.f32 %v1959, %v1971
        %s1974 = scalar_lea.vmem %s12, 1
        %v1975 = vld [vmem:[%s1974] sm:$0x1]
        %v1977 = vlaneseq
        %v1978 = vshrl.u32 %v1977, 7
        %v1979 = vsub.s32 0, %v1978
        %v1980 = vrot.slane %v1975, %v1979
        %v1982 = vmul.f32 %v1972, %v1980
        %v1983 = vmul.f32 %v1973, %v1980
        %s1984 = scalar_lea.vmem %s13, 1
        %v1985 = vld [vmem:[%s1984] sm:$0x1]
        %v1987 = vlaneseq
        %v1988 = vshrl.u32 %v1987, 7
        %v1989 = vsub.s32 0, %v1988
        %v1990 = vrot.slane %v1985, %v1989
        %v1992 = vadd.f32 %v1982, %v1990
        %v1993 = vadd.f32 %v1983, %v1990
        %v1994 = vld [vmem:[%s14] sm:$0x1]
        %v1995 = vpack.c.bf16 %v1993, %v1992
        %v1996 = vld [vmem:[%s15] sm:$0x3]
        %1998 = vset.pattern.permute.xlu0 0
        %1999 = vperm.xlu0 %1998, %v1996
        %v2000 = vpop.permute.xlu0 %1999
        %2002 = vmatprep.subr.bf16.mxu0 0
        %2003 = vmatpush1.bf16.xpose.msra.mxu0 %v1995
        %2004 = vmatprep.subr.bf16.mxu0 0
        %2005 = vmatpush1.bf16.xpose.msra.mxu0 0
        %2006 = vmatprep.subr.bf16.mxu0 0
        %2007 = vmatpush1.bf16.xpose.msra.mxu0 0
        %2008 = vmatprep.subr.bf16.mxu0 0
        %2009 = vmatpush1.bf16.xpose.msra.mxu0 0
        %2010 = vmatprep.subr.bf16.mxu0 0
        %2011 = vmatpush1.bf16.xpose.msra.mxu0 0
        %2012 = vmatprep.subr.bf16.mxu0 0
        %2013 = vmatpush1.bf16.xpose.msra.mxu0 0
        %2014 = vmatprep.subr.bf16.mxu0 0
        %2015 = vmatpush1.bf16.xpose.msra.mxu0 0
        %2016 = vmatprep.subr.bf16.mxu0 0
        %2017 = vmatpush1.bf16.xpose.msra.mxu0 0
        %2018 = vmatprep.subr.bf16.mxu0 0
        %2019 = vmatpush1.bf16.xpose.msra.mxu0 0
        %2020 = vmatprep.subr.bf16.mxu0 0
        %2021 = vmatpush1.bf16.xpose.msra.mxu0 0
        %2022 = vmatprep.subr.bf16.mxu0 0
        %2023 = vmatpush1.bf16.xpose.msra.mxu0 0
        %2024 = vmatprep.subr.bf16.mxu0 0
        %2025 = vmatpush1.bf16.xpose.msra.mxu0 0
        %2026 = vmatprep.subr.bf16.mxu0 0
        %2027 = vmatpush1.bf16.xpose.msra.mxu0 0
        %2028 = vmatprep.subr.bf16.mxu0 0
        %2029 = vmatpush1.bf16.xpose.msra.mxu0 0
        %2030 = vmatprep.subr.bf16.mxu0 0
        %2031 = vmatpush1.bf16.xpose.msra.mxu0 0
        %2032 = vmatprep.subr.bf16.mxu0 0
        %2033 = vmatpush1.bf16.xpose.msra.mxu0 0
        %2034 = vmatprep.mubr.bf16.mxu0 0
        %2035 = vmatmul.mubr.bf16.gmra.mrb[0].mxu0 %v1994
        %v2036 = vpop.f32.mrb[0].mxu0
        %v2037 = vadd.f32 %v2000, %v2036
        %v2038 = vpop.f32.mrb[0].mxu0
        %v2039 = vpop.f32.mrb[0].mxu0
        %v2040 = vpop.f32.mrb[0].mxu0
        %2041 = vdwg.mxu0
        %v2042 = vld [vmem:[%s16] sm:$0x1]
        %v2043 = vunpack.c.l.bf16 %v916
        %v2044 = vunpack.c.l.bf16 %v2042
        %v2045 = vmul.f32 %v2043, %v2044
        %vm2046 = vcmask 1040384
        %v2047 = vsel %vm2046, %v2045, 0.0
        %2048 = vadd.xlane.f32.xlu0 %v2047
        %v2049 = vpop.xlane.xlu0 %2048
        %v2050 = vld [vmem:[#allocation2] sm:$0x1]
        %v2051 = vadd.f32 %v2049, %v2050
        %v2052 = vxor.u32 %v2051, 2147483648
        %v2053 = vmul.f32 %v2052, 1.442695
        %v2054 = vpow.pop %v2053
        %v2055 = vadd.f32 %v2054, 1.0
        %v2056 = vrcp.pop %v2055
        %v2057 = vmul.f32 1.0, %v2056
        %2059 = vset.pattern.permute.xlu0 0
        %2060 = vperm.xlu0 %2059, %v2057
        %v2061 = vpop.permute.xlu0 %2060
        %v2062 = vrot.slane %v2061, 6
        %vm2064 = vcmask 1041408
        %v2065 = vsel %vm2064, %v2037, %v2062
        %vm2066 = vcmask 124928
        %2067 = vst.msk [vmem:[%s629] sm:$0x7] %vm2066, %v2065
        %p2068 = scmp.lt.s32.totalorder %s33, 1
        %s2069 = scalar_select %p2068, %s33, 1
        %s2070 = smul.addr %s2069, 4
        %s2071 = scalar_lea.vmem %s18, %s2070
        // Predicated region
        $region105: #{tpu_custom_call.1} parent=91 // pred_check
          %p2072 = pneg %p439
        $region106: #{tpu_custom_call.1} parent=91 // pred_check_branch
          %2074 = sbr.rel (%p2072) target = $region108
        $region107: #{tpu_custom_call.1} parent=91 // pred_region
          _
        $region108: #{tpu_custom_call.1} parent=91 // pred_fallthru
          _
      $region92: #{tpu_custom_call.1} parent=5 // pred_fallthru
        _
      %p2075 = scmp.le.s32.totalorder 2, %s28
      // Predicated region
      $region109: #{tpu_custom_call.1} parent=5 // pred_check
        %p2076 = pneg %p2075
      $region110: #{tpu_custom_call.1} parent=5 // pred_check_branch
        %2078 = sbr.rel (%p2076) target = $region112
      $region111: #{tpu_custom_call.1} parent=5 // pred_region
        %s2079 = ssub.s32 %s28, 2
        // Predicated region
        $region113: #{tpu_custom_call.1} parent=111 // pred_check
          %p2080 = pneg %p445
        $region114: #{tpu_custom_call.1} parent=111 // pred_check_branch
          %2082 = sbr.rel (%p2080) target = $region116
        $region115: #{tpu_custom_call.1} parent=111 // pred_region
          %p2083 = scmp.lt.s32.totalorder %s34, 1
          %s2084 = scalar_select %p2083, %s34, 1
          %s2085 = smul.addr %s2084, 4
          %s2086 = scalar_lea.vmem %s18, %s2085
        $region116: #{tpu_custom_call.1} parent=111 // pred_fallthru
          _
      $region112: #{tpu_custom_call.1} parent=5 // pred_fallthru
        _
    $region6: #{tpu_custom_call.1} parent=1 // loop_footer
      %s32 = sadd.s32 1, %s28
    $region7: #{tpu_custom_call.1} parent=1 // loop_footer_branch
      %27 = sbr.rel target = $region3
    $region8: #{tpu_custom_call.1} parent=1 // loop_exit
      _
    %2087 = vsyncpa [#allocation4], 1
    %s2088 = scalar_lea.sflag [#allocation4], 1
    %2089 = vsyncpa %s2088, 1
    %2090 = vsyncpa [#allocation6], 1

</llo_original>
